<compile_context>
chip_gen: v6e
topology: v6e:2x2x1
jax: 0.10.0
libtpu: 0.0.40
codegen_flags: <defaults>
</compile_context>

<pallas_src>
import functools

import jax
import jax.numpy as jnp
from jax.experimental import pallas as pl
from jax.experimental.pallas import tpu as pltpu


def _isic_kernel(x_ref, wc_ref, bc_ref, wh_ref, bh_ref, o_ref, gap_ref, *,
                 bt, hw_tile, hw, inv_hw, needs_mask):
    """Fused conv-as-matmul + ReLU + streamed GAP + linear head.

    x_ref  : (bt, hw_tile, Kp)   bf16 im2col rows (Kp = 9*Cin padded to 128)
    wc_ref : (Kp, Cmidp)         bf16 conv weights (Cmid padded to 128)
    bc_ref : (1, Cmidp)          f32 conv bias (lane-padded with zeros)
    wh_ref : (Cmidp, NCp)        bf16 head weights (padded rows/cols are zero)
    bh_ref : (1, NCp)            f32 head bias (lane-padded with zeros)
    o_ref  : (bt, NCp)           bf16 logits (dense packed (16,128) store)
    gap_ref: (bt, Cmidp)         f32 GAP accumulator (VMEM scratch)
    """
    h_step = pl.program_id(1)

    @pl.when(h_step == 0)
    def _():
        gap_ref[...] = jnp.zeros_like(gap_ref)

    # One MXU matmul for this HW tile across all bt images.
    kp = x_ref.shape[-1]
    x2 = x_ref[...].reshape(bt * hw_tile, kp)                    # layout-trivial
    acc = jnp.dot(x2, wc_ref[...],
                  preferred_element_type=jnp.float32)            # (bt*hw_tile, Cmidp)
    acc = jnp.maximum(acc + bc_ref[...], 0.0)                    # bias + ReLU (f32 VPU)
    acc3 = acc.reshape(bt, hw_tile, acc.shape[-1])

    if needs_mask:
        # Only traced when HW was padded: keep relu(bias) of padded rows out
        # of the GAP sum.
        row = h_step * hw_tile + jax.lax.broadcasted_iota(
            jnp.int32, (1, hw_tile, 1), 1)
        acc3 = jnp.where(row < hw, acc3, 0.0)

    # Streamed global-average-pool accumulation (sublane reduction on XLU).
    gap_ref[...] += jnp.sum(acc3, axis=1)                        # (bt, Cmidp)

    @pl.when(h_step == pl.num_programs(1) - 1)
    def _():
        pooled = (gap_ref[...] * inv_hw).astype(jnp.bfloat16)    # true 1/HW scale
        logits = jnp.dot(pooled, wh_ref[...],
                         preferred_element_type=jnp.float32)     # (bt, NCp)
        o_ref[...] = (logits + bh_ref[...]).astype(o_ref.dtype)


def isic_forward(x_nchw, params, num_classes, *, bt=16, hw_tile_max=512):
    """x_nchw: (B, Cin, H, W) float32 -> (B, num_classes) bfloat16 logits."""
    wc, bc, wh, bh = params["w_conv"], params["b_conv"], params["w_head"], params["b_head"]
    B, Cin, H, W = x_nchw.shape
    KH, KW, _, Cmid = wc.shape
    HW = H * W
    K = KH * KW * Cin

    pad128 = lambda n: max(128, -(-n // 128) * 128)
    Kp = pad128(K)                 # dense MXU LHS feed
    Cmidp = pad128(Cmid)           # dense VPU/XLU/head-K lanes
    NCp = pad128(num_classes)      # dense output store
    # TODO(synk): on v6e/v7x with a real backbone, tile Cmid/N in multiples of
    #             256 to fill both MXU column halves.

    # Spatial tile (trailing "arbitrary" grid axis). Multiple of 16 so the
    # in-kernel bf16 reshape is layout-trivial.
    hw_tile = min(hw_tile_max, -(-HW // 16) * 16)
    HW_pad = -(-HW // hw_tile) * hw_tile
    needs_mask = HW_pad != HW

    # Batch tile: 16 images -> full packed bf16 output tile; pad batch with
    # zero images (wasted compute only, sliced off at the end).
    B_pad = -(-B // bt) * bt

    # ---- wrapper-side layout plumbing (XLA glue, not the hot path) ----------
    x_nhwc = jnp.transpose(x_nchw, (0, 2, 3, 1)).astype(jnp.bfloat16)
    ph, pw = KH // 2, KW // 2
    x_padded = jnp.pad(x_nhwc, ((0, 0), (ph, ph), (pw, pw), (0, 0)))
    # im2col: tap order (di, dj, cin) matches wc.reshape(K, Cmid) below.
    taps = [x_padded[:, di:di + H, dj:dj + W, :]
            for di in range(KH) for dj in range(KW)]
    patches = jnp.concatenate(taps, axis=-1).reshape(B, HW, K)
    patches = jnp.pad(patches,
                      ((0, B_pad - B), (0, HW_pad - HW), (0, Kp - K)))

    # Weights: bf16 once, zero-padded to dense lane widths.
    wc_mat = jnp.pad(wc.reshape(K, Cmid).astype(jnp.bfloat16),
                     ((0, Kp - K), (0, Cmidp - Cmid)))            # (Kp, Cmidp)
    bc_row = jnp.pad(bc.reshape(1, -1).astype(jnp.float32),
                     ((0, 0), (0, Cmidp - Cmid)))                 # (1, Cmidp)
    wh_p = jnp.pad(wh.astype(jnp.bfloat16),
                   ((0, Cmidp - Cmid), (0, NCp - num_classes)))   # (Cmidp, NCp)
    bh_p = jnp.pad(bh.reshape(1, -1).astype(jnp.float32),
                   ((0, 0), (0, NCp - num_classes)))              # (1, NCp)

    kernel = functools.partial(_isic_kernel, bt=bt, hw_tile=hw_tile, hw=HW,
                               inv_hw=1.0 / HW, needs_mask=needs_mask)

    out = pl.pallas_call(
        kernel,
        out_shape=jax.ShapeDtypeStruct((B_pad, NCp), jnp.bfloat16),
        grid_spec=pltpu.PrefetchScalarGridSpec(
            num_scalar_prefetch=0,
            grid=(B_pad // bt, HW_pad // hw_tile),
            in_specs=[
                pl.BlockSpec((bt, hw_tile, Kp), lambda b, h: (b, h, 0)),  # im2col
                pl.BlockSpec((Kp, Cmidp), lambda b, h: (0, 0)),           # conv W
                pl.BlockSpec((1, Cmidp), lambda b, h: (0, 0)),            # conv b
                pl.BlockSpec((Cmidp, NCp), lambda b, h: (0, 0)),          # head W
                pl.BlockSpec((1, NCp), lambda b, h: (0, 0)),              # head b
            ],
            # Same output block across the HW axis (resident accumulator
            # pattern); written only on the last hw step.
            out_specs=pl.BlockSpec((bt, NCp), lambda b, h: (b, 0)),
            scratch_shapes=[pltpu.VMEM((bt, Cmidp), jnp.float32)],        # GAP acc
        ),
        compiler_params=pltpu.CompilerParams(
            dimension_semantics=("parallel", "arbitrary"),
            vmem_limit_bytes=48 << 20,
        ),
    )(patches, wc_mat, bc_row, wh_p, bh_p)

    return out[:B, :num_classes]


def _reference_forward(x_nchw, params):
    """Plain-JAX f32 reference for a sanity check."""
    wc, bc, wh, bh = params["w_conv"], params["b_conv"], params["w_head"], params["b_head"]
    x = jnp.transpose(x_nchw, (0, 2, 3, 1))                       # NHWC
    y = jax.lax.conv_general_dilated(
        x, wc, window_strides=(1, 1), padding="SAME",
        dimension_numbers=("NHWC", "HWIO", "NHWC"))
    y = jnp.maximum(y + bc.reshape(1, 1, 1, -1), 0.0)
    pooled = jnp.mean(y, axis=(1, 2))                             # (B, Cmid)
    return pooled @ wh + bh.reshape(1, -1)


if __name__ == "__main__":
    B, Cin, H, W = 2, 4, 16, 16
    Cmid, num_classes = 8, 6

    key = jax.random.PRNGKey(0)
    kx, k1, k2, k3, k4 = jax.random.split(key, 5)

    x = jax.random.normal(kx, (B, Cin, H, W), dtype=jnp.float32)
    params = {
        "w_conv": 0.1 * jax.random.normal(k1, (3, 3, Cin, Cmid), dtype=jnp.float32),
        "b_conv": 0.1 * jax.random.normal(k2, (1, Cmid), dtype=jnp.float32),
        "w_head": 0.1 * jax.random.normal(k3, (Cmid, num_classes), dtype=jnp.float32),
        "b_head": 0.1 * jax.random.normal(k4, (1, num_classes), dtype=jnp.float32),
    }

    logits = jax.block_until_ready(isic_forward(x, params, num_classes))
    ref = _reference_forward(x, params)

    assert logits.shape == (B, num_classes)
    assert logits.dtype == jnp.bfloat16
    assert jnp.allclose(logits.astype(jnp.float32), ref, rtol=3e-2, atol=3e-2)
    print("KERNEL_OK")
</pallas_src>

<mosaic_0001>
module attributes {stable_mosaic.version = 11 : i64} {
  func.func @_isic_kernel(%arg0: i32, %arg1: i32, %arg2: memref<16x256x128xbf16, #tpu.memory_space<vmem>>, %arg3: memref<128x128xbf16, #tpu.memory_space<vmem>>, %arg4: memref<1x128xf32, #tpu.memory_space<vmem>>, %arg5: memref<128x128xbf16, #tpu.memory_space<vmem>>, %arg6: memref<1x128xf32, #tpu.memory_space<vmem>>, %arg7: memref<16x128xbf16, #tpu.memory_space<vmem>>, %arg8: memref<16x128xf32, #tpu.memory_space<vmem>>) attributes {dimension_semantics = [#tpu.dimension_semantics<parallel>, #tpu.dimension_semantics<arbitrary>], iteration_bounds = array<i64: 1, 1>, scalar_prefetch = 0 : i64, scratch_operands = 1 : i64, tpu.core_type = #tpu.core_type<tc>, window_params = [{transform_indices = @transform_0, window_bounds = array<i64: 16, 256, 128>}, {pipeline_mode = #tpu.pipeline_mode<synchronous>, transform_indices = @transform_1, window_bounds = array<i64: 128, 128>}, {pipeline_mode = #tpu.pipeline_mode<synchronous>, transform_indices = @transform_2, window_bounds = array<i64: 1, 128>}, {pipeline_mode = #tpu.pipeline_mode<synchronous>, transform_indices = @transform_3, window_bounds = array<i64: 128, 128>}, {pipeline_mode = #tpu.pipeline_mode<synchronous>, transform_indices = @transform_4, window_bounds = array<i64: 1, 128>}, {transform_indices = @transform_5, window_bounds = array<i64: 16, 128>}]} {
    %c0_i32 = arith.constant 0 : i32
    %0 = arith.cmpi eq, %arg1, %c0_i32 : i32
    %1 = arith.extui %0 : i1 to i32
    %c0_i32_0 = arith.constant 0 : i32
    %2 = arith.cmpi ne, %1, %c0_i32_0 : i32
    scf.if %2 {
      %cst_15 = arith.constant 0.000000e+00 : f32
      %20 = vector.broadcast %cst_15 : f32 to vector<16x128xf32>
      %c0_16 = arith.constant 0 : index
      %c0_17 = arith.constant 0 : index
      %21 = vector.load %arg8[%c0_16, %c0_17] : memref<16x128xf32, #tpu.memory_space<vmem>>, vector<16x128xf32>
      tpu.vector_store %arg8[%c0_16, %c0_17], %20 {strides = array<i32>} : memref<16x128xf32, #tpu.memory_space<vmem>>, vector<16x128xf32>,
    } else {
    }
    %c0 = arith.constant 0 : index
    %c0_1 = arith.constant 0 : index
    %c0_2 = arith.constant 0 : index
    %3 = vector.load %arg2[%c0, %c0_1, %c0_2] : memref<16x256x128xbf16, #tpu.memory_space<vmem>>, vector<16x256x128xbf16>
    %4 = vector.shape_cast %3 : vector<16x256x128xbf16> to vector<4096x128xbf16>
    %c0_3 = arith.constant 0 : index
    %c0_4 = arith.constant 0 : index
    %5 = vector.load %arg3[%c0_3, %c0_4] : memref<128x128xbf16, #tpu.memory_space<vmem>>, vector<128x128xbf16>
    %cst = arith.constant dense<0.000000e+00> : vector<4096x128xf32>
    %6 = tpu.matmul %4, %5, %cst {dimension_numbers = #tpu.dot_dimension_numbers<[1], [0], [0], [1], [0, 0, 1, 1], [], []>} : vector<4096x128xbf16>, vector<128x128xbf16>, vector<4096x128xf32> -> vector<4096x128xf32>
    %c0_5 = arith.constant 0 : index
    %c0_6 = arith.constant 0 : index
    %7 = vector.load %arg4[%c0_5, %c0_6] : memref<1x128xf32, #tpu.memory_space<vmem>>, vector<1x128xf32>
    %8 = vector.broadcast %7 : vector<1x128xf32> to vector<4096x128xf32>
    %9 = arith.addf %6, %8 : vector<4096x128xf32>
    %cst_7 = arith.constant 0.000000e+00 : f32
    %10 = vector.broadcast %cst_7 : f32 to vector<4096x128xf32>
    %11 = arith.maximumf %9, %10 : vector<4096x128xf32>
    %12 = vector.shape_cast %11 : vector<4096x128xf32> to vector<16x256x128xf32>
    %c0_8 = arith.constant 0 : index
    %c0_9 = arith.constant 0 : index
    %13 = vector.load %arg8[%c0_8, %c0_9] : memref<16x128xf32, #tpu.memory_space<vmem>>, vector<16x128xf32>
    %cst_10 = arith.constant dense<0.000000e+00> : vector<16x128xf32>
    %14 = vector.multi_reduction <add>, %12, %cst_10 [1] : vector<16x256x128xf32> to vector<16x128xf32>
    %15 = arith.addf %13, %14 : vector<16x128xf32>
    %c0_11 = arith.constant 0 : index
    %c0_12 = arith.constant 0 : index
    %16 = vector.load %arg8[%c0_11, %c0_12] : memref<16x128xf32, #tpu.memory_space<vmem>>, vector<16x128xf32>
    tpu.vector_store %arg8[%c0_11, %c0_12], %15 {strides = array<i32>} : memref<16x128xf32, #tpu.memory_space<vmem>>, vector<16x128xf32>,
    %c0_i32_13 = arith.constant 0 : i32
    %17 = arith.cmpi eq, %arg1, %c0_i32_13 : i32
    %18 = arith.extui %17 : i1 to i32
    %c0_i32_14 = arith.constant 0 : i32
    %19 = arith.cmpi ne, %18, %c0_i32_14 : i32
    scf.if %19 {
      %c0_15 = arith.constant 0 : index
      %c0_16 = arith.constant 0 : index
      %20 = vector.load %arg8[%c0_15, %c0_16] : memref<16x128xf32, #tpu.memory_space<vmem>>, vector<16x128xf32>
      %cst_17 = arith.constant 3.906250e-03 : f32
      %21 = vector.broadcast %cst_17 : f32 to vector<16x128xf32>
      %22 = arith.mulf %20, %21 : vector<16x128xf32>
      %23 = arith.truncf %22 : vector<16x128xf32> to vector<16x128xbf16>
      %c0_18 = arith.constant 0 : index
      %c0_19 = arith.constant 0 : index
      %24 = vector.load %arg5[%c0_18, %c0_19] : memref<128x128xbf16, #tpu.memory_space<vmem>>, vector<128x128xbf16>
      %cst_20 = arith.constant dense<0.000000e+00> : vector<16x128xf32>
      %25 = tpu.matmul %23, %24, %cst_20 {dimension_numbers = #tpu.dot_dimension_numbers<[1], [0], [0], [1], [0, 0, 1, 1], [], []>} : vector<16x128xbf16>, vector<128x128xbf16>, vector<16x128xf32> -> vector<16x128xf32>
      %c0_21 = arith.constant 0 : index
      %c0_22 = arith.constant 0 : index
      %26 = vector.load %arg6[%c0_21, %c0_22] : memref<1x128xf32, #tpu.memory_space<vmem>>, vector<1x128xf32>
      %27 = vector.broadcast %26 : vector<1x128xf32> to vector<16x128xf32>
      %28 = arith.addf %25, %27 : vector<16x128xf32>
      %29 = arith.truncf %28 : vector<16x128xf32> to vector<16x128xbf16>
      %c0_23 = arith.constant 0 : index
      %c0_24 = arith.constant 0 : index
      %30 = vector.load %arg7[%c0_23, %c0_24] : memref<16x128xbf16, #tpu.memory_space<vmem>>, vector<16x128xbf16>
      tpu.vector_store %arg7[%c0_23, %c0_24], %29 {strides = array<i32>} : memref<16x128xbf16, #tpu.memory_space<vmem>>, vector<16x128xbf16>,
    } else {
    }
    return
  }
  func.func @transform_0(%arg0: i32, %arg1: i32) -> (i32, i32, i32) {
    %c0_i32 = arith.constant 0 : i32
    %c0_i32_0 = arith.constant 0 : i32
    return %arg0, %arg1, %c0_i32 : i32, i32, i32
  }
  func.func @transform_1(%arg0: i32, %arg1: i32) -> (i32, i32) {
    %c0_i32 = arith.constant 0 : i32
    %c0_i32_0 = arith.constant 0 : i32
    %c0_i32_1 = arith.constant 0 : i32
    return %c0_i32, %c0_i32_0 : i32, i32
  }
  func.func @transform_2(%arg0: i32, %arg1: i32) -> (i32, i32) {
    %c0_i32 = arith.constant 0 : i32
    %c0_i32_0 = arith.constant 0 : i32
    %c0_i32_1 = arith.constant 0 : i32
    return %c0_i32, %c0_i32_0 : i32, i32
  }
  func.func @transform_3(%arg0: i32, %arg1: i32) -> (i32, i32) {
    %c0_i32 = arith.constant 0 : i32
    %c0_i32_0 = arith.constant 0 : i32
    %c0_i32_1 = arith.constant 0 : i32
    return %c0_i32, %c0_i32_0 : i32, i32
  }
  func.func @transform_4(%arg0: i32, %arg1: i32) -> (i32, i32) {
    %c0_i32 = arith.constant 0 : i32
    %c0_i32_0 = arith.constant 0 : i32
    %c0_i32_1 = arith.constant 0 : i32
    return %c0_i32, %c0_i32_0 : i32, i32
  }
  func.func @transform_5(%arg0: i32, %arg1: i32) -> (i32, i32) {
    %c0_i32 = arith.constant 0 : i32
    %c0_i32_0 = arith.constant 0 : i32
    return %arg0, %c0_i32 : i32, i32
  }
}

</mosaic_0001>

<llo_original>
// kernel: tpu_custom_call.1
$region0: #{tpu_custom_call.1}
  #allocation0 [shape = 'u32[]', space=smem, size = 0x4, offset = 0x4, fixed_abs, tag = 'smem constant byte address 0x4 - core index']
  #allocation1 [shape = 'u32[144,128]{1,0:T(1,128)}', space=vmem, size = 0x12000, scoped, tag = 'internal scratch']
  #allocation2 [shape = 'f32[16,128]{1,0:T(8,128)}', space=vmem, size = 0x2000, scoped, tag = 'scratch operand']
  %s0 = inlined_call_operand.hbm [shape: bf16[16,256,128], index: 0, kind: input, shape index: {}]
  %s1 = inlined_call_operand.hbm [shape: bf16[128,128], index: 1, kind: input, shape index: {}]
  %s2 = inlined_call_operand.vmem [shape: f32[1,128], index: 2, kind: input, shape index: {}]
  %s3 = inlined_call_operand.hbm [shape: bf16[128,128], index: 3, kind: input, shape index: {}]
  %s4 = inlined_call_operand.vmem [shape: f32[1,128], index: 4, kind: input, shape index: {}]
  %s5 = inlined_call_operand.hbm [shape: bf16[16,128], index: 5, kind: output, shape index: {}]
  %s6 = sld [smem:[#allocation0]]
  $region50: #{tpu_custom_call.1} parent=0
    _
  %s8 = ssub.s32 1, %s6
  %s9 = scalar_select 0, %s8, %s6
  $region1: #{tpu_custom_call.1} parent=0
    #allocation3 [shape = 'u8[1048576]{0}', space=vmem, size = 0x100000, scoped, tag = 'input window, operand 0, single buffered']
    #allocation4 [shape = 's32[1]{0}', space=sflag, size = 0x4, scoped, tag = 'scoped memory for tpu_custom_call.1']
    #allocation5 [shape = 's32[1]{0}', space=sflag, size = 0x4, scoped, tag = 'scoped memory for tpu_custom_call.1']
    #allocation6 [shape = 'u8[32768]{0}', space=vmem, size = 0x8000, scoped, tag = 'input window, operand 1, single buffered']
    #allocation7 [shape = 's32[1]{0}', space=sflag, size = 0x4, scoped, tag = 'scoped memory for tpu_custom_call.1']
    #allocation8 [shape = 'u8[32768]{0}', space=vmem, size = 0x8000, scoped, tag = 'input window, operand 3, single buffered']
    #allocation9 [shape = 'u8[4096]{0}', space=vmem, size = 0x1000, scoped, tag = 'output window, operand 0, single buffered']
    %10 = vsyncpa [#allocation4], 0
    %11 = vsyncpa [#allocation7], 0
    %12 = vsyncpa [#allocation5], 0
    // Predicated region
    $region2: #{tpu_custom_call.1} parent=1 // pred_check
      _
    $region3: #{tpu_custom_call.1} parent=1 // pred_check_branch
      %14 = sbr.rel (0) target = $region5
    $region4: #{tpu_custom_call.1} parent=1 // pred_region
      %s16 = ssub.s32 32768, 32768
      %17 = vsyncadd [#allocation4], %s16
      %s18 = sshll.u32 [#allocation3], 4
      %s19 = int_to_ptr.vmem [resolvable:$true] %s18
      %24 = dma.hbm_to_vmem [thread:$0]  %s0, 32768, %s19, [#allocation4], 64, 64, 4
    $region5: #{tpu_custom_call.1} parent=1 // pred_fallthru
      _
    // Predicated region
    $region6: #{tpu_custom_call.1} parent=1 // pred_check
      _
    $region7: #{tpu_custom_call.1} parent=1 // pred_check_branch
      %26 = sbr.rel (0) target = $region9
    $region8: #{tpu_custom_call.1} parent=1 // pred_region
      %s28 = ssub.s32 1024, 1024
      %29 = vsyncadd [#allocation7], %s28
      %s30 = sshll.u32 [#allocation6], 4
      %s31 = int_to_ptr.vmem [resolvable:$true] %s30
      %36 = dma.hbm_to_vmem [thread:$0]  %s1, 1024, %s31, [#allocation7], 64, 64, 4
    $region9: #{tpu_custom_call.1} parent=1 // pred_fallthru
      _
    // Predicated region
    $region10: #{tpu_custom_call.1} parent=1 // pred_check
      _
    $region11: #{tpu_custom_call.1} parent=1 // pred_check_branch
      %38 = sbr.rel (0) target = $region13
    $region12: #{tpu_custom_call.1} parent=1 // pred_region
      _
    $region13: #{tpu_custom_call.1} parent=1 // pred_fallthru
      _
    // Predicated region
    $region14: #{tpu_custom_call.1} parent=1 // pred_check
      _
    $region15: #{tpu_custom_call.1} parent=1 // pred_check_branch
      %40 = sbr.rel (0) target = $region17
    $region16: #{tpu_custom_call.1} parent=1 // pred_region
      %s42 = ssub.s32 1024, 1024
      %43 = vsyncadd [#allocation7], %s42
      %s44 = sshll.u32 [#allocation8], 4
      %s45 = int_to_ptr.vmem [resolvable:$true] %s44
      %50 = dma.hbm_to_vmem [thread:$0]  %s3, 1024, %s45, [#allocation7], 64, 64, 4
    $region17: #{tpu_custom_call.1} parent=1 // pred_fallthru
      _
    // Predicated region
    $region18: #{tpu_custom_call.1} parent=1 // pred_check
      _
    $region19: #{tpu_custom_call.1} parent=1 // pred_check_branch
      %52 = sbr.rel (0) target = $region21
    $region20: #{tpu_custom_call.1} parent=1 // pred_region
      _
    $region21: #{tpu_custom_call.1} parent=1 // pred_fallthru
      _
    // Predicated region
    $region22: #{tpu_custom_call.1} parent=1 // pred_check
      _
    $region23: #{tpu_custom_call.1} parent=1 // pred_check_branch
      %54 = sbr.rel (0) target = $region25
    $region24: #{tpu_custom_call.1} parent=1 // pred_region
      %55 = dma.done [#allocation4], 32768
    $region25: #{tpu_custom_call.1} parent=1 // pred_fallthru
      _
    // Predicated region
    $region26: #{tpu_custom_call.1} parent=1 // pred_check
      _
    $region27: #{tpu_custom_call.1} parent=1 // pred_check_branch
      %57 = sbr.rel (0) target = $region29
    $region28: #{tpu_custom_call.1} parent=1 // pred_region
      %58 = dma.done [#allocation7], 1024
    $region29: #{tpu_custom_call.1} parent=1 // pred_fallthru
      _
    // Predicated region
    $region30: #{tpu_custom_call.1} parent=1 // pred_check
      _
    $region31: #{tpu_custom_call.1} parent=1 // pred_check_branch
      %60 = sbr.rel (0) target = $region33
    $region32: #{tpu_custom_call.1} parent=1 // pred_region
      %61 = dma.done [#allocation7], 1024
    $region33: #{tpu_custom_call.1} parent=1 // pred_fallthru
      _
    %p63 = scmp.eq.s32.totalorder 0, 0
    // Predicated region
    $region34: #{tpu_custom_call.1} parent=1 // pred_check
      %p64 = pneg %p63
    $region35: #{tpu_custom_call.1} parent=1 // pred_check_branch
      %66 = sbr.rel (%p64) target = $region37
    $region36: #{tpu_custom_call.1} parent=1 // pred_region
      %67 = vst [vmem:[#allocation2] sm:$0xff] 0.0
      %68 = vst [vmem:[#allocation2 + $0x8] sm:$0xff] 0.0
    $region37: #{tpu_custom_call.1} parent=1 // pred_fallthru
      _
    %v69 = vld [vmem:[#allocation3] sm:$0xf]
    %v70 = vld [vmem:[#allocation3 + $0x4] sm:$0xf]
    %v71 = vld [vmem:[#allocation3 + $0x8] sm:$0xf]
    %v72 = vld [vmem:[#allocation3 + $0xc] sm:$0xf]
    %v73 = vld [vmem:[#allocation3 + $0x10] sm:$0xf]
    %v74 = vld [vmem:[#allocation3 + $0x14] sm:$0xf]
    %v75 = vld [vmem:[#allocation3 + $0x18] sm:$0xf]
    %v76 = vld [vmem:[#allocation3 + $0x1c] sm:$0xf]
    %v77 = vld [vmem:[#allocation3 + $0x20] sm:$0xf]
    %v78 = vld [vmem:[#allocation3 + $0x24] sm:$0xf]
    %v79 = vld [vmem:[#allocation3 + $0x28] sm:$0xf]
    %v80 = vld [vmem:[#allocation3 + $0x2c] sm:$0xf]
    %v81 = vld [vmem:[#allocation3 + $0x30] sm:$0xf]
    %v82 = vld [vmem:[#allocation3 + $0x34] sm:$0xf]
    %v83 = vld [vmem:[#allocation3 + $0x38] sm:$0xf]
    %v84 = vld [vmem:[#allocation3 + $0x3c] sm:$0xf]
    %v85 = vld [vmem:[#allocation3 + $0x40] sm:$0xf]
    %v86 = vld [vmem:[#allocation3 + $0x44] sm:$0xf]
    %v87 = vld [vmem:[#allocation3 + $0x48] sm:$0xf]
    %v88 = vld [vmem:[#allocation3 + $0x4c] sm:$0xf]
    %v89 = vld [vmem:[#allocation3 + $0x50] sm:$0xf]
    %v90 = vld [vmem:[#allocation3 + $0x54] sm:$0xf]
    %v91 = vld [vmem:[#allocation3 + $0x58] sm:$0xf]
    %v92 = vld [vmem:[#allocation3 + $0x5c] sm:$0xf]
    %v93 = vld [vmem:[#allocation3 + $0x60] sm:$0xf]
    %v94 = vld [vmem:[#allocation3 + $0x64] sm:$0xf]
    %v95 = vld [vmem:[#allocation3 + $0x68] sm:$0xf]
    %v96 = vld [vmem:[#allocation3 + $0x6c] sm:$0xf]
    %v97 = vld [vmem:[#allocation3 + $0x70] sm:$0xf]
    %v98 = vld [vmem:[#allocation3 + $0x74] sm:$0xf]
    %v99 = vld [vmem:[#allocation3 + $0x78] sm:$0xf]
    %v100 = vld [vmem:[#allocation3 + $0x7c] sm:$0xf]
    %v101 = vld [vmem:[#allocation3 + $0x80] sm:$0xf]
    %v102 = vld [vmem:[#allocation3 + $0x84] sm:$0xf]
    %v103 = vld [vmem:[#allocation3 + $0x88] sm:$0xf]
    %v104 = vld [vmem:[#allocation3 + $0x8c] sm:$0xf]
    %v105 = vld [vmem:[#allocation3 + $0x90] sm:$0xf]
    %v106 = vld [vmem:[#allocation3 + $0x94] sm:$0xf]
    %v107 = vld [vmem:[#allocation3 + $0x98] sm:$0xf]
    %v108 = vld [vmem:[#allocation3 + $0x9c] sm:$0xf]
    %v109 = vld [vmem:[#allocation3 + $0xa0] sm:$0xf]
    %v110 = vld [vmem:[#allocation3 + $0xa4] sm:$0xf]
    %v111 = vld [vmem:[#allocation3 + $0xa8] sm:$0xf]
    %v112 = vld [vmem:[#allocation3 + $0xac] sm:$0xf]
    %v113 = vld [vmem:[#allocation3 + $0xb0] sm:$0xf]
    %v114 = vld [vmem:[#allocation3 + $0xb4] sm:$0xf]
    %v115 = vld [vmem:[#allocation3 + $0xb8] sm:$0xf]
    %v116 = vld [vmem:[#allocation3 + $0xbc] sm:$0xf]
    %v117 = vld [vmem:[#allocation3 + $0xc0] sm:$0xf]
    %v118 = vld [vmem:[#allocation3 + $0xc4] sm:$0xf]
    %v119 = vld [vmem:[#allocation3 + $0xc8] sm:$0xf]
    %v120 = vld [vmem:[#allocation3 + $0xcc] sm:$0xf]
    %v121 = vld [vmem:[#allocation3 + $0xd0] sm:$0xf]
    %v122 = vld [vmem:[#allocation3 + $0xd4] sm:$0xf]
    %v123 = vld [vmem:[#allocation3 + $0xd8] sm:$0xf]
    %v124 = vld [vmem:[#allocation3 + $0xdc] sm:$0xf]
    %v125 = vld [vmem:[#allocation3 + $0xe0] sm:$0xf]
    %v126 = vld [vmem:[#allocation3 + $0xe4] sm:$0xf]
    %v127 = vld [vmem:[#allocation3 + $0xe8] sm:$0xf]
    %v128 = vld [vmem:[#allocation3 + $0xec] sm:$0xf]
    %v129 = vld [vmem:[#allocation3 + $0xf0] sm:$0xf]
    %v130 = vld [vmem:[#allocation3 + $0xf4] sm:$0xf]
    %v131 = vld [vmem:[#allocation3 + $0xf8] sm:$0xf]
    %v132 = vld [vmem:[#allocation3 + $0xfc] sm:$0xf]
    %v133 = vld [vmem:[#allocation3 + $0x100] sm:$0xf]
    %v134 = vld [vmem:[#allocation3 + $0x104] sm:$0xf]
    %v135 = vld [vmem:[#allocation3 + $0x108] sm:$0xf]
    %v136 = vld [vmem:[#allocation3 + $0x10c] sm:$0xf]
    %v137 = vld [vmem:[#allocation3 + $0x110] sm:$0xf]
    %v138 = vld [vmem:[#allocation3 + $0x114] sm:$0xf]
    %v139 = vld [vmem:[#allocation3 + $0x118] sm:$0xf]
    %v140 = vld [vmem:[#allocation3 + $0x11c] sm:$0xf]
    %v141 = vld [vmem:[#allocation3 + $0x120] sm:$0xf]
    %v142 = vld [vmem:[#allocation3 + $0x124] sm:$0xf]
    %v143 = vld [vmem:[#allocation3 + $0x128] sm:$0xf]
    %v144 = vld [vmem:[#allocation3 + $0x12c] sm:$0xf]
    %v145 = vld [vmem:[#allocation3 + $0x130] sm:$0xf]
    %v146 = vld [vmem:[#allocation3 + $0x134] sm:$0xf]
    %v147 = vld [vmem:[#allocation3 + $0x138] sm:$0xf]
    %v148 = vld [vmem:[#allocation3 + $0x13c] sm:$0xf]
    %v149 = vld [vmem:[#allocation3 + $0x140] sm:$0xf]
    %v150 = vld [vmem:[#allocation3 + $0x144] sm:$0xf]
    %v151 = vld [vmem:[#allocation3 + $0x148] sm:$0xf]
    %v152 = vld [vmem:[#allocation3 + $0x14c] sm:$0xf]
    %v153 = vld [vmem:[#allocation3 + $0x150] sm:$0xf]
    %v154 = vld [vmem:[#allocation3 + $0x154] sm:$0xf]
    %v155 = vld [vmem:[#allocation3 + $0x158] sm:$0xf]
    %v156 = vld [vmem:[#allocation3 + $0x15c] sm:$0xf]
    %v157 = vld [vmem:[#allocation3 + $0x160] sm:$0xf]
    %v158 = vld [vmem:[#allocation3 + $0x164] sm:$0xf]
    %v159 = vld [vmem:[#allocation3 + $0x168] sm:$0xf]
    %v160 = vld [vmem:[#allocation3 + $0x16c] sm:$0xf]
    %v161 = vld [vmem:[#allocation3 + $0x170] sm:$0xf]
    %v162 = vld [vmem:[#allocation3 + $0x174] sm:$0xf]
    %v163 = vld [vmem:[#allocation3 + $0x178] sm:$0xf]
    %v164 = vld [vmem:[#allocation3 + $0x17c] sm:$0xf]
    %v165 = vld [vmem:[#allocation3 + $0x180] sm:$0xf]
    %v166 = vld [vmem:[#allocation3 + $0x184] sm:$0xf]
    %v167 = vld [vmem:[#allocation3 + $0x188] sm:$0xf]
    %v168 = vld [vmem:[#allocation3 + $0x18c] sm:$0xf]
    %v169 = vld [vmem:[#allocation3 + $0x190] sm:$0xf]
    %v170 = vld [vmem:[#allocation3 + $0x194] sm:$0xf]
    %v171 = vld [vmem:[#allocation3 + $0x198] sm:$0xf]
    %v172 = vld [vmem:[#allocation3 + $0x19c] sm:$0xf]
    %v173 = vld [vmem:[#allocation3 + $0x1a0] sm:$0xf]
    %v174 = vld [vmem:[#allocation3 + $0x1a4] sm:$0xf]
    %v175 = vld [vmem:[#allocation3 + $0x1a8] sm:$0xf]
    %v176 = vld [vmem:[#allocation3 + $0x1ac] sm:$0xf]
    %v177 = vld [vmem:[#allocation3 + $0x1b0] sm:$0xf]
    %v178 = vld [vmem:[#allocation3 + $0x1b4] sm:$0xf]
    %v179 = vld [vmem:[#allocation3 + $0x1b8] sm:$0xf]
    %v180 = vld [vmem:[#allocation3 + $0x1bc] sm:$0xf]
    %v181 = vld [vmem:[#allocation3 + $0x1c0] sm:$0xf]
    %v182 = vld [vmem:[#allocation3 + $0x1c4] sm:$0xf]
    %v183 = vld [vmem:[#allocation3 + $0x1c8] sm:$0xf]
    %v184 = vld [vmem:[#allocation3 + $0x1cc] sm:$0xf]
    %v185 = vld [vmem:[#allocation3 + $0x1d0] sm:$0xf]
    %v186 = vld [vmem:[#allocation3 + $0x1d4] sm:$0xf]
    %v187 = vld [vmem:[#allocation3 + $0x1d8] sm:$0xf]
    %v188 = vld [vmem:[#allocation3 + $0x1dc] sm:$0xf]
    %v189 = vld [vmem:[#allocation3 + $0x1e0] sm:$0xf]
    %v190 = vld [vmem:[#allocation3 + $0x1e4] sm:$0xf]
    %v191 = vld [vmem:[#allocation3 + $0x1e8] sm:$0xf]
    %v192 = vld [vmem:[#allocation3 + $0x1ec] sm:$0xf]
    %v193 = vld [vmem:[#allocation3 + $0x1f0] sm:$0xf]
    %v194 = vld [vmem:[#allocation3 + $0x1f4] sm:$0xf]
    %v195 = vld [vmem:[#allocation3 + $0x1f8] sm:$0xf]
    %v196 = vld [vmem:[#allocation3 + $0x1fc] sm:$0xf]
    %v197 = vld [vmem:[#allocation3 + $0x200] sm:$0xf]
    %v198 = vld [vmem:[#allocation3 + $0x204] sm:$0xf]
    %v199 = vld [vmem:[#allocation3 + $0x208] sm:$0xf]
    %v200 = vld [vmem:[#allocation3 + $0x20c] sm:$0xf]
    %v201 = vld [vmem:[#allocation3 + $0x210] sm:$0xf]
    %v202 = vld [vmem:[#allocation3 + $0x214] sm:$0xf]
    %v203 = vld [vmem:[#allocation3 + $0x218] sm:$0xf]
    %v204 = vld [vmem:[#allocation3 + $0x21c] sm:$0xf]
    %v205 = vld [vmem:[#allocation3 + $0x220] sm:$0xf]
    %v206 = vld [vmem:[#allocation3 + $0x224] sm:$0xf]
    %v207 = vld [vmem:[#allocation3 + $0x228] sm:$0xf]
    %v208 = vld [vmem:[#allocation3 + $0x22c] sm:$0xf]
    %v209 = vld [vmem:[#allocation3 + $0x230] sm:$0xf]
    %v210 = vld [vmem:[#allocation3 + $0x234] sm:$0xf]
    %v211 = vld [vmem:[#allocation3 + $0x238] sm:$0xf]
    %v212 = vld [vmem:[#allocation3 + $0x23c] sm:$0xf]
    %v213 = vld [vmem:[#allocation3 + $0x240] sm:$0xf]
    %v214 = vld [vmem:[#allocation3 + $0x244] sm:$0xf]
    %v215 = vld [vmem:[#allocation3 + $0x248] sm:$0xf]
    %v216 = vld [vmem:[#allocation3 + $0x24c] sm:$0xf]
    %v217 = vld [vmem:[#allocation3 + $0x250] sm:$0xf]
    %v218 = vld [vmem:[#allocation3 + $0x254] sm:$0xf]
    %v219 = vld [vmem:[#allocation3 + $0x258] sm:$0xf]
    %v220 = vld [vmem:[#allocation3 + $0x25c] sm:$0xf]
    %v221 = vld [vmem:[#allocation3 + $0x260] sm:$0xf]
    %v222 = vld [vmem:[#allocation3 + $0x264] sm:$0xf]
    %v223 = vld [vmem:[#allocation3 + $0x268] sm:$0xf]
    %v224 = vld [vmem:[#allocation3 + $0x26c] sm:$0xf]
    %v225 = vld [vmem:[#allocation3 + $0x270] sm:$0xf]
    %v226 = vld [vmem:[#allocation3 + $0x274] sm:$0xf]
    %v227 = vld [vmem:[#allocation3 + $0x278] sm:$0xf]
    %v228 = vld [vmem:[#allocation3 + $0x27c] sm:$0xf]
    %v229 = vld [vmem:[#allocation3 + $0x280] sm:$0xf]
    %v230 = vld [vmem:[#allocation3 + $0x284] sm:$0xf]
    %v231 = vld [vmem:[#allocation3 + $0x288] sm:$0xf]
    %v232 = vld [vmem:[#allocation3 + $0x28c] sm:$0xf]
    %v233 = vld [vmem:[#allocation3 + $0x290] sm:$0xf]
    %v234 = vld [vmem:[#allocation3 + $0x294] sm:$0xf]
    %v235 = vld [vmem:[#allocation3 + $0x298] sm:$0xf]
    %v236 = vld [vmem:[#allocation3 + $0x29c] sm:$0xf]
    %v237 = vld [vmem:[#allocation3 + $0x2a0] sm:$0xf]
    %v238 = vld [vmem:[#allocation3 + $0x2a4] sm:$0xf]
    %v239 = vld [vmem:[#allocation3 + $0x2a8] sm:$0xf]
    %v240 = vld [vmem:[#allocation3 + $0x2ac] sm:$0xf]
    %v241 = vld [vmem:[#allocation3 + $0x2b0] sm:$0xf]
    %v242 = vld [vmem:[#allocation3 + $0x2b4] sm:$0xf]
    %v243 = vld [vmem:[#allocation3 + $0x2b8] sm:$0xf]
    %v244 = vld [vmem:[#allocation3 + $0x2bc] sm:$0xf]
    %v245 = vld [vmem:[#allocation3 + $0x2c0] sm:$0xf]
    %v246 = vld [vmem:[#allocation3 + $0x2c4] sm:$0xf]
    %v247 = vld [vmem:[#allocation3 + $0x2c8] sm:$0xf]
    %v248 = vld [vmem:[#allocation3 + $0x2cc] sm:$0xf]
    %v249 = vld [vmem:[#allocation3 + $0x2d0] sm:$0xf]
    %v250 = vld [vmem:[#allocation3 + $0x2d4] sm:$0xf]
    %v251 = vld [vmem:[#allocation3 + $0x2d8] sm:$0xf]
    %v252 = vld [vmem:[#allocation3 + $0x2dc] sm:$0xf]
    %v253 = vld [vmem:[#allocation3 + $0x2e0] sm:$0xf]
    %v254 = vld [vmem:[#allocation3 + $0x2e4] sm:$0xf]
    %v255 = vld [vmem:[#allocation3 + $0x2e8] sm:$0xf]
    %v256 = vld [vmem:[#allocation3 + $0x2ec] sm:$0xf]
    %v257 = vld [vmem:[#allocation3 + $0x2f0] sm:$0xf]
    %v258 = vld [vmem:[#allocation3 + $0x2f4] sm:$0xf]
    %v259 = vld [vmem:[#allocation3 + $0x2f8] sm:$0xf]
    %v260 = vld [vmem:[#allocation3 + $0x2fc] sm:$0xf]
    %v261 = vld [vmem:[#allocation3 + $0x300] sm:$0xf]
    %v262 = vld [vmem:[#allocation3 + $0x304] sm:$0xf]
    %v263 = vld [vmem:[#allocation3 + $0x308] sm:$0xf]
    %v264 = vld [vmem:[#allocation3 + $0x30c] sm:$0xf]
    %v265 = vld [vmem:[#allocation3 + $0x310] sm:$0xf]
    %v266 = vld [vmem:[#allocation3 + $0x314] sm:$0xf]
    %v267 = vld [vmem:[#allocation3 + $0x318] sm:$0xf]
    %v268 = vld [vmem:[#allocation3 + $0x31c] sm:$0xf]
    %v269 = vld [vmem:[#allocation3 + $0x320] sm:$0xf]
    %v270 = vld [vmem:[#allocation3 + $0x324] sm:$0xf]
    %v271 = vld [vmem:[#allocation3 + $0x328] sm:$0xf]
    %v272 = vld [vmem:[#allocation3 + $0x32c] sm:$0xf]
    %v273 = vld [vmem:[#allocation3 + $0x330] sm:$0xf]
    %v274 = vld [vmem:[#allocation3 + $0x334] sm:$0xf]
    %v275 = vld [vmem:[#allocation3 + $0x338] sm:$0xf]
    %v276 = vld [vmem:[#allocation3 + $0x33c] sm:$0xf]
    %v277 = vld [vmem:[#allocation3 + $0x340] sm:$0xf]
    %v278 = vld [vmem:[#allocation3 + $0x344] sm:$0xf]
    %v279 = vld [vmem:[#allocation3 + $0x348] sm:$0xf]
    %v280 = vld [vmem:[#allocation3 + $0x34c] sm:$0xf]
    %v281 = vld [vmem:[#allocation3 + $0x350] sm:$0xf]
    %v282 = vld [vmem:[#allocation3 + $0x354] sm:$0xf]
    %v283 = vld [vmem:[#allocation3 + $0x358] sm:$0xf]
    %v284 = vld [vmem:[#allocation3 + $0x35c] sm:$0xf]
    %v285 = vld [vmem:[#allocation3 + $0x360] sm:$0xf]
    %v286 = vld [vmem:[#allocation3 + $0x364] sm:$0xf]
    %v287 = vld [vmem:[#allocation3 + $0x368] sm:$0xf]
    %v288 = vld [vmem:[#allocation3 + $0x36c] sm:$0xf]
    %v289 = vld [vmem:[#allocation3 + $0x370] sm:$0xf]
    %v290 = vld [vmem:[#allocation3 + $0x374] sm:$0xf]
    %v291 = vld [vmem:[#allocation3 + $0x378] sm:$0xf]
    %v292 = vld [vmem:[#allocation3 + $0x37c] sm:$0xf]
    %v293 = vld [vmem:[#allocation3 + $0x380] sm:$0xf]
    %v294 = vld [vmem:[#allocation3 + $0x384] sm:$0xf]
    %v295 = vld [vmem:[#allocation3 + $0x388] sm:$0xf]
    %v296 = vld [vmem:[#allocation3 + $0x38c] sm:$0xf]
    %v297 = vld [vmem:[#allocation3 + $0x390] sm:$0xf]
    %v298 = vld [vmem:[#allocation3 + $0x394] sm:$0xf]
    %v299 = vld [vmem:[#allocation3 + $0x398] sm:$0xf]
    %v300 = vld [vmem:[#allocation3 + $0x39c] sm:$0xf]
    %v301 = vld [vmem:[#allocation3 + $0x3a0] sm:$0xf]
    %v302 = vld [vmem:[#allocation3 + $0x3a4] sm:$0xf]
    %v303 = vld [vmem:[#allocation3 + $0x3a8] sm:$0xf]
    %v304 = vld [vmem:[#allocation3 + $0x3ac] sm:$0xf]
    %v305 = vld [vmem:[#allocation3 + $0x3b0] sm:$0xf]
    %v306 = vld [vmem:[#allocation3 + $0x3b4] sm:$0xf]
    %v307 = vld [vmem:[#allocation3 + $0x3b8] sm:$0xf]
    %v308 = vld [vmem:[#allocation3 + $0x3bc] sm:$0xf]
    %v309 = vld [vmem:[#allocation3 + $0x3c0] sm:$0xf]
    %v310 = vld [vmem:[#allocation3 + $0x3c4] sm:$0xf]
    %v311 = vld [vmem:[#allocation3 + $0x3c8] sm:$0xf]
    %v312 = vld [vmem:[#allocation3 + $0x3cc] sm:$0xf]
    %v313 = vld [vmem:[#allocation3 + $0x3d0] sm:$0xf]
    %v314 = vld [vmem:[#allocation3 + $0x3d4] sm:$0xf]
    %v315 = vld [vmem:[#allocation3 + $0x3d8] sm:$0xf]
    %v316 = vld [vmem:[#allocation3 + $0x3dc] sm:$0xf]
    %v317 = vld [vmem:[#allocation3 + $0x3e0] sm:$0xf]
    %v318 = vld [vmem:[#allocation3 + $0x3e4] sm:$0xf]
    %v319 = vld [vmem:[#allocation3 + $0x3e8] sm:$0xf]
    %v320 = vld [vmem:[#allocation3 + $0x3ec] sm:$0xf]
    %v321 = vld [vmem:[#allocation3 + $0x3f0] sm:$0xf]
    %v322 = vld [vmem:[#allocation3 + $0x3f4] sm:$0xf]
    %v323 = vld [vmem:[#allocation3 + $0x3f8] sm:$0xf]
    %v324 = vld [vmem:[#allocation3 + $0x3fc] sm:$0xf]
    %v325 = vld [vmem:[#allocation3 + $0x400] sm:$0xf]
    %v326 = vld [vmem:[#allocation3 + $0x404] sm:$0xf]
    %v327 = vld [vmem:[#allocation3 + $0x408] sm:$0xf]
    %v328 = vld [vmem:[#allocation3 + $0x40c] sm:$0xf]
    %v329 = vld [vmem:[#allocation3 + $0x410] sm:$0xf]
    %v330 = vld [vmem:[#allocation3 + $0x414] sm:$0xf]
    %v331 = vld [vmem:[#allocation3 + $0x418] sm:$0xf]
    %v332 = vld [vmem:[#allocation3 + $0x41c] sm:$0xf]
    %v333 = vld [vmem:[#allocation3 + $0x420] sm:$0xf]
    %v334 = vld [vmem:[#allocation3 + $0x424] sm:$0xf]
    %v335 = vld [vmem:[#allocation3 + $0x428] sm:$0xf]
    %v336 = vld [vmem:[#allocation3 + $0x42c] sm:$0xf]
    %v337 = vld [vmem:[#allocation3 + $0x430] sm:$0xf]
    %v338 = vld [vmem:[#allocation3 + $0x434] sm:$0xf]
    %v339 = vld [vmem:[#allocation3 + $0x438] sm:$0xf]
    %v340 = vld [vmem:[#allocation3 + $0x43c] sm:$0xf]
    %v341 = vld [vmem:[#allocation3 + $0x440] sm:$0xf]
    %v342 = vld [vmem:[#allocation3 + $0x444] sm:$0xf]
    %v343 = vld [vmem:[#allocation3 + $0x448] sm:$0xf]
    %v344 = vld [vmem:[#allocation3 + $0x44c] sm:$0xf]
    %v345 = vld [vmem:[#allocation3 + $0x450] sm:$0xf]
    %v346 = vld [vmem:[#allocation3 + $0x454] sm:$0xf]
    %v347 = vld [vmem:[#allocation3 + $0x458] sm:$0xf]
    %v348 = vld [vmem:[#allocation3 + $0x45c] sm:$0xf]
    %v349 = vld [vmem:[#allocation3 + $0x460] sm:$0xf]
    %v350 = vld [vmem:[#allocation3 + $0x464] sm:$0xf]
    %v351 = vld [vmem:[#allocation3 + $0x468] sm:$0xf]
    %v352 = vld [vmem:[#allocation3 + $0x46c] sm:$0xf]
    %v353 = vld [vmem:[#allocation3 + $0x470] sm:$0xf]
    %v354 = vld [vmem:[#allocation3 + $0x474] sm:$0xf]
    %v355 = vld [vmem:[#allocation3 + $0x478] sm:$0xf]
    %v356 = vld [vmem:[#allocation3 + $0x47c] sm:$0xf]
    %v357 = vld [vmem:[#allocation3 + $0x480] sm:$0xf]
    %v358 = vld [vmem:[#allocation3 + $0x484] sm:$0xf]
    %v359 = vld [vmem:[#allocation3 + $0x488] sm:$0xf]
    %v360 = vld [vmem:[#allocation3 + $0x48c] sm:$0xf]
    %v361 = vld [vmem:[#allocation3 + $0x490] sm:$0xf]
    %v362 = vld [vmem:[#allocation3 + $0x494] sm:$0xf]
    %v363 = vld [vmem:[#allocation3 + $0x498] sm:$0xf]
    %v364 = vld [vmem:[#allocation3 + $0x49c] sm:$0xf]
    %v365 = vld [vmem:[#allocation3 + $0x4a0] sm:$0xf]
    %v366 = vld [vmem:[#allocation3 + $0x4a4] sm:$0xf]
    %v367 = vld [vmem:[#allocation3 + $0x4a8] sm:$0xf]
    %v368 = vld [vmem:[#allocation3 + $0x4ac] sm:$0xf]
    %v369 = vld [vmem:[#allocation3 + $0x4b0] sm:$0xf]
    %v370 = vld [vmem:[#allocation3 + $0x4b4] sm:$0xf]
    %v371 = vld [vmem:[#allocation3 + $0x4b8] sm:$0xf]
    %v372 = vld [vmem:[#allocation3 + $0x4bc] sm:$0xf]
    %v373 = vld [vmem:[#allocation3 + $0x4c0] sm:$0xf]
    %v374 = vld [vmem:[#allocation3 + $0x4c4] sm:$0xf]
    %v375 = vld [vmem:[#allocation3 + $0x4c8] sm:$0xf]
    %v376 = vld [vmem:[#allocation3 + $0x4cc] sm:$0xf]
    %v377 = vld [vmem:[#allocation3 + $0x4d0] sm:$0xf]
    %v378 = vld [vmem:[#allocation3 + $0x4d4] sm:$0xf]
    %v379 = vld [vmem:[#allocation3 + $0x4d8] sm:$0xf]
    %v380 = vld [vmem:[#allocation3 + $0x4dc] sm:$0xf]
    %v381 = vld [vmem:[#allocation3 + $0x4e0] sm:$0xf]
    %v382 = vld [vmem:[#allocation3 + $0x4e4] sm:$0xf]
    %v383 = vld [vmem:[#allocation3 + $0x4e8] sm:$0xf]
    %v384 = vld [vmem:[#allocation3 + $0x4ec] sm:$0xf]
    %v385 = vld [vmem:[#allocation3 + $0x4f0] sm:$0xf]
    %v386 = vld [vmem:[#allocation3 + $0x4f4] sm:$0xf]
    %v387 = vld [vmem:[#allocation3 + $0x4f8] sm:$0xf]
    %v388 = vld [vmem:[#allocation3 + $0x4fc] sm:$0xf]
    %v389 = vld [vmem:[#allocation3 + $0x500] sm:$0xf]
    %v390 = vld [vmem:[#allocation3 + $0x504] sm:$0xf]
    %v391 = vld [vmem:[#allocation3 + $0x508] sm:$0xf]
    %v392 = vld [vmem:[#allocation3 + $0x50c] sm:$0xf]
    %v393 = vld [vmem:[#allocation3 + $0x510] sm:$0xf]
    %v394 = vld [vmem:[#allocation3 + $0x514] sm:$0xf]
    %v395 = vld [vmem:[#allocation3 + $0x518] sm:$0xf]
    %v396 = vld [vmem:[#allocation3 + $0x51c] sm:$0xf]
    %v397 = vld [vmem:[#allocation3 + $0x520] sm:$0xf]
    %v398 = vld [vmem:[#allocation3 + $0x524] sm:$0xf]
    %v399 = vld [vmem:[#allocation3 + $0x528] sm:$0xf]
    %v400 = vld [vmem:[#allocation3 + $0x52c] sm:$0xf]
    %v401 = vld [vmem:[#allocation3 + $0x530] sm:$0xf]
    %v402 = vld [vmem:[#allocation3 + $0x534] sm:$0xf]
    %v403 = vld [vmem:[#allocation3 + $0x538] sm:$0xf]
    %v404 = vld [vmem:[#allocation3 + $0x53c] sm:$0xf]
    %v405 = vld [vmem:[#allocation3 + $0x540] sm:$0xf]
    %v406 = vld [vmem:[#allocation3 + $0x544] sm:$0xf]
    %v407 = vld [vmem:[#allocation3 + $0x548] sm:$0xf]
    %v408 = vld [vmem:[#allocation3 + $0x54c] sm:$0xf]
    %v409 = vld [vmem:[#allocation3 + $0x550] sm:$0xf]
    %v410 = vld [vmem:[#allocation3 + $0x554] sm:$0xf]
    %v411 = vld [vmem:[#allocation3 + $0x558] sm:$0xf]
    %v412 = vld [vmem:[#allocation3 + $0x55c] sm:$0xf]
    %v413 = vld [vmem:[#allocation3 + $0x560] sm:$0xf]
    %v414 = vld [vmem:[#allocation3 + $0x564] sm:$0xf]
    %v415 = vld [vmem:[#allocation3 + $0x568] sm:$0xf]
    %v416 = vld [vmem:[#allocation3 + $0x56c] sm:$0xf]
    %v417 = vld [vmem:[#allocation3 + $0x570] sm:$0xf]
    %v418 = vld [vmem:[#allocation3 + $0x574] sm:$0xf]
    %v419 = vld [vmem:[#allocation3 + $0x578] sm:$0xf]
    %v420 = vld [vmem:[#allocation3 + $0x57c] sm:$0xf]
    %v421 = vld [vmem:[#allocation3 + $0x580] sm:$0xf]
    %v422 = vld [vmem:[#allocation3 + $0x584] sm:$0xf]
    %v423 = vld [vmem:[#allocation3 + $0x588] sm:$0xf]
    %v424 = vld [vmem:[#allocation3 + $0x58c] sm:$0xf]
    %v425 = vld [vmem:[#allocation3 + $0x590] sm:$0xf]
    %v426 = vld [vmem:[#allocation3 + $0x594] sm:$0xf]
    %v427 = vld [vmem:[#allocation3 + $0x598] sm:$0xf]
    %v428 = vld [vmem:[#allocation3 + $0x59c] sm:$0xf]
    %v429 = vld [vmem:[#allocation3 + $0x5a0] sm:$0xf]
    %v430 = vld [vmem:[#allocation3 + $0x5a4] sm:$0xf]
    %v431 = vld [vmem:[#allocation3 + $0x5a8] sm:$0xf]
    %v432 = vld [vmem:[#allocation3 + $0x5ac] sm:$0xf]
    %v433 = vld [vmem:[#allocation3 + $0x5b0] sm:$0xf]
    %v434 = vld [vmem:[#allocation3 + $0x5b4] sm:$0xf]
    %v435 = vld [vmem:[#allocation3 + $0x5b8] sm:$0xf]
    %v436 = vld [vmem:[#allocation3 + $0x5bc] sm:$0xf]
    %v437 = vld [vmem:[#allocation3 + $0x5c0] sm:$0xf]
    %v438 = vld [vmem:[#allocation3 + $0x5c4] sm:$0xf]
    %v439 = vld [vmem:[#allocation3 + $0x5c8] sm:$0xf]
    %v440 = vld [vmem:[#allocation3 + $0x5cc] sm:$0xf]
    %v441 = vld [vmem:[#allocation3 + $0x5d0] sm:$0xf]
    %v442 = vld [vmem:[#allocation3 + $0x5d4] sm:$0xf]
    %v443 = vld [vmem:[#allocation3 + $0x5d8] sm:$0xf]
    %v444 = vld [vmem:[#allocation3 + $0x5dc] sm:$0xf]
    %v445 = vld [vmem:[#allocation3 + $0x5e0] sm:$0xf]
    %v446 = vld [vmem:[#allocation3 + $0x5e4] sm:$0xf]
    %v447 = vld [vmem:[#allocation3 + $0x5e8] sm:$0xf]
    %v448 = vld [vmem:[#allocation3 + $0x5ec] sm:$0xf]
    %v449 = vld [vmem:[#allocation3 + $0x5f0] sm:$0xf]
    %v450 = vld [vmem:[#allocation3 + $0x5f4] sm:$0xf]
    %v451 = vld [vmem:[#allocation3 + $0x5f8] sm:$0xf]
    %v452 = vld [vmem:[#allocation3 + $0x5fc] sm:$0xf]
    %v453 = vld [vmem:[#allocation3 + $0x600] sm:$0xf]
    %v454 = vld [vmem:[#allocation3 + $0x604] sm:$0xf]
    %v455 = vld [vmem:[#allocation3 + $0x608] sm:$0xf]
    %v456 = vld [vmem:[#allocation3 + $0x60c] sm:$0xf]
    %v457 = vld [vmem:[#allocation3 + $0x610] sm:$0xf]
    %v458 = vld [vmem:[#allocation3 + $0x614] sm:$0xf]
    %v459 = vld [vmem:[#allocation3 + $0x618] sm:$0xf]
    %v460 = vld [vmem:[#allocation3 + $0x61c] sm:$0xf]
    %v461 = vld [vmem:[#allocation3 + $0x620] sm:$0xf]
    %v462 = vld [vmem:[#allocation3 + $0x624] sm:$0xf]
    %v463 = vld [vmem:[#allocation3 + $0x628] sm:$0xf]
    %v464 = vld [vmem:[#allocation3 + $0x62c] sm:$0xf]
    %v465 = vld [vmem:[#allocation3 + $0x630] sm:$0xf]
    %v466 = vld [vmem:[#allocation3 + $0x634] sm:$0xf]
    %v467 = vld [vmem:[#allocation3 + $0x638] sm:$0xf]
    %v468 = vld [vmem:[#allocation3 + $0x63c] sm:$0xf]
    %v469 = vld [vmem:[#allocation3 + $0x640] sm:$0xf]
    %v470 = vld [vmem:[#allocation3 + $0x644] sm:$0xf]
    %v471 = vld [vmem:[#allocation3 + $0x648] sm:$0xf]
    %v472 = vld [vmem:[#allocation3 + $0x64c] sm:$0xf]
    %v473 = vld [vmem:[#allocation3 + $0x650] sm:$0xf]
    %v474 = vld [vmem:[#allocation3 + $0x654] sm:$0xf]
    %v475 = vld [vmem:[#allocation3 + $0x658] sm:$0xf]
    %v476 = vld [vmem:[#allocation3 + $0x65c] sm:$0xf]
    %v477 = vld [vmem:[#allocation3 + $0x660] sm:$0xf]
    %v478 = vld [vmem:[#allocation3 + $0x664] sm:$0xf]
    %v479 = vld [vmem:[#allocation3 + $0x668] sm:$0xf]
    %v480 = vld [vmem:[#allocation3 + $0x66c] sm:$0xf]
    %v481 = vld [vmem:[#allocation3 + $0x670] sm:$0xf]
    %v482 = vld [vmem:[#allocation3 + $0x674] sm:$0xf]
    %v483 = vld [vmem:[#allocation3 + $0x678] sm:$0xf]
    %v484 = vld [vmem:[#allocation3 + $0x67c] sm:$0xf]
    %v485 = vld [vmem:[#allocation3 + $0x680] sm:$0xf]
    %v486 = vld [vmem:[#allocation3 + $0x684] sm:$0xf]
    %v487 = vld [vmem:[#allocation3 + $0x688] sm:$0xf]
    %v488 = vld [vmem:[#allocation3 + $0x68c] sm:$0xf]
    %v489 = vld [vmem:[#allocation3 + $0x690] sm:$0xf]
    %v490 = vld [vmem:[#allocation3 + $0x694] sm:$0xf]
    %v491 = vld [vmem:[#allocation3 + $0x698] sm:$0xf]
    %v492 = vld [vmem:[#allocation3 + $0x69c] sm:$0xf]
    %v493 = vld [vmem:[#allocation3 + $0x6a0] sm:$0xf]
    %v494 = vld [vmem:[#allocation3 + $0x6a4] sm:$0xf]
    %v495 = vld [vmem:[#allocation3 + $0x6a8] sm:$0xf]
    %v496 = vld [vmem:[#allocation3 + $0x6ac] sm:$0xf]
    %v497 = vld [vmem:[#allocation3 + $0x6b0] sm:$0xf]
    %v498 = vld [vmem:[#allocation3 + $0x6b4] sm:$0xf]
    %v499 = vld [vmem:[#allocation3 + $0x6b8] sm:$0xf]
    %v500 = vld [vmem:[#allocation3 + $0x6bc] sm:$0xf]
    %v501 = vld [vmem:[#allocation3 + $0x6c0] sm:$0xf]
    %v502 = vld [vmem:[#allocation3 + $0x6c4] sm:$0xf]
    %v503 = vld [vmem:[#allocation3 + $0x6c8] sm:$0xf]
    %v504 = vld [vmem:[#allocation3 + $0x6cc] sm:$0xf]
    %v505 = vld [vmem:[#allocation3 + $0x6d0] sm:$0xf]
    %v506 = vld [vmem:[#allocation3 + $0x6d4] sm:$0xf]
    %v507 = vld [vmem:[#allocation3 + $0x6d8] sm:$0xf]
    %v508 = vld [vmem:[#allocation3 + $0x6dc] sm:$0xf]
    %v509 = vld [vmem:[#allocation3 + $0x6e0] sm:$0xf]
    %v510 = vld [vmem:[#allocation3 + $0x6e4] sm:$0xf]
    %v511 = vld [vmem:[#allocation3 + $0x6e8] sm:$0xf]
    %v512 = vld [vmem:[#allocation3 + $0x6ec] sm:$0xf]
    %v513 = vld [vmem:[#allocation3 + $0x6f0] sm:$0xf]
    %v514 = vld [vmem:[#allocation3 + $0x6f4] sm:$0xf]
    %v515 = vld [vmem:[#allocation3 + $0x6f8] sm:$0xf]
    %v516 = vld [vmem:[#allocation3 + $0x6fc] sm:$0xf]
    %v517 = vld [vmem:[#allocation3 + $0x700] sm:$0xf]
    %v518 = vld [vmem:[#allocation3 + $0x704] sm:$0xf]
    %v519 = vld [vmem:[#allocation3 + $0x708] sm:$0xf]
    %v520 = vld [vmem:[#allocation3 + $0x70c] sm:$0xf]
    %v521 = vld [vmem:[#allocation3 + $0x710] sm:$0xf]
    %v522 = vld [vmem:[#allocation3 + $0x714] sm:$0xf]
    %v523 = vld [vmem:[#allocation3 + $0x718] sm:$0xf]
    %v524 = vld [vmem:[#allocation3 + $0x71c] sm:$0xf]
    %v525 = vld [vmem:[#allocation3 + $0x720] sm:$0xf]
    %v526 = vld [vmem:[#allocation3 + $0x724] sm:$0xf]
    %v527 = vld [vmem:[#allocation3 + $0x728] sm:$0xf]
    %v528 = vld [vmem:[#allocation3 + $0x72c] sm:$0xf]
    %v529 = vld [vmem:[#allocation3 + $0x730] sm:$0xf]
    %v530 = vld [vmem:[#allocation3 + $0x734] sm:$0xf]
    %v531 = vld [vmem:[#allocation3 + $0x738] sm:$0xf]
    %v532 = vld [vmem:[#allocation3 + $0x73c] sm:$0xf]
    %v533 = vld [vmem:[#allocation3 + $0x740] sm:$0xf]
    %v534 = vld [vmem:[#allocation3 + $0x744] sm:$0xf]
    %v535 = vld [vmem:[#allocation3 + $0x748] sm:$0xf]
    %v536 = vld [vmem:[#allocation3 + $0x74c] sm:$0xf]
    %v537 = vld [vmem:[#allocation3 + $0x750] sm:$0xf]
    %v538 = vld [vmem:[#allocation3 + $0x754] sm:$0xf]
    %v539 = vld [vmem:[#allocation3 + $0x758] sm:$0xf]
    %v540 = vld [vmem:[#allocation3 + $0x75c] sm:$0xf]
    %v541 = vld [vmem:[#allocation3 + $0x760] sm:$0xf]
    %v542 = vld [vmem:[#allocation3 + $0x764] sm:$0xf]
    %v543 = vld [vmem:[#allocation3 + $0x768] sm:$0xf]
    %v544 = vld [vmem:[#allocation3 + $0x76c] sm:$0xf]
    %v545 = vld [vmem:[#allocation3 + $0x770] sm:$0xf]
    %v546 = vld [vmem:[#allocation3 + $0x774] sm:$0xf]
    %v547 = vld [vmem:[#allocation3 + $0x778] sm:$0xf]
    %v548 = vld [vmem:[#allocation3 + $0x77c] sm:$0xf]
    %v549 = vld [vmem:[#allocation3 + $0x780] sm:$0xf]
    %v550 = vld [vmem:[#allocation3 + $0x784] sm:$0xf]
    %v551 = vld [vmem:[#allocation3 + $0x788] sm:$0xf]
    %v552 = vld [vmem:[#allocation3 + $0x78c] sm:$0xf]
    %v553 = vld [vmem:[#allocation3 + $0x790] sm:$0xf]
    %v554 = vld [vmem:[#allocation3 + $0x794] sm:$0xf]
    %v555 = vld [vmem:[#allocation3 + $0x798] sm:$0xf]
    %v556 = vld [vmem:[#allocation3 + $0x79c] sm:$0xf]
    %v557 = vld [vmem:[#allocation3 + $0x7a0] sm:$0xf]
    %v558 = vld [vmem:[#allocation3 + $0x7a4] sm:$0xf]
    %v559 = vld [vmem:[#allocation3 + $0x7a8] sm:$0xf]
    %v560 = vld [vmem:[#allocation3 + $0x7ac] sm:$0xf]
    %v561 = vld [vmem:[#allocation3 + $0x7b0] sm:$0xf]
    %v562 = vld [vmem:[#allocation3 + $0x7b4] sm:$0xf]
    %v563 = vld [vmem:[#allocation3 + $0x7b8] sm:$0xf]
    %v564 = vld [vmem:[#allocation3 + $0x7bc] sm:$0xf]
    %v565 = vld [vmem:[#allocation3 + $0x7c0] sm:$0xf]
    %v566 = vld [vmem:[#allocation3 + $0x7c4] sm:$0xf]
    %v567 = vld [vmem:[#allocation3 + $0x7c8] sm:$0xf]
    %v568 = vld [vmem:[#allocation3 + $0x7cc] sm:$0xf]
    %v569 = vld [vmem:[#allocation3 + $0x7d0] sm:$0xf]
    %v570 = vld [vmem:[#allocation3 + $0x7d4] sm:$0xf]
    %v571 = vld [vmem:[#allocation3 + $0x7d8] sm:$0xf]
    %v572 = vld [vmem:[#allocation3 + $0x7dc] sm:$0xf]
    %v573 = vld [vmem:[#allocation3 + $0x7e0] sm:$0xf]
    %v574 = vld [vmem:[#allocation3 + $0x7e4] sm:$0xf]
    %v575 = vld [vmem:[#allocation3 + $0x7e8] sm:$0xf]
    %v576 = vld [vmem:[#allocation3 + $0x7ec] sm:$0xf]
    %v577 = vld [vmem:[#allocation3 + $0x7f0] sm:$0xf]
    %v578 = vld [vmem:[#allocation3 + $0x7f4] sm:$0xf]
    %v579 = vld [vmem:[#allocation3 + $0x7f8] sm:$0xf]
    %v580 = vld [vmem:[#allocation3 + $0x7fc] sm:$0xf]
    %v581 = vld [vmem:[#allocation6] sm:$0xf]
    %v582 = vld [vmem:[#allocation6 + $0x4] sm:$0xf]
    %v583 = vld [vmem:[#allocation6 + $0x8] sm:$0xf]
    %v584 = vld [vmem:[#allocation6 + $0xc] sm:$0xf]
    %v585 = vld [vmem:[#allocation6 + $0x10] sm:$0xf]
    %v586 = vld [vmem:[#allocation6 + $0x14] sm:$0xf]
    %v587 = vld [vmem:[#allocation6 + $0x18] sm:$0xf]
    %v588 = vld [vmem:[#allocation6 + $0x1c] sm:$0xf]
    %v589 = vld [vmem:[#allocation6 + $0x20] sm:$0xf]
    %v590 = vld [vmem:[#allocation6 + $0x24] sm:$0xf]
    %v591 = vld [vmem:[#allocation6 + $0x28] sm:$0xf]
    %v592 = vld [vmem:[#allocation6 + $0x2c] sm:$0xf]
    %v593 = vld [vmem:[#allocation6 + $0x30] sm:$0xf]
    %v594 = vld [vmem:[#allocation6 + $0x34] sm:$0xf]
    %v595 = vld [vmem:[#allocation6 + $0x38] sm:$0xf]
    %v596 = vld [vmem:[#allocation6 + $0x3c] sm:$0xf]
    %v597 = vld [vmem:[%s2] sm:$0x1]
    %v599 = vlaneseq
    %v600 = vshrl.u32 %v599, 7
    %v601 = vsub.s32 0, %v600
    %v602 = vrot.slane %v597, %v601
    %v1116 = vunpack.c.l.b16 %v69
    %v1117 = vunpack.c.l.b16 %v70
    %v1118 = vunpack.c.l.b16 %v71
    %v1119 = vunpack.c.l.b16 %v72
    %v1120 = vunpack.c.l.b16 %v73
    %v1121 = vunpack.c.l.b16 %v74
    %v1122 = vunpack.c.l.b16 %v75
    %v1123 = vunpack.c.l.b16 %v76
    %v1124 = vunpack.c.l.b16 %v77
    %v1125 = vunpack.c.l.b16 %v78
    %v1126 = vunpack.c.l.b16 %v79
    %v1127 = vunpack.c.l.b16 %v80
    %v1128 = vunpack.c.l.b16 %v81
    %v1129 = vunpack.c.l.b16 %v82
    %v1130 = vunpack.c.l.b16 %v83
    %v1131 = vunpack.c.l.b16 %v84
    %v1132 = vunpack.c.l.b16 %v85
    %v1133 = vunpack.c.l.b16 %v86
    %v1134 = vunpack.c.l.b16 %v87
    %v1135 = vunpack.c.l.b16 %v88
    %v1136 = vunpack.c.l.b16 %v89
    %v1137 = vunpack.c.l.b16 %v90
    %v1138 = vunpack.c.l.b16 %v91
    %v1139 = vunpack.c.l.b16 %v92
    %v1140 = vunpack.c.l.b16 %v93
    %v1141 = vunpack.c.l.b16 %v94
    %v1142 = vunpack.c.l.b16 %v95
    %v1143 = vunpack.c.l.b16 %v96
    %v1144 = vunpack.c.l.b16 %v97
    %v1145 = vunpack.c.l.b16 %v98
    %v1146 = vunpack.c.l.b16 %v99
    %v1147 = vunpack.c.l.b16 %v100
    %v1148 = vunpack.c.l.b16 %v101
    %v1149 = vunpack.c.l.b16 %v102
    %v1150 = vunpack.c.l.b16 %v103
    %v1151 = vunpack.c.l.b16 %v104
    %v1152 = vunpack.c.l.b16 %v105
    %v1153 = vunpack.c.l.b16 %v106
    %v1154 = vunpack.c.l.b16 %v107
    %v1155 = vunpack.c.l.b16 %v108
    %v1156 = vunpack.c.l.b16 %v109
    %v1157 = vunpack.c.l.b16 %v110
    %v1158 = vunpack.c.l.b16 %v111
    %v1159 = vunpack.c.l.b16 %v112
    %v1160 = vunpack.c.l.b16 %v113
    %v1161 = vunpack.c.l.b16 %v114
    %v1162 = vunpack.c.l.b16 %v115
    %v1163 = vunpack.c.l.b16 %v116
    %v1164 = vunpack.c.l.b16 %v117
    %v1165 = vunpack.c.l.b16 %v118
    %v1166 = vunpack.c.l.b16 %v119
    %v1167 = vunpack.c.l.b16 %v120
    %v1168 = vunpack.c.l.b16 %v121
    %v1169 = vunpack.c.l.b16 %v122
    %v1170 = vunpack.c.l.b16 %v123
    %v1171 = vunpack.c.l.b16 %v124
    %v1172 = vunpack.c.l.b16 %v125
    %v1173 = vunpack.c.l.b16 %v126
    %v1174 = vunpack.c.l.b16 %v127
    %v1175 = vunpack.c.l.b16 %v128
    %v1176 = vunpack.c.l.b16 %v129
    %v1177 = vunpack.c.l.b16 %v130
    %v1178 = vunpack.c.l.b16 %v131
    %v1179 = vunpack.c.l.b16 %v132
    %v1180 = vunpack.c.l.b16 %v133
    %v1181 = vunpack.c.l.b16 %v134
    %v1182 = vunpack.c.l.b16 %v135
    %v1183 = vunpack.c.l.b16 %v136
    %v1184 = vunpack.c.l.b16 %v137
    %v1185 = vunpack.c.l.b16 %v138
    %v1186 = vunpack.c.l.b16 %v139
    %v1187 = vunpack.c.l.b16 %v140
    %v1188 = vunpack.c.l.b16 %v141
    %v1189 = vunpack.c.l.b16 %v142
    %v1190 = vunpack.c.l.b16 %v143
    %v1191 = vunpack.c.l.b16 %v144
    %v1192 = vunpack.c.l.b16 %v145
    %v1193 = vunpack.c.l.b16 %v146
    %v1194 = vunpack.c.l.b16 %v147
    %v1195 = vunpack.c.l.b16 %v148
    %v1196 = vunpack.c.l.b16 %v149
    %v1197 = vunpack.c.l.b16 %v150
    %v1198 = vunpack.c.l.b16 %v151
    %v1199 = vunpack.c.l.b16 %v152
    %v1200 = vunpack.c.l.b16 %v153
    %v1201 = vunpack.c.l.b16 %v154
    %v1202 = vunpack.c.l.b16 %v155
    %v1203 = vunpack.c.l.b16 %v156
    %v1204 = vunpack.c.l.b16 %v157
    %v1205 = vunpack.c.l.b16 %v158
    %v1206 = vunpack.c.l.b16 %v159
    %v1207 = vunpack.c.l.b16 %v160
    %v1208 = vunpack.c.l.b16 %v161
    %v1209 = vunpack.c.l.b16 %v162
    %v1210 = vunpack.c.l.b16 %v163
    %v1211 = vunpack.c.l.b16 %v164
    %v1212 = vunpack.c.l.b16 %v165
    %v1213 = vunpack.c.l.b16 %v166
    %v1214 = vunpack.c.l.b16 %v167
    %v1215 = vunpack.c.l.b16 %v168
    %v1216 = vunpack.c.l.b16 %v169
    %v1217 = vunpack.c.l.b16 %v170
    %v1218 = vunpack.c.l.b16 %v171
    %v1219 = vunpack.c.l.b16 %v172
    %v1220 = vunpack.c.l.b16 %v173
    %v1221 = vunpack.c.l.b16 %v174
    %v1222 = vunpack.c.l.b16 %v175
    %v1223 = vunpack.c.l.b16 %v176
    %v1224 = vunpack.c.l.b16 %v177
    %v1225 = vunpack.c.l.b16 %v178
    %v1226 = vunpack.c.l.b16 %v179
    %v1227 = vunpack.c.l.b16 %v180
    %v1228 = vunpack.c.l.b16 %v181
    %v1229 = vunpack.c.l.b16 %v182
    %v1230 = vunpack.c.l.b16 %v183
    %v1231 = vunpack.c.l.b16 %v184
    %v1232 = vunpack.c.l.b16 %v185
    %v1233 = vunpack.c.l.b16 %v186
    %v1234 = vunpack.c.l.b16 %v187
    %v1235 = vunpack.c.l.b16 %v188
    %v1236 = vunpack.c.l.b16 %v189
    %v1237 = vunpack.c.l.b16 %v190
    %v1238 = vunpack.c.l.b16 %v191
    %v1239 = vunpack.c.l.b16 %v192
    %v1240 = vunpack.c.l.b16 %v193
    %v1241 = vunpack.c.l.b16 %v194
    %v1242 = vunpack.c.l.b16 %v195
    %v1243 = vunpack.c.l.b16 %v196
    %v1244 = vunpack.c.l.b16 %v197
    %v1245 = vunpack.c.l.b16 %v198
    %v1246 = vunpack.c.l.b16 %v199
    %v1247 = vunpack.c.l.b16 %v200
    %v1248 = vunpack.c.l.b16 %v201
    %v1249 = vunpack.c.l.b16 %v202
    %v1250 = vunpack.c.l.b16 %v203
    %v1251 = vunpack.c.l.b16 %v204
    %v1252 = vunpack.c.l.b16 %v205
    %v1253 = vunpack.c.l.b16 %v206
    %v1254 = vunpack.c.l.b16 %v207
    %v1255 = vunpack.c.l.b16 %v208
    %v1256 = vunpack.c.l.b16 %v209
    %v1257 = vunpack.c.l.b16 %v210
    %v1258 = vunpack.c.l.b16 %v211
    %v1259 = vunpack.c.l.b16 %v212
    %v1260 = vunpack.c.l.b16 %v213
    %v1261 = vunpack.c.l.b16 %v214
    %v1262 = vunpack.c.l.b16 %v215
    %v1263 = vunpack.c.l.b16 %v216
    %v1264 = vunpack.c.l.b16 %v217
    %v1265 = vunpack.c.l.b16 %v218
    %v1266 = vunpack.c.l.b16 %v219
    %v1267 = vunpack.c.l.b16 %v220
    %v1268 = vunpack.c.l.b16 %v221
    %v1269 = vunpack.c.l.b16 %v222
    %v1270 = vunpack.c.l.b16 %v223
    %v1271 = vunpack.c.l.b16 %v224
    %v1272 = vunpack.c.l.b16 %v225
    %v1273 = vunpack.c.l.b16 %v226
    %v1274 = vunpack.c.l.b16 %v227
    %v1275 = vunpack.c.l.b16 %v228
    %v1276 = vunpack.c.l.b16 %v229
    %v1277 = vunpack.c.l.b16 %v230
    %v1278 = vunpack.c.l.b16 %v231
    %v1279 = vunpack.c.l.b16 %v232
    %v1280 = vunpack.c.l.b16 %v233
    %v1281 = vunpack.c.l.b16 %v234
    %v1282 = vunpack.c.l.b16 %v235
    %v1283 = vunpack.c.l.b16 %v236
    %v1284 = vunpack.c.l.b16 %v237
    %v1285 = vunpack.c.l.b16 %v238
    %v1286 = vunpack.c.l.b16 %v239
    %v1287 = vunpack.c.l.b16 %v240
    %v1288 = vunpack.c.l.b16 %v241
    %v1289 = vunpack.c.l.b16 %v242
    %v1290 = vunpack.c.l.b16 %v243
    %v1291 = vunpack.c.l.b16 %v244
    %v1292 = vunpack.c.l.b16 %v245
    %v1293 = vunpack.c.l.b16 %v246
    %v1294 = vunpack.c.l.b16 %v247
    %v1295 = vunpack.c.l.b16 %v248
    %v1296 = vunpack.c.l.b16 %v249
    %v1297 = vunpack.c.l.b16 %v250
    %v1298 = vunpack.c.l.b16 %v251
    %v1299 = vunpack.c.l.b16 %v252
    %v1300 = vunpack.c.l.b16 %v253
    %v1301 = vunpack.c.l.b16 %v254
    %v1302 = vunpack.c.l.b16 %v255
    %v1303 = vunpack.c.l.b16 %v256
    %v1304 = vunpack.c.l.b16 %v257
    %v1305 = vunpack.c.l.b16 %v258
    %v1306 = vunpack.c.l.b16 %v259
    %v1307 = vunpack.c.l.b16 %v260
    %v1308 = vunpack.c.l.b16 %v261
    %v1309 = vunpack.c.l.b16 %v262
    %v1310 = vunpack.c.l.b16 %v263
    %v1311 = vunpack.c.l.b16 %v264
    %v1312 = vunpack.c.l.b16 %v265
    %v1313 = vunpack.c.l.b16 %v266
    %v1314 = vunpack.c.l.b16 %v267
    %v1315 = vunpack.c.l.b16 %v268
    %v1316 = vunpack.c.l.b16 %v269
    %v1317 = vunpack.c.l.b16 %v270
    %v1318 = vunpack.c.l.b16 %v271
    %v1319 = vunpack.c.l.b16 %v272
    %v1320 = vunpack.c.l.b16 %v273
    %v1321 = vunpack.c.l.b16 %v274
    %v1322 = vunpack.c.l.b16 %v275
    %v1323 = vunpack.c.l.b16 %v276
    %v1324 = vunpack.c.l.b16 %v277
    %v1325 = vunpack.c.l.b16 %v278
    %v1326 = vunpack.c.l.b16 %v279
    %v1327 = vunpack.c.l.b16 %v280
    %v1328 = vunpack.c.l.b16 %v281
    %v1329 = vunpack.c.l.b16 %v282
    %v1330 = vunpack.c.l.b16 %v283
    %v1331 = vunpack.c.l.b16 %v284
    %v1332 = vunpack.c.l.b16 %v285
    %v1333 = vunpack.c.l.b16 %v286
    %v1334 = vunpack.c.l.b16 %v287
    %v1335 = vunpack.c.l.b16 %v288
    %v1336 = vunpack.c.l.b16 %v289
    %v1337 = vunpack.c.l.b16 %v290
    %v1338 = vunpack.c.l.b16 %v291
    %v1339 = vunpack.c.l.b16 %v292
    %v1340 = vunpack.c.l.b16 %v293
    %v1341 = vunpack.c.l.b16 %v294
    %v1342 = vunpack.c.l.b16 %v295
    %v1343 = vunpack.c.l.b16 %v296
    %v1344 = vunpack.c.l.b16 %v297
    %v1345 = vunpack.c.l.b16 %v298
    %v1346 = vunpack.c.l.b16 %v299
    %v1347 = vunpack.c.l.b16 %v300
    %v1348 = vunpack.c.l.b16 %v301
    %v1349 = vunpack.c.l.b16 %v302
    %v1350 = vunpack.c.l.b16 %v303
    %v1351 = vunpack.c.l.b16 %v304
    %v1352 = vunpack.c.l.b16 %v305
    %v1353 = vunpack.c.l.b16 %v306
    %v1354 = vunpack.c.l.b16 %v307
    %v1355 = vunpack.c.l.b16 %v308
    %v1356 = vunpack.c.l.b16 %v309
    %v1357 = vunpack.c.l.b16 %v310
    %v1358 = vunpack.c.l.b16 %v311
    %v1359 = vunpack.c.l.b16 %v312
    %v1360 = vunpack.c.l.b16 %v313
    %v1361 = vunpack.c.l.b16 %v314
    %v1362 = vunpack.c.l.b16 %v315
    %v1363 = vunpack.c.l.b16 %v316
    %v1364 = vunpack.c.l.b16 %v317
    %v1365 = vunpack.c.l.b16 %v318
    %v1366 = vunpack.c.l.b16 %v319
    %v1367 = vunpack.c.l.b16 %v320
    %v1368 = vunpack.c.l.b16 %v321
    %v1369 = vunpack.c.l.b16 %v322
    %v1370 = vunpack.c.l.b16 %v323
    %v1371 = vunpack.c.l.b16 %v324
    %v1372 = vunpack.c.l.b16 %v325
    %v1373 = vunpack.c.l.b16 %v326
    %v1374 = vunpack.c.l.b16 %v327
    %v1375 = vunpack.c.l.b16 %v328
    %v1376 = vunpack.c.l.b16 %v329
    %v1377 = vunpack.c.l.b16 %v330
    %v1378 = vunpack.c.l.b16 %v331
    %v1379 = vunpack.c.l.b16 %v332
    %v1380 = vunpack.c.l.b16 %v333
    %v1381 = vunpack.c.l.b16 %v334
    %v1382 = vunpack.c.l.b16 %v335
    %v1383 = vunpack.c.l.b16 %v336
    %v1384 = vunpack.c.l.b16 %v337
    %v1385 = vunpack.c.l.b16 %v338
    %v1386 = vunpack.c.l.b16 %v339
    %v1387 = vunpack.c.l.b16 %v340
    %v1388 = vunpack.c.l.b16 %v341
    %v1389 = vunpack.c.l.b16 %v342
    %v1390 = vunpack.c.l.b16 %v343
    %v1391 = vunpack.c.l.b16 %v344
    %v1392 = vunpack.c.l.b16 %v345
    %v1393 = vunpack.c.l.b16 %v346
    %v1394 = vunpack.c.l.b16 %v347
    %v1395 = vunpack.c.l.b16 %v348
    %v1396 = vunpack.c.l.b16 %v349
    %v1397 = vunpack.c.l.b16 %v350
    %v1398 = vunpack.c.l.b16 %v351
    %v1399 = vunpack.c.l.b16 %v352
    %v1400 = vunpack.c.l.b16 %v353
    %v1401 = vunpack.c.l.b16 %v354
    %v1402 = vunpack.c.l.b16 %v355
    %v1403 = vunpack.c.l.b16 %v356
    %v1404 = vunpack.c.l.b16 %v357
    %v1405 = vunpack.c.l.b16 %v358
    %v1406 = vunpack.c.l.b16 %v359
    %v1407 = vunpack.c.l.b16 %v360
    %v1408 = vunpack.c.l.b16 %v361
    %v1409 = vunpack.c.l.b16 %v362
    %v1410 = vunpack.c.l.b16 %v363
    %v1411 = vunpack.c.l.b16 %v364
    %v1412 = vunpack.c.l.b16 %v365
    %v1413 = vunpack.c.l.b16 %v366
    %v1414 = vunpack.c.l.b16 %v367
    %v1415 = vunpack.c.l.b16 %v368
    %v1416 = vunpack.c.l.b16 %v369
    %v1417 = vunpack.c.l.b16 %v370
    %v1418 = vunpack.c.l.b16 %v371
    %v1419 = vunpack.c.l.b16 %v372
    %v1420 = vunpack.c.l.b16 %v373
    %v1421 = vunpack.c.l.b16 %v374
    %v1422 = vunpack.c.l.b16 %v375
    %v1423 = vunpack.c.l.b16 %v376
    %v1424 = vunpack.c.l.b16 %v377
    %v1425 = vunpack.c.l.b16 %v378
    %v1426 = vunpack.c.l.b16 %v379
    %v1427 = vunpack.c.l.b16 %v380
    %v1428 = vunpack.c.l.b16 %v381
    %v1429 = vunpack.c.l.b16 %v382
    %v1430 = vunpack.c.l.b16 %v383
    %v1431 = vunpack.c.l.b16 %v384
    %v1432 = vunpack.c.l.b16 %v385
    %v1433 = vunpack.c.l.b16 %v386
    %v1434 = vunpack.c.l.b16 %v387
    %v1435 = vunpack.c.l.b16 %v388
    %v1436 = vunpack.c.l.b16 %v389
    %v1437 = vunpack.c.l.b16 %v390
    %v1438 = vunpack.c.l.b16 %v391
    %v1439 = vunpack.c.l.b16 %v392
    %v1440 = vunpack.c.l.b16 %v393
    %v1441 = vunpack.c.l.b16 %v394
    %v1442 = vunpack.c.l.b16 %v395
    %v1443 = vunpack.c.l.b16 %v396
    %v1444 = vunpack.c.l.b16 %v397
    %v1445 = vunpack.c.l.b16 %v398
    %v1446 = vunpack.c.l.b16 %v399
    %v1447 = vunpack.c.l.b16 %v400
    %v1448 = vunpack.c.l.b16 %v401
    %v1449 = vunpack.c.l.b16 %v402
    %v1450 = vunpack.c.l.b16 %v403
    %v1451 = vunpack.c.l.b16 %v404
    %v1452 = vunpack.c.l.b16 %v405
    %v1453 = vunpack.c.l.b16 %v406
    %v1454 = vunpack.c.l.b16 %v407
    %v1455 = vunpack.c.l.b16 %v408
    %v1456 = vunpack.c.l.b16 %v409
    %v1457 = vunpack.c.l.b16 %v410
    %v1458 = vunpack.c.l.b16 %v411
    %v1459 = vunpack.c.l.b16 %v412
    %v1460 = vunpack.c.l.b16 %v413
    %v1461 = vunpack.c.l.b16 %v414
    %v1462 = vunpack.c.l.b16 %v415
    %v1463 = vunpack.c.l.b16 %v416
    %v1464 = vunpack.c.l.b16 %v417
    %v1465 = vunpack.c.l.b16 %v418
    %v1466 = vunpack.c.l.b16 %v419
    %v1467 = vunpack.c.l.b16 %v420
    %v1468 = vunpack.c.l.b16 %v421
    %v1469 = vunpack.c.l.b16 %v422
    %v1470 = vunpack.c.l.b16 %v423
    %v1471 = vunpack.c.l.b16 %v424
    %v1472 = vunpack.c.l.b16 %v425
    %v1473 = vunpack.c.l.b16 %v426
    %v1474 = vunpack.c.l.b16 %v427
    %v1475 = vunpack.c.l.b16 %v428
    %v1476 = vunpack.c.l.b16 %v429
    %v1477 = vunpack.c.l.b16 %v430
    %v1478 = vunpack.c.l.b16 %v431
    %v1479 = vunpack.c.l.b16 %v432
    %v1480 = vunpack.c.l.b16 %v433
    %v1481 = vunpack.c.l.b16 %v434
    %v1482 = vunpack.c.l.b16 %v435
    %v1483 = vunpack.c.l.b16 %v436
    %v1484 = vunpack.c.l.b16 %v437
    %v1485 = vunpack.c.l.b16 %v438
    %v1486 = vunpack.c.l.b16 %v439
    %v1487 = vunpack.c.l.b16 %v440
    %v1488 = vunpack.c.l.b16 %v441
    %v1489 = vunpack.c.l.b16 %v442
    %v1490 = vunpack.c.l.b16 %v443
    %v1491 = vunpack.c.l.b16 %v444
    %v1492 = vunpack.c.l.b16 %v445
    %v1493 = vunpack.c.l.b16 %v446
    %v1494 = vunpack.c.l.b16 %v447
    %v1495 = vunpack.c.l.b16 %v448
    %v1496 = vunpack.c.l.b16 %v449
    %v1497 = vunpack.c.l.b16 %v450
    %v1498 = vunpack.c.l.b16 %v451
    %v1499 = vunpack.c.l.b16 %v452
    %v1500 = vunpack.c.l.b16 %v453
    %v1501 = vunpack.c.l.b16 %v454
    %v1502 = vunpack.c.l.b16 %v455
    %v1503 = vunpack.c.l.b16 %v456
    %v1504 = vunpack.c.l.b16 %v457
    %v1505 = vunpack.c.l.b16 %v458
    %v1506 = vunpack.c.l.b16 %v459
    %v1507 = vunpack.c.l.b16 %v460
    %v1508 = vunpack.c.l.b16 %v461
    %v1509 = vunpack.c.l.b16 %v462
    %v1510 = vunpack.c.l.b16 %v463
    %v1511 = vunpack.c.l.b16 %v464
    %v1512 = vunpack.c.l.b16 %v465
    %v1513 = vunpack.c.l.b16 %v466
    %v1514 = vunpack.c.l.b16 %v467
    %v1515 = vunpack.c.l.b16 %v468
    %v1516 = vunpack.c.l.b16 %v469
    %v1517 = vunpack.c.l.b16 %v470
    %v1518 = vunpack.c.l.b16 %v471
    %v1519 = vunpack.c.l.b16 %v472
    %v1520 = vunpack.c.l.b16 %v473
    %v1521 = vunpack.c.l.b16 %v474
    %v1522 = vunpack.c.l.b16 %v475
    %v1523 = vunpack.c.l.b16 %v476
    %v1524 = vunpack.c.l.b16 %v477
    %v1525 = vunpack.c.l.b16 %v478
    %v1526 = vunpack.c.l.b16 %v479
    %v1527 = vunpack.c.l.b16 %v480
    %v1528 = vunpack.c.l.b16 %v481
    %v1529 = vunpack.c.l.b16 %v482
    %v1530 = vunpack.c.l.b16 %v483
    %v1531 = vunpack.c.l.b16 %v484
    %v1532 = vunpack.c.l.b16 %v485
    %v1533 = vunpack.c.l.b16 %v486
    %v1534 = vunpack.c.l.b16 %v487
    %v1535 = vunpack.c.l.b16 %v488
    %v1536 = vunpack.c.l.b16 %v489
    %v1537 = vunpack.c.l.b16 %v490
    %v1538 = vunpack.c.l.b16 %v491
    %v1539 = vunpack.c.l.b16 %v492
    %v1540 = vunpack.c.l.b16 %v493
    %v1541 = vunpack.c.l.b16 %v494
    %v1542 = vunpack.c.l.b16 %v495
    %v1543 = vunpack.c.l.b16 %v496
    %v1544 = vunpack.c.l.b16 %v497
    %v1545 = vunpack.c.l.b16 %v498
    %v1546 = vunpack.c.l.b16 %v499
    %v1547 = vunpack.c.l.b16 %v500
    %v1548 = vunpack.c.l.b16 %v501
    %v1549 = vunpack.c.l.b16 %v502
    %v1550 = vunpack.c.l.b16 %v503
    %v1551 = vunpack.c.l.b16 %v504
    %v1552 = vunpack.c.l.b16 %v505
    %v1553 = vunpack.c.l.b16 %v506
    %v1554 = vunpack.c.l.b16 %v507
    %v1555 = vunpack.c.l.b16 %v508
    %v1556 = vunpack.c.l.b16 %v509
    %v1557 = vunpack.c.l.b16 %v510
    %v1558 = vunpack.c.l.b16 %v511
    %v1559 = vunpack.c.l.b16 %v512
    %v1560 = vunpack.c.l.b16 %v513
    %v1561 = vunpack.c.l.b16 %v514
    %v1562 = vunpack.c.l.b16 %v515
    %v1563 = vunpack.c.l.b16 %v516
    %v1564 = vunpack.c.l.b16 %v517
    %v1565 = vunpack.c.l.b16 %v518
    %v1566 = vunpack.c.l.b16 %v519
    %v1567 = vunpack.c.l.b16 %v520
    %v1568 = vunpack.c.l.b16 %v521
    %v1569 = vunpack.c.l.b16 %v522
    %v1570 = vunpack.c.l.b16 %v523
    %v1571 = vunpack.c.l.b16 %v524
    %v1572 = vunpack.c.l.b16 %v525
    %v1573 = vunpack.c.l.b16 %v526
    %v1574 = vunpack.c.l.b16 %v527
    %v1575 = vunpack.c.l.b16 %v528
    %v1576 = vunpack.c.l.b16 %v529
    %v1577 = vunpack.c.l.b16 %v530
    %v1578 = vunpack.c.l.b16 %v531
    %v1579 = vunpack.c.l.b16 %v532
    %v1580 = vunpack.c.l.b16 %v533
    %v1581 = vunpack.c.l.b16 %v534
    %v1582 = vunpack.c.l.b16 %v535
    %v1583 = vunpack.c.l.b16 %v536
    %v1584 = vunpack.c.l.b16 %v537
    %v1585 = vunpack.c.l.b16 %v538
    %v1586 = vunpack.c.l.b16 %v539
    %v1587 = vunpack.c.l.b16 %v540
    %v1588 = vunpack.c.l.b16 %v541
    %v1589 = vunpack.c.l.b16 %v542
    %v1590 = vunpack.c.l.b16 %v543
    %v1591 = vunpack.c.l.b16 %v544
    %v1592 = vunpack.c.l.b16 %v545
    %v1593 = vunpack.c.l.b16 %v546
    %v1594 = vunpack.c.l.b16 %v547
    %v1595 = vunpack.c.l.b16 %v548
    %v1596 = vunpack.c.l.b16 %v549
    %v1597 = vunpack.c.l.b16 %v550
    %v1598 = vunpack.c.l.b16 %v551
    %v1599 = vunpack.c.l.b16 %v552
    %v1600 = vunpack.c.l.b16 %v553
    %v1601 = vunpack.c.l.b16 %v554
    %v1602 = vunpack.c.l.b16 %v555
    %v1603 = vunpack.c.l.b16 %v556
    %v1604 = vunpack.c.l.b16 %v557
    %v1605 = vunpack.c.l.b16 %v558
    %v1606 = vunpack.c.l.b16 %v559
    %v1607 = vunpack.c.l.b16 %v560
    %v1608 = vunpack.c.l.b16 %v561
    %v1609 = vunpack.c.l.b16 %v562
    %v1610 = vunpack.c.l.b16 %v563
    %v1611 = vunpack.c.l.b16 %v564
    %v1612 = vunpack.c.l.b16 %v565
    %v1613 = vunpack.c.l.b16 %v566
    %v1614 = vunpack.c.l.b16 %v567
    %v1615 = vunpack.c.l.b16 %v568
    %v1616 = vunpack.c.l.b16 %v569
    %v1617 = vunpack.c.l.b16 %v570
    %v1618 = vunpack.c.l.b16 %v571
    %v1619 = vunpack.c.l.b16 %v572
    %v1620 = vunpack.c.l.b16 %v573
    %v1621 = vunpack.c.l.b16 %v574
    %v1622 = vunpack.c.l.b16 %v575
    %v1623 = vunpack.c.l.b16 %v576
    %v1624 = vunpack.c.l.b16 %v577
    %v1625 = vunpack.c.l.b16 %v578
    %v1626 = vunpack.c.l.b16 %v579
    %v1627 = vunpack.c.l.b16 %v580
    %v1628 = vpack.c.b16 %v1117, %v1116
    %v1629 = vpack.c.b16 %v1119, %v1118
    %v1630 = vpack.c.b16 %v1121, %v1120
    %v1631 = vpack.c.b16 %v1123, %v1122
    %v1632 = vpack.c.b16 %v1125, %v1124
    %v1633 = vpack.c.b16 %v1127, %v1126
    %v1634 = vpack.c.b16 %v1129, %v1128
    %v1635 = vpack.c.b16 %v1131, %v1130
    %v1636 = vpack.c.b16 %v1133, %v1132
    %v1637 = vpack.c.b16 %v1135, %v1134
    %v1638 = vpack.c.b16 %v1137, %v1136
    %v1639 = vpack.c.b16 %v1139, %v1138
    %v1640 = vpack.c.b16 %v1141, %v1140
    %v1641 = vpack.c.b16 %v1143, %v1142
    %v1642 = vpack.c.b16 %v1145, %v1144
    %v1643 = vpack.c.b16 %v1147, %v1146
    %v1644 = vpack.c.b16 %v1149, %v1148
    %v1645 = vpack.c.b16 %v1151, %v1150
    %v1646 = vpack.c.b16 %v1153, %v1152
    %v1647 = vpack.c.b16 %v1155, %v1154
    %v1648 = vpack.c.b16 %v1157, %v1156
    %v1649 = vpack.c.b16 %v1159, %v1158
    %v1650 = vpack.c.b16 %v1161, %v1160
    %v1651 = vpack.c.b16 %v1163, %v1162
    %v1652 = vpack.c.b16 %v1165, %v1164
    %v1653 = vpack.c.b16 %v1167, %v1166
    %v1654 = vpack.c.b16 %v1169, %v1168
    %v1655 = vpack.c.b16 %v1171, %v1170
    %v1656 = vpack.c.b16 %v1173, %v1172
    %v1657 = vpack.c.b16 %v1175, %v1174
    %v1658 = vpack.c.b16 %v1177, %v1176
    %v1659 = vpack.c.b16 %v1179, %v1178
    %v1660 = vpack.c.b16 %v1181, %v1180
    %v1661 = vpack.c.b16 %v1183, %v1182
    %v1662 = vpack.c.b16 %v1185, %v1184
    %v1663 = vpack.c.b16 %v1187, %v1186
    %v1664 = vpack.c.b16 %v1189, %v1188
    %v1665 = vpack.c.b16 %v1191, %v1190
    %v1666 = vpack.c.b16 %v1193, %v1192
    %v1667 = vpack.c.b16 %v1195, %v1194
    %v1668 = vpack.c.b16 %v1197, %v1196
    %v1669 = vpack.c.b16 %v1199, %v1198
    %v1670 = vpack.c.b16 %v1201, %v1200
    %v1671 = vpack.c.b16 %v1203, %v1202
    %v1672 = vpack.c.b16 %v1205, %v1204
    %v1673 = vpack.c.b16 %v1207, %v1206
    %v1674 = vpack.c.b16 %v1209, %v1208
    %v1675 = vpack.c.b16 %v1211, %v1210
    %v1676 = vpack.c.b16 %v1213, %v1212
    %v1677 = vpack.c.b16 %v1215, %v1214
    %v1678 = vpack.c.b16 %v1217, %v1216
    %v1679 = vpack.c.b16 %v1219, %v1218
    %v1680 = vpack.c.b16 %v1221, %v1220
    %v1681 = vpack.c.b16 %v1223, %v1222
    %v1682 = vpack.c.b16 %v1225, %v1224
    %v1683 = vpack.c.b16 %v1227, %v1226
    %v1684 = vpack.c.b16 %v1229, %v1228
    %v1685 = vpack.c.b16 %v1231, %v1230
    %v1686 = vpack.c.b16 %v1233, %v1232
    %v1687 = vpack.c.b16 %v1235, %v1234
    %v1688 = vpack.c.b16 %v1237, %v1236
    %v1689 = vpack.c.b16 %v1239, %v1238
    %v1690 = vpack.c.b16 %v1241, %v1240
    %v1691 = vpack.c.b16 %v1243, %v1242
    %v1692 = vpack.c.b16 %v1245, %v1244
    %v1693 = vpack.c.b16 %v1247, %v1246
    %v1694 = vpack.c.b16 %v1249, %v1248
    %v1695 = vpack.c.b16 %v1251, %v1250
    %v1696 = vpack.c.b16 %v1253, %v1252
    %v1697 = vpack.c.b16 %v1255, %v1254
    %v1698 = vpack.c.b16 %v1257, %v1256
    %v1699 = vpack.c.b16 %v1259, %v1258
    %v1700 = vpack.c.b16 %v1261, %v1260
    %v1701 = vpack.c.b16 %v1263, %v1262
    %v1702 = vpack.c.b16 %v1265, %v1264
    %v1703 = vpack.c.b16 %v1267, %v1266
    %v1704 = vpack.c.b16 %v1269, %v1268
    %v1705 = vpack.c.b16 %v1271, %v1270
    %v1706 = vpack.c.b16 %v1273, %v1272
    %v1707 = vpack.c.b16 %v1275, %v1274
    %v1708 = vpack.c.b16 %v1277, %v1276
    %v1709 = vpack.c.b16 %v1279, %v1278
    %v1710 = vpack.c.b16 %v1281, %v1280
    %v1711 = vpack.c.b16 %v1283, %v1282
    %v1712 = vpack.c.b16 %v1285, %v1284
    %v1713 = vpack.c.b16 %v1287, %v1286
    %v1714 = vpack.c.b16 %v1289, %v1288
    %v1715 = vpack.c.b16 %v1291, %v1290
    %v1716 = vpack.c.b16 %v1293, %v1292
    %v1717 = vpack.c.b16 %v1295, %v1294
    %v1718 = vpack.c.b16 %v1297, %v1296
    %v1719 = vpack.c.b16 %v1299, %v1298
    %v1720 = vpack.c.b16 %v1301, %v1300
    %v1721 = vpack.c.b16 %v1303, %v1302
    %v1722 = vpack.c.b16 %v1305, %v1304
    %v1723 = vpack.c.b16 %v1307, %v1306
    %v1724 = vpack.c.b16 %v1309, %v1308
    %v1725 = vpack.c.b16 %v1311, %v1310
    %v1726 = vpack.c.b16 %v1313, %v1312
    %v1727 = vpack.c.b16 %v1315, %v1314
    %v1728 = vpack.c.b16 %v1317, %v1316
    %v1729 = vpack.c.b16 %v1319, %v1318
    %v1730 = vpack.c.b16 %v1321, %v1320
    %v1731 = vpack.c.b16 %v1323, %v1322
    %v1732 = vpack.c.b16 %v1325, %v1324
    %v1733 = vpack.c.b16 %v1327, %v1326
    %v1734 = vpack.c.b16 %v1329, %v1328
    %v1735 = vpack.c.b16 %v1331, %v1330
    %v1736 = vpack.c.b16 %v1333, %v1332
    %v1737 = vpack.c.b16 %v1335, %v1334
    %v1738 = vpack.c.b16 %v1337, %v1336
    %v1739 = vpack.c.b16 %v1339, %v1338
    %v1740 = vpack.c.b16 %v1341, %v1340
    %v1741 = vpack.c.b16 %v1343, %v1342
    %v1742 = vpack.c.b16 %v1345, %v1344
    %v1743 = vpack.c.b16 %v1347, %v1346
    %v1744 = vpack.c.b16 %v1349, %v1348
    %v1745 = vpack.c.b16 %v1351, %v1350
    %v1746 = vpack.c.b16 %v1353, %v1352
    %v1747 = vpack.c.b16 %v1355, %v1354
    %v1748 = vpack.c.b16 %v1357, %v1356
    %v1749 = vpack.c.b16 %v1359, %v1358
    %v1750 = vpack.c.b16 %v1361, %v1360
    %v1751 = vpack.c.b16 %v1363, %v1362
    %v1752 = vpack.c.b16 %v1365, %v1364
    %v1753 = vpack.c.b16 %v1367, %v1366
    %v1754 = vpack.c.b16 %v1369, %v1368
    %v1755 = vpack.c.b16 %v1371, %v1370
    %v1756 = vpack.c.b16 %v1373, %v1372
    %v1757 = vpack.c.b16 %v1375, %v1374
    %v1758 = vpack.c.b16 %v1377, %v1376
    %v1759 = vpack.c.b16 %v1379, %v1378
    %v1760 = vpack.c.b16 %v1381, %v1380
    %v1761 = vpack.c.b16 %v1383, %v1382
    %v1762 = vpack.c.b16 %v1385, %v1384
    %v1763 = vpack.c.b16 %v1387, %v1386
    %v1764 = vpack.c.b16 %v1389, %v1388
    %v1765 = vpack.c.b16 %v1391, %v1390
    %v1766 = vpack.c.b16 %v1393, %v1392
    %v1767 = vpack.c.b16 %v1395, %v1394
    %v1768 = vpack.c.b16 %v1397, %v1396
    %v1769 = vpack.c.b16 %v1399, %v1398
    %v1770 = vpack.c.b16 %v1401, %v1400
    %v1771 = vpack.c.b16 %v1403, %v1402
    %v1772 = vpack.c.b16 %v1405, %v1404
    %v1773 = vpack.c.b16 %v1407, %v1406
    %v1774 = vpack.c.b16 %v1409, %v1408
    %v1775 = vpack.c.b16 %v1411, %v1410
    %v1776 = vpack.c.b16 %v1413, %v1412
    %v1777 = vpack.c.b16 %v1415, %v1414
    %v1778 = vpack.c.b16 %v1417, %v1416
    %v1779 = vpack.c.b16 %v1419, %v1418
    %v1780 = vpack.c.b16 %v1421, %v1420
    %v1781 = vpack.c.b16 %v1423, %v1422
    %v1782 = vpack.c.b16 %v1425, %v1424
    %v1783 = vpack.c.b16 %v1427, %v1426
    %v1784 = vpack.c.b16 %v1429, %v1428
    %v1785 = vpack.c.b16 %v1431, %v1430
    %v1786 = vpack.c.b16 %v1433, %v1432
    %v1787 = vpack.c.b16 %v1435, %v1434
    %v1788 = vpack.c.b16 %v1437, %v1436
    %v1789 = vpack.c.b16 %v1439, %v1438
    %v1790 = vpack.c.b16 %v1441, %v1440
    %v1791 = vpack.c.b16 %v1443, %v1442
    %v1792 = vpack.c.b16 %v1445, %v1444
    %v1793 = vpack.c.b16 %v1447, %v1446
    %v1794 = vpack.c.b16 %v1449, %v1448
    %v1795 = vpack.c.b16 %v1451, %v1450
    %v1796 = vpack.c.b16 %v1453, %v1452
    %v1797 = vpack.c.b16 %v1455, %v1454
    %v1798 = vpack.c.b16 %v1457, %v1456
    %v1799 = vpack.c.b16 %v1459, %v1458
    %v1800 = vpack.c.b16 %v1461, %v1460
    %v1801 = vpack.c.b16 %v1463, %v1462
    %v1802 = vpack.c.b16 %v1465, %v1464
    %v1803 = vpack.c.b16 %v1467, %v1466
    %v1804 = vpack.c.b16 %v1469, %v1468
    %v1805 = vpack.c.b16 %v1471, %v1470
    %v1806 = vpack.c.b16 %v1473, %v1472
    %v1807 = vpack.c.b16 %v1475, %v1474
    %v1808 = vpack.c.b16 %v1477, %v1476
    %v1809 = vpack.c.b16 %v1479, %v1478
    %v1810 = vpack.c.b16 %v1481, %v1480
    %v1811 = vpack.c.b16 %v1483, %v1482
    %v1812 = vpack.c.b16 %v1485, %v1484
    %v1813 = vpack.c.b16 %v1487, %v1486
    %v1814 = vpack.c.b16 %v1489, %v1488
    %v1815 = vpack.c.b16 %v1491, %v1490
    %v1816 = vpack.c.b16 %v1493, %v1492
    %v1817 = vpack.c.b16 %v1495, %v1494
    %v1818 = vpack.c.b16 %v1497, %v1496
    %v1819 = vpack.c.b16 %v1499, %v1498
    %v1820 = vpack.c.b16 %v1501, %v1500
    %v1821 = vpack.c.b16 %v1503, %v1502
    %v1822 = vpack.c.b16 %v1505, %v1504
    %v1823 = vpack.c.b16 %v1507, %v1506
    %v1824 = vpack.c.b16 %v1509, %v1508
    %v1825 = vpack.c.b16 %v1511, %v1510
    %v1826 = vpack.c.b16 %v1513, %v1512
    %v1827 = vpack.c.b16 %v1515, %v1514
    %v1828 = vpack.c.b16 %v1517, %v1516
    %v1829 = vpack.c.b16 %v1519, %v1518
    %v1830 = vpack.c.b16 %v1521, %v1520
    %v1831 = vpack.c.b16 %v1523, %v1522
    %v1832 = vpack.c.b16 %v1525, %v1524
    %v1833 = vpack.c.b16 %v1527, %v1526
    %v1834 = vpack.c.b16 %v1529, %v1528
    %v1835 = vpack.c.b16 %v1531, %v1530
    %v1836 = vpack.c.b16 %v1533, %v1532
    %v1837 = vpack.c.b16 %v1535, %v1534
    %v1838 = vpack.c.b16 %v1537, %v1536
    %v1839 = vpack.c.b16 %v1539, %v1538
    %v1840 = vpack.c.b16 %v1541, %v1540
    %v1841 = vpack.c.b16 %v1543, %v1542
    %v1842 = vpack.c.b16 %v1545, %v1544
    %v1843 = vpack.c.b16 %v1547, %v1546
    %v1844 = vpack.c.b16 %v1549, %v1548
    %v1845 = vpack.c.b16 %v1551, %v1550
    %v1846 = vpack.c.b16 %v1553, %v1552
    %v1847 = vpack.c.b16 %v1555, %v1554
    %v1848 = vpack.c.b16 %v1557, %v1556
    %v1849 = vpack.c.b16 %v1559, %v1558
    %v1850 = vpack.c.b16 %v1561, %v1560
    %v1851 = vpack.c.b16 %v1563, %v1562
    %v1852 = vpack.c.b16 %v1565, %v1564
    %v1853 = vpack.c.b16 %v1567, %v1566
    %v1854 = vpack.c.b16 %v1569, %v1568
    %v1855 = vpack.c.b16 %v1571, %v1570
    %v1856 = vpack.c.b16 %v1573, %v1572
    %v1857 = vpack.c.b16 %v1575, %v1574
    %v1858 = vpack.c.b16 %v1577, %v1576
    %v1859 = vpack.c.b16 %v1579, %v1578
    %v1860 = vpack.c.b16 %v1581, %v1580
    %v1861 = vpack.c.b16 %v1583, %v1582
    %v1862 = vpack.c.b16 %v1585, %v1584
    %v1863 = vpack.c.b16 %v1587, %v1586
    %v1864 = vpack.c.b16 %v1589, %v1588
    %v1865 = vpack.c.b16 %v1591, %v1590
    %v1866 = vpack.c.b16 %v1593, %v1592
    %v1867 = vpack.c.b16 %v1595, %v1594
    %v1868 = vpack.c.b16 %v1597, %v1596
    %v1869 = vpack.c.b16 %v1599, %v1598
    %v1870 = vpack.c.b16 %v1601, %v1600
    %v1871 = vpack.c.b16 %v1603, %v1602
    %v1872 = vpack.c.b16 %v1605, %v1604
    %v1873 = vpack.c.b16 %v1607, %v1606
    %v1874 = vpack.c.b16 %v1609, %v1608
    %v1875 = vpack.c.b16 %v1611, %v1610
    %v1876 = vpack.c.b16 %v1613, %v1612
    %v1877 = vpack.c.b16 %v1615, %v1614
    %v1878 = vpack.c.b16 %v1617, %v1616
    %v1879 = vpack.c.b16 %v1619, %v1618
    %v1880 = vpack.c.b16 %v1621, %v1620
    %v1881 = vpack.c.b16 %v1623, %v1622
    %v1882 = vpack.c.b16 %v1625, %v1624
    %v1883 = vpack.c.b16 %v1627, %v1626
    %v2156 = vunpack.c.l.b16 %v581
    %v2157 = vunpack.c.l.b16 %v582
    %v2158 = vunpack.c.l.b16 %v583
    %v2159 = vunpack.c.l.b16 %v584
    %v2160 = vunpack.c.l.b16 %v585
    %v2161 = vunpack.c.l.b16 %v586
    %v2162 = vunpack.c.l.b16 %v587
    %v2163 = vunpack.c.l.b16 %v588
    %v2164 = vunpack.c.l.b16 %v589
    %v2165 = vunpack.c.l.b16 %v590
    %v2166 = vunpack.c.l.b16 %v591
    %v2167 = vunpack.c.l.b16 %v592
    %v2168 = vunpack.c.l.b16 %v593
    %v2169 = vunpack.c.l.b16 %v594
    %v2170 = vunpack.c.l.b16 %v595
    %v2171 = vunpack.c.l.b16 %v596
    %v2172 = vpack.c.b16 %v2157, %v2156
    %v2173 = vpack.c.b16 %v2159, %v2158
    %v2174 = vpack.c.b16 %v2161, %v2160
    %v2175 = vpack.c.b16 %v2163, %v2162
    %v2176 = vpack.c.b16 %v2165, %v2164
    %v2177 = vpack.c.b16 %v2167, %v2166
    %v2178 = vpack.c.b16 %v2169, %v2168
    %v2179 = vpack.c.b16 %v2171, %v2170
    %2188 = vmatprep.subr.bf16.mxu0 0
    %2189 = vmatpush1.bf16.msra.mxu0 %v2179
    %2190 = vmatprep.subr.bf16.mxu0 0
    %2191 = vmatpush1.bf16.msra.mxu0 %v2178
    %2192 = vmatprep.subr.bf16.mxu0 0
    %2193 = vmatpush1.bf16.msra.mxu0 %v2177
    %2194 = vmatprep.subr.bf16.mxu0 0
    %2195 = vmatpush1.bf16.msra.mxu0 %v2176
    %2196 = vmatprep.subr.bf16.mxu0 0
    %2197 = vmatpush1.bf16.msra.mxu0 %v2175
    %2198 = vmatprep.subr.bf16.mxu0 0
    %2199 = vmatpush1.bf16.msra.mxu0 %v2174
    %2200 = vmatprep.subr.bf16.mxu0 0
    %2201 = vmatpush1.bf16.msra.mxu0 %v2173
    %2202 = vmatprep.subr.bf16.mxu0 0
    %2203 = vmatpush1.bf16.msra.mxu0 %v2172
    %2204 = vmatprep.subr.bf16.mxu0 0
    %2205 = vmatpush2.bf16.msra.mxu0 0
    %2206 = vmatprep.subr.bf16.mxu0 0
    %2207 = vmatpush2.bf16.msra.mxu0 0
    %2208 = vmatprep.subr.bf16.mxu0 0
    %2209 = vmatpush2.bf16.msra.mxu0 0
    %2210 = vmatprep.subr.bf16.mxu0 0
    %2211 = vmatpush2.bf16.msra.mxu0 0
    %2212 = vmatprep.subr.bf16.mxu0 0
    %2213 = vmatpush2.bf16.msra.mxu0 0
    %2214 = vmatprep.subr.bf16.mxu0 0
    %2215 = vmatpush2.bf16.msra.mxu0 0
    %2216 = vmatprep.subr.bf16.mxu0 0
    %2217 = vmatpush2.bf16.msra.mxu0 0
    %2218 = vmatprep.subr.bf16.mxu0 0
    %2219 = vmatpush2.bf16.msra.mxu0 0
    %2220 = vmatprep.mubr.bf16.mxu0 0
    %2221 = vmatmul.mubr.bf16.gmra.mxu0 %v1628
    %v2222 = vpop.f32.mrf.mxu0
    %v2223 = vadd.f32 %v602, %v2222
    %v2224 = vpop.f32.mrf.mxu0
    %v2225 = vpop.f32.mrf.mxu0
    %v2226 = vadd.f32 %v602, %v2225
    %v2227 = vpop.f32.mrf.mxu0
    %2228 = vmatprep.mubr.bf16.mxu0 0
    %2229 = vmatmul.mubr.bf16.gmra.mxu0 %v1629
    %v2230 = vpop.f32.mrf.mxu0
    %v2231 = vadd.f32 %v602, %v2230
    %v2232 = vpop.f32.mrf.mxu0
    %v2233 = vpop.f32.mrf.mxu0
    %v2234 = vadd.f32 %v602, %v2233
    %v2235 = vpop.f32.mrf.mxu0
    %2236 = vmatprep.mubr.bf16.mxu0 0
    %2237 = vmatmul.mubr.bf16.gmra.mxu0 %v1630
    %v2238 = vpop.f32.mrf.mxu0
    %v2239 = vadd.f32 %v602, %v2238
    %v2240 = vpop.f32.mrf.mxu0
    %v2241 = vpop.f32.mrf.mxu0
    %v2242 = vadd.f32 %v602, %v2241
    %v2243 = vpop.f32.mrf.mxu0
    %2244 = vmatprep.mubr.bf16.mxu0 0
    %2245 = vmatmul.mubr.bf16.gmra.mxu0 %v1631
    %v2246 = vpop.f32.mrf.mxu0
    %v2247 = vadd.f32 %v602, %v2246
    %v2248 = vpop.f32.mrf.mxu0
    %v2249 = vpop.f32.mrf.mxu0
    %v2250 = vadd.f32 %v602, %v2249
    %v2251 = vpop.f32.mrf.mxu0
    %2252 = vmatprep.mubr.bf16.mxu0 0
    %2253 = vmatmul.mubr.bf16.gmra.mxu0 %v1632
    %v2254 = vpop.f32.mrf.mxu0
    %v2255 = vadd.f32 %v602, %v2254
    %v2256 = vpop.f32.mrf.mxu0
    %v2257 = vpop.f32.mrf.mxu0
    %v2258 = vadd.f32 %v602, %v2257
    %v2259 = vpop.f32.mrf.mxu0
    %2260 = vmatprep.mubr.bf16.mxu0 0
    %2261 = vmatmul.mubr.bf16.gmra.mxu0 %v1633
    %v2262 = vpop.f32.mrf.mxu0
    %v2263 = vadd.f32 %v602, %v2262
    %v2264 = vpop.f32.mrf.mxu0
    %v2265 = vpop.f32.mrf.mxu0
    %v2266 = vadd.f32 %v602, %v2265
    %v2267 = vpop.f32.mrf.mxu0
    %2268 = vmatprep.mubr.bf16.mxu0 0
    %2269 = vmatmul.mubr.bf16.gmra.mxu0 %v1634
    %v2270 = vpop.f32.mrf.mxu0
    %v2271 = vadd.f32 %v602, %v2270
    %v2272 = vpop.f32.mrf.mxu0
    %v2273 = vpop.f32.mrf.mxu0
    %v2274 = vadd.f32 %v602, %v2273
    %v2275 = vpop.f32.mrf.mxu0
    %2276 = vmatprep.mubr.bf16.mxu0 0
    %2277 = vmatmul.mubr.bf16.gmra.mxu0 %v1635
    %v2278 = vpop.f32.mrf.mxu0
    %v2279 = vadd.f32 %v602, %v2278
    %v2280 = vpop.f32.mrf.mxu0
    %v2281 = vpop.f32.mrf.mxu0
    %v2282 = vadd.f32 %v602, %v2281
    %v2283 = vpop.f32.mrf.mxu0
    %2284 = vmatprep.mubr.bf16.mxu0 0
    %2285 = vmatmul.mubr.bf16.gmra.mxu0 %v1636
    %v2286 = vpop.f32.mrf.mxu0
    %v2287 = vadd.f32 %v602, %v2286
    %v2288 = vpop.f32.mrf.mxu0
    %v2289 = vpop.f32.mrf.mxu0
    %v2290 = vadd.f32 %v602, %v2289
    %v2291 = vpop.f32.mrf.mxu0
    %2292 = vmatprep.mubr.bf16.mxu0 0
    %2293 = vmatmul.mubr.bf16.gmra.mxu0 %v1637
    %v2294 = vpop.f32.mrf.mxu0
    %v2295 = vadd.f32 %v602, %v2294
    %v2296 = vpop.f32.mrf.mxu0
    %v2297 = vpop.f32.mrf.mxu0
    %v2298 = vadd.f32 %v602, %v2297
    %v2299 = vpop.f32.mrf.mxu0
    %2300 = vmatprep.mubr.bf16.mxu0 0
    %2301 = vmatmul.mubr.bf16.gmra.mxu0 %v1638
    %v2302 = vpop.f32.mrf.mxu0
    %v2303 = vadd.f32 %v602, %v2302
    %v2304 = vpop.f32.mrf.mxu0
    %v2305 = vpop.f32.mrf.mxu0
    %v2306 = vadd.f32 %v602, %v2305
    %v2307 = vpop.f32.mrf.mxu0
    %2308 = vmatprep.mubr.bf16.mxu0 0
    %2309 = vmatmul.mubr.bf16.gmra.mxu0 %v1639
    %v2310 = vpop.f32.mrf.mxu0
    %v2311 = vadd.f32 %v602, %v2310
    %v2312 = vpop.f32.mrf.mxu0
    %v2313 = vpop.f32.mrf.mxu0
    %v2314 = vadd.f32 %v602, %v2313
    %v2315 = vpop.f32.mrf.mxu0
    %2316 = vmatprep.mubr.bf16.mxu0 0
    %2317 = vmatmul.mubr.bf16.gmra.mxu0 %v1640
    %v2318 = vpop.f32.mrf.mxu0
    %v2319 = vadd.f32 %v602, %v2318
    %v2320 = vpop.f32.mrf.mxu0
    %v2321 = vpop.f32.mrf.mxu0
    %v2322 = vadd.f32 %v602, %v2321
    %v2323 = vpop.f32.mrf.mxu0
    %2324 = vmatprep.mubr.bf16.mxu0 0
    %2325 = vmatmul.mubr.bf16.gmra.mxu0 %v1641
    %v2326 = vpop.f32.mrf.mxu0
    %v2327 = vadd.f32 %v602, %v2326
    %v2328 = vpop.f32.mrf.mxu0
    %v2329 = vpop.f32.mrf.mxu0
    %v2330 = vadd.f32 %v602, %v2329
    %v2331 = vpop.f32.mrf.mxu0
    %2332 = vmatprep.mubr.bf16.mxu0 0
    %2333 = vmatmul.mubr.bf16.gmra.mxu0 %v1642
    %v2334 = vpop.f32.mrf.mxu0
    %v2335 = vadd.f32 %v602, %v2334
    %v2336 = vpop.f32.mrf.mxu0
    %v2337 = vpop.f32.mrf.mxu0
    %v2338 = vadd.f32 %v602, %v2337
    %v2339 = vpop.f32.mrf.mxu0
    %2340 = vmatprep.mubr.bf16.mxu0 0
    %2341 = vmatmul.mubr.bf16.gmra.mxu0 %v1643
    %v2342 = vpop.f32.mrf.mxu0
    %v2343 = vadd.f32 %v602, %v2342
    %v2344 = vpop.f32.mrf.mxu0
    %v2345 = vpop.f32.mrf.mxu0
    %v2346 = vadd.f32 %v602, %v2345
    %v2347 = vpop.f32.mrf.mxu0
    %2348 = vmatprep.mubr.bf16.mxu0 0
    %2349 = vmatmul.mubr.bf16.gmra.mxu0 %v1644
    %v2350 = vpop.f32.mrf.mxu0
    %v2351 = vadd.f32 %v602, %v2350
    %v2352 = vpop.f32.mrf.mxu0
    %v2353 = vpop.f32.mrf.mxu0
    %v2354 = vadd.f32 %v602, %v2353
    %v2355 = vpop.f32.mrf.mxu0
    %2356 = vmatprep.mubr.bf16.mxu0 0
    %2357 = vmatmul.mubr.bf16.gmra.mxu0 %v1645
    %v2358 = vpop.f32.mrf.mxu0
    %v2359 = vadd.f32 %v602, %v2358
    %v2360 = vpop.f32.mrf.mxu0
    %v2361 = vpop.f32.mrf.mxu0
    %v2362 = vadd.f32 %v602, %v2361
    %v2363 = vpop.f32.mrf.mxu0
    %2364 = vmatprep.mubr.bf16.mxu0 0
    %2365 = vmatmul.mubr.bf16.gmra.mxu0 %v1646
    %v2366 = vpop.f32.mrf.mxu0
    %v2367 = vadd.f32 %v602, %v2366
    %v2368 = vpop.f32.mrf.mxu0
    %v2369 = vpop.f32.mrf.mxu0
    %v2370 = vadd.f32 %v602, %v2369
    %v2371 = vpop.f32.mrf.mxu0
    %2372 = vmatprep.mubr.bf16.mxu0 0
    %2373 = vmatmul.mubr.bf16.gmra.mxu0 %v1647
    %v2374 = vpop.f32.mrf.mxu0
    %v2375 = vadd.f32 %v602, %v2374
    %v2376 = vpop.f32.mrf.mxu0
    %v2377 = vpop.f32.mrf.mxu0
    %v2378 = vadd.f32 %v602, %v2377
    %v2379 = vpop.f32.mrf.mxu0
    %2380 = vmatprep.mubr.bf16.mxu0 0
    %2381 = vmatmul.mubr.bf16.gmra.mxu0 %v1648
    %v2382 = vpop.f32.mrf.mxu0
    %v2383 = vadd.f32 %v602, %v2382
    %v2384 = vpop.f32.mrf.mxu0
    %v2385 = vpop.f32.mrf.mxu0
    %v2386 = vadd.f32 %v602, %v2385
    %v2387 = vpop.f32.mrf.mxu0
    %2388 = vmatprep.mubr.bf16.mxu0 0
    %2389 = vmatmul.mubr.bf16.gmra.mxu0 %v1649
    %v2390 = vpop.f32.mrf.mxu0
    %v2391 = vadd.f32 %v602, %v2390
    %v2392 = vpop.f32.mrf.mxu0
    %v2393 = vpop.f32.mrf.mxu0
    %v2394 = vadd.f32 %v602, %v2393
    %v2395 = vpop.f32.mrf.mxu0
    %2396 = vmatprep.mubr.bf16.mxu0 0
    %2397 = vmatmul.mubr.bf16.gmra.mxu0 %v1650
    %v2398 = vpop.f32.mrf.mxu0
    %v2399 = vadd.f32 %v602, %v2398
    %v2400 = vpop.f32.mrf.mxu0
    %v2401 = vpop.f32.mrf.mxu0
    %v2402 = vadd.f32 %v602, %v2401
    %v2403 = vpop.f32.mrf.mxu0
    %2404 = vmatprep.mubr.bf16.mxu0 0
    %2405 = vmatmul.mubr.bf16.gmra.mxu0 %v1651
    %v2406 = vpop.f32.mrf.mxu0
    %v2407 = vadd.f32 %v602, %v2406
    %v2408 = vpop.f32.mrf.mxu0
    %v2409 = vpop.f32.mrf.mxu0
    %v2410 = vadd.f32 %v602, %v2409
    %v2411 = vpop.f32.mrf.mxu0
    %2412 = vmatprep.mubr.bf16.mxu0 0
    %2413 = vmatmul.mubr.bf16.gmra.mxu0 %v1652
    %v2414 = vpop.f32.mrf.mxu0
    %v2415 = vadd.f32 %v602, %v2414
    %v2416 = vpop.f32.mrf.mxu0
    %v2417 = vpop.f32.mrf.mxu0
    %v2418 = vadd.f32 %v602, %v2417
    %v2419 = vpop.f32.mrf.mxu0
    %2420 = vmatprep.mubr.bf16.mxu0 0
    %2421 = vmatmul.mubr.bf16.gmra.mxu0 %v1653
    %v2422 = vpop.f32.mrf.mxu0
    %v2423 = vadd.f32 %v602, %v2422
    %v2424 = vpop.f32.mrf.mxu0
    %v2425 = vpop.f32.mrf.mxu0
    %v2426 = vadd.f32 %v602, %v2425
    %v2427 = vpop.f32.mrf.mxu0
    %2428 = vmatprep.mubr.bf16.mxu0 0
    %2429 = vmatmul.mubr.bf16.gmra.mxu0 %v1654
    %v2430 = vpop.f32.mrf.mxu0
    %v2431 = vadd.f32 %v602, %v2430
    %v2432 = vpop.f32.mrf.mxu0
    %v2433 = vpop.f32.mrf.mxu0
    %v2434 = vadd.f32 %v602, %v2433
    %v2435 = vpop.f32.mrf.mxu0
    %2436 = vmatprep.mubr.bf16.mxu0 0
    %2437 = vmatmul.mubr.bf16.gmra.mxu0 %v1655
    %v2438 = vpop.f32.mrf.mxu0
    %v2439 = vadd.f32 %v602, %v2438
    %v2440 = vpop.f32.mrf.mxu0
    %v2441 = vpop.f32.mrf.mxu0
    %v2442 = vadd.f32 %v602, %v2441
    %v2443 = vpop.f32.mrf.mxu0
    %2444 = vmatprep.mubr.bf16.mxu0 0
    %2445 = vmatmul.mubr.bf16.gmra.mxu0 %v1656
    %v2446 = vpop.f32.mrf.mxu0
    %v2447 = vadd.f32 %v602, %v2446
    %v2448 = vpop.f32.mrf.mxu0
    %v2449 = vpop.f32.mrf.mxu0
    %v2450 = vadd.f32 %v602, %v2449
    %v2451 = vpop.f32.mrf.mxu0
    %2452 = vmatprep.mubr.bf16.mxu0 0
    %2453 = vmatmul.mubr.bf16.gmra.mxu0 %v1657
    %v2454 = vpop.f32.mrf.mxu0
    %v2455 = vadd.f32 %v602, %v2454
    %v2456 = vpop.f32.mrf.mxu0
    %v2457 = vpop.f32.mrf.mxu0
    %v2458 = vadd.f32 %v602, %v2457
    %v2459 = vpop.f32.mrf.mxu0
    %2460 = vmatprep.mubr.bf16.mxu0 0
    %2461 = vmatmul.mubr.bf16.gmra.mxu0 %v1658
    %v2462 = vpop.f32.mrf.mxu0
    %v2463 = vadd.f32 %v602, %v2462
    %v2464 = vpop.f32.mrf.mxu0
    %v2465 = vpop.f32.mrf.mxu0
    %v2466 = vadd.f32 %v602, %v2465
    %v2467 = vpop.f32.mrf.mxu0
    %2468 = vmatprep.mubr.bf16.mxu0 0
    %2469 = vmatmul.mubr.bf16.gmra.mxu0 %v1659
    %v2470 = vpop.f32.mrf.mxu0
    %v2471 = vadd.f32 %v602, %v2470
    %v2472 = vpop.f32.mrf.mxu0
    %v2473 = vpop.f32.mrf.mxu0
    %v2474 = vadd.f32 %v602, %v2473
    %v2475 = vpop.f32.mrf.mxu0
    %2476 = vmatprep.mubr.bf16.mxu0 0
    %2477 = vmatmul.mubr.bf16.gmra.mxu0 %v1660
    %v2478 = vpop.f32.mrf.mxu0
    %v2479 = vadd.f32 %v602, %v2478
    %v2480 = vpop.f32.mrf.mxu0
    %v2481 = vpop.f32.mrf.mxu0
    %v2482 = vadd.f32 %v602, %v2481
    %v2483 = vpop.f32.mrf.mxu0
    %2484 = vmatprep.mubr.bf16.mxu0 0
    %2485 = vmatmul.mubr.bf16.gmra.mxu0 %v1661
    %v2486 = vpop.f32.mrf.mxu0
    %v2487 = vadd.f32 %v602, %v2486
    %v2488 = vpop.f32.mrf.mxu0
    %v2489 = vpop.f32.mrf.mxu0
    %v2490 = vadd.f32 %v602, %v2489
    %v2491 = vpop.f32.mrf.mxu0
    %2492 = vmatprep.mubr.bf16.mxu0 0
    %2493 = vmatmul.mubr.bf16.gmra.mxu0 %v1662
    %v2494 = vpop.f32.mrf.mxu0
    %v2495 = vadd.f32 %v602, %v2494
    %v2496 = vpop.f32.mrf.mxu0
    %v2497 = vpop.f32.mrf.mxu0
    %v2498 = vadd.f32 %v602, %v2497
    %v2499 = vpop.f32.mrf.mxu0
    %2500 = vmatprep.mubr.bf16.mxu0 0
    %2501 = vmatmul.mubr.bf16.gmra.mxu0 %v1663
    %v2502 = vpop.f32.mrf.mxu0
    %v2503 = vadd.f32 %v602, %v2502
    %v2504 = vpop.f32.mrf.mxu0
    %v2505 = vpop.f32.mrf.mxu0
    %v2506 = vadd.f32 %v602, %v2505
    %v2507 = vpop.f32.mrf.mxu0
    %2508 = vmatprep.mubr.bf16.mxu0 0
    %2509 = vmatmul.mubr.bf16.gmra.mxu0 %v1664
    %v2510 = vpop.f32.mrf.mxu0
    %v2511 = vadd.f32 %v602, %v2510
    %v2512 = vpop.f32.mrf.mxu0
    %v2513 = vpop.f32.mrf.mxu0
    %v2514 = vadd.f32 %v602, %v2513
    %v2515 = vpop.f32.mrf.mxu0
    %2516 = vmatprep.mubr.bf16.mxu0 0
    %2517 = vmatmul.mubr.bf16.gmra.mxu0 %v1665
    %v2518 = vpop.f32.mrf.mxu0
    %v2519 = vadd.f32 %v602, %v2518
    %v2520 = vpop.f32.mrf.mxu0
    %v2521 = vpop.f32.mrf.mxu0
    %v2522 = vadd.f32 %v602, %v2521
    %v2523 = vpop.f32.mrf.mxu0
    %2524 = vmatprep.mubr.bf16.mxu0 0
    %2525 = vmatmul.mubr.bf16.gmra.mxu0 %v1666
    %v2526 = vpop.f32.mrf.mxu0
    %v2527 = vadd.f32 %v602, %v2526
    %v2528 = vpop.f32.mrf.mxu0
    %v2529 = vpop.f32.mrf.mxu0
    %v2530 = vadd.f32 %v602, %v2529
    %v2531 = vpop.f32.mrf.mxu0
    %2532 = vmatprep.mubr.bf16.mxu0 0
    %2533 = vmatmul.mubr.bf16.gmra.mxu0 %v1667
    %v2534 = vpop.f32.mrf.mxu0
    %v2535 = vadd.f32 %v602, %v2534
    %v2536 = vpop.f32.mrf.mxu0
    %v2537 = vpop.f32.mrf.mxu0
    %v2538 = vadd.f32 %v602, %v2537
    %v2539 = vpop.f32.mrf.mxu0
    %2540 = vmatprep.mubr.bf16.mxu0 0
    %2541 = vmatmul.mubr.bf16.gmra.mxu0 %v1668
    %v2542 = vpop.f32.mrf.mxu0
    %v2543 = vadd.f32 %v602, %v2542
    %v2544 = vpop.f32.mrf.mxu0
    %v2545 = vpop.f32.mrf.mxu0
    %v2546 = vadd.f32 %v602, %v2545
    %v2547 = vpop.f32.mrf.mxu0
    %2548 = vmatprep.mubr.bf16.mxu0 0
    %2549 = vmatmul.mubr.bf16.gmra.mxu0 %v1669
    %v2550 = vpop.f32.mrf.mxu0
    %v2551 = vadd.f32 %v602, %v2550
    %v2552 = vpop.f32.mrf.mxu0
    %v2553 = vpop.f32.mrf.mxu0
    %v2554 = vadd.f32 %v602, %v2553
    %v2555 = vpop.f32.mrf.mxu0
    %2556 = vmatprep.mubr.bf16.mxu0 0
    %2557 = vmatmul.mubr.bf16.gmra.mxu0 %v1670
    %v2558 = vpop.f32.mrf.mxu0
    %v2559 = vadd.f32 %v602, %v2558
    %v2560 = vpop.f32.mrf.mxu0
    %v2561 = vpop.f32.mrf.mxu0
    %v2562 = vadd.f32 %v602, %v2561
    %v2563 = vpop.f32.mrf.mxu0
    %2564 = vmatprep.mubr.bf16.mxu0 0
    %2565 = vmatmul.mubr.bf16.gmra.mxu0 %v1671
    %v2566 = vpop.f32.mrf.mxu0
    %v2567 = vadd.f32 %v602, %v2566
    %v2568 = vpop.f32.mrf.mxu0
    %v2569 = vpop.f32.mrf.mxu0
    %v2570 = vadd.f32 %v602, %v2569
    %v2571 = vpop.f32.mrf.mxu0
    %2572 = vmatprep.mubr.bf16.mxu0 0
    %2573 = vmatmul.mubr.bf16.gmra.mxu0 %v1672
    %v2574 = vpop.f32.mrf.mxu0
    %v2575 = vadd.f32 %v602, %v2574
    %v2576 = vpop.f32.mrf.mxu0
    %v2577 = vpop.f32.mrf.mxu0
    %v2578 = vadd.f32 %v602, %v2577
    %v2579 = vpop.f32.mrf.mxu0
    %2580 = vmatprep.mubr.bf16.mxu0 0
    %2581 = vmatmul.mubr.bf16.gmra.mxu0 %v1673
    %v2582 = vpop.f32.mrf.mxu0
    %v2583 = vadd.f32 %v602, %v2582
    %v2584 = vpop.f32.mrf.mxu0
    %v2585 = vpop.f32.mrf.mxu0
    %v2586 = vadd.f32 %v602, %v2585
    %v2587 = vpop.f32.mrf.mxu0
    %2588 = vmatprep.mubr.bf16.mxu0 0
    %2589 = vmatmul.mubr.bf16.gmra.mxu0 %v1674
    %v2590 = vpop.f32.mrf.mxu0
    %v2591 = vadd.f32 %v602, %v2590
    %v2592 = vpop.f32.mrf.mxu0
    %v2593 = vpop.f32.mrf.mxu0
    %v2594 = vadd.f32 %v602, %v2593
    %v2595 = vpop.f32.mrf.mxu0
    %2596 = vmatprep.mubr.bf16.mxu0 0
    %2597 = vmatmul.mubr.bf16.gmra.mxu0 %v1675
    %v2598 = vpop.f32.mrf.mxu0
    %v2599 = vadd.f32 %v602, %v2598
    %v2600 = vpop.f32.mrf.mxu0
    %v2601 = vpop.f32.mrf.mxu0
    %v2602 = vadd.f32 %v602, %v2601
    %v2603 = vpop.f32.mrf.mxu0
    %2604 = vmatprep.mubr.bf16.mxu0 0
    %2605 = vmatmul.mubr.bf16.gmra.mxu0 %v1676
    %v2606 = vpop.f32.mrf.mxu0
    %v2607 = vadd.f32 %v602, %v2606
    %v2608 = vpop.f32.mrf.mxu0
    %v2609 = vpop.f32.mrf.mxu0
    %v2610 = vadd.f32 %v602, %v2609
    %v2611 = vpop.f32.mrf.mxu0
    %2612 = vmatprep.mubr.bf16.mxu0 0
    %2613 = vmatmul.mubr.bf16.gmra.mxu0 %v1677
    %v2614 = vpop.f32.mrf.mxu0
    %v2615 = vadd.f32 %v602, %v2614
    %v2616 = vpop.f32.mrf.mxu0
    %v2617 = vpop.f32.mrf.mxu0
    %v2618 = vadd.f32 %v602, %v2617
    %v2619 = vpop.f32.mrf.mxu0
    %2620 = vmatprep.mubr.bf16.mxu0 0
    %2621 = vmatmul.mubr.bf16.gmra.mxu0 %v1678
    %v2622 = vpop.f32.mrf.mxu0
    %v2623 = vadd.f32 %v602, %v2622
    %v2624 = vpop.f32.mrf.mxu0
    %v2625 = vpop.f32.mrf.mxu0
    %v2626 = vadd.f32 %v602, %v2625
    %v2627 = vpop.f32.mrf.mxu0
    %2628 = vmatprep.mubr.bf16.mxu0 0
    %2629 = vmatmul.mubr.bf16.gmra.mxu0 %v1679
    %v2630 = vpop.f32.mrf.mxu0
    %v2631 = vadd.f32 %v602, %v2630
    %v2632 = vpop.f32.mrf.mxu0
    %v2633 = vpop.f32.mrf.mxu0
    %v2634 = vadd.f32 %v602, %v2633
    %v2635 = vpop.f32.mrf.mxu0
    %2636 = vmatprep.mubr.bf16.mxu0 0
    %2637 = vmatmul.mubr.bf16.gmra.mxu0 %v1680
    %v2638 = vpop.f32.mrf.mxu0
    %v2639 = vadd.f32 %v602, %v2638
    %v2640 = vpop.f32.mrf.mxu0
    %v2641 = vpop.f32.mrf.mxu0
    %v2642 = vadd.f32 %v602, %v2641
    %v2643 = vpop.f32.mrf.mxu0
    %2644 = vmatprep.mubr.bf16.mxu0 0
    %2645 = vmatmul.mubr.bf16.gmra.mxu0 %v1681
    %v2646 = vpop.f32.mrf.mxu0
    %v2647 = vadd.f32 %v602, %v2646
    %v2648 = vpop.f32.mrf.mxu0
    %v2649 = vpop.f32.mrf.mxu0
    %v2650 = vadd.f32 %v602, %v2649
    %v2651 = vpop.f32.mrf.mxu0
    %2652 = vmatprep.mubr.bf16.mxu0 0
    %2653 = vmatmul.mubr.bf16.gmra.mxu0 %v1682
    %v2654 = vpop.f32.mrf.mxu0
    %v2655 = vadd.f32 %v602, %v2654
    %v2656 = vpop.f32.mrf.mxu0
    %v2657 = vpop.f32.mrf.mxu0
    %v2658 = vadd.f32 %v602, %v2657
    %v2659 = vpop.f32.mrf.mxu0
    %2660 = vmatprep.mubr.bf16.mxu0 0
    %2661 = vmatmul.mubr.bf16.gmra.mxu0 %v1683
    %v2662 = vpop.f32.mrf.mxu0
    %v2663 = vadd.f32 %v602, %v2662
    %v2664 = vpop.f32.mrf.mxu0
    %v2665 = vpop.f32.mrf.mxu0
    %v2666 = vadd.f32 %v602, %v2665
    %v2667 = vpop.f32.mrf.mxu0
    %2668 = vmatprep.mubr.bf16.mxu0 0
    %2669 = vmatmul.mubr.bf16.gmra.mxu0 %v1684
    %v2670 = vpop.f32.mrf.mxu0
    %v2671 = vadd.f32 %v602, %v2670
    %v2672 = vpop.f32.mrf.mxu0
    %v2673 = vpop.f32.mrf.mxu0
    %v2674 = vadd.f32 %v602, %v2673
    %v2675 = vpop.f32.mrf.mxu0
    %2676 = vmatprep.mubr.bf16.mxu0 0
    %2677 = vmatmul.mubr.bf16.gmra.mxu0 %v1685
    %v2678 = vpop.f32.mrf.mxu0
    %v2679 = vadd.f32 %v602, %v2678
    %v2680 = vpop.f32.mrf.mxu0
    %v2681 = vpop.f32.mrf.mxu0
    %v2682 = vadd.f32 %v602, %v2681
    %v2683 = vpop.f32.mrf.mxu0
    %2684 = vmatprep.mubr.bf16.mxu0 0
    %2685 = vmatmul.mubr.bf16.gmra.mxu0 %v1686
    %v2686 = vpop.f32.mrf.mxu0
    %v2687 = vadd.f32 %v602, %v2686
    %v2688 = vpop.f32.mrf.mxu0
    %v2689 = vpop.f32.mrf.mxu0
    %v2690 = vadd.f32 %v602, %v2689
    %v2691 = vpop.f32.mrf.mxu0
    %2692 = vmatprep.mubr.bf16.mxu0 0
    %2693 = vmatmul.mubr.bf16.gmra.mxu0 %v1687
    %v2694 = vpop.f32.mrf.mxu0
    %v2695 = vadd.f32 %v602, %v2694
    %v2696 = vpop.f32.mrf.mxu0
    %v2697 = vpop.f32.mrf.mxu0
    %v2698 = vadd.f32 %v602, %v2697
    %v2699 = vpop.f32.mrf.mxu0
    %2700 = vmatprep.mubr.bf16.mxu0 0
    %2701 = vmatmul.mubr.bf16.gmra.mxu0 %v1688
    %v2702 = vpop.f32.mrf.mxu0
    %v2703 = vadd.f32 %v602, %v2702
    %v2704 = vpop.f32.mrf.mxu0
    %v2705 = vpop.f32.mrf.mxu0
    %v2706 = vadd.f32 %v602, %v2705
    %v2707 = vpop.f32.mrf.mxu0
    %2708 = vmatprep.mubr.bf16.mxu0 0
    %2709 = vmatmul.mubr.bf16.gmra.mxu0 %v1689
    %v2710 = vpop.f32.mrf.mxu0
    %v2711 = vadd.f32 %v602, %v2710
    %v2712 = vpop.f32.mrf.mxu0
    %v2713 = vpop.f32.mrf.mxu0
    %v2714 = vadd.f32 %v602, %v2713
    %v2715 = vpop.f32.mrf.mxu0
    %2716 = vmatprep.mubr.bf16.mxu0 0
    %2717 = vmatmul.mubr.bf16.gmra.mxu0 %v1690
    %v2718 = vpop.f32.mrf.mxu0
    %v2719 = vadd.f32 %v602, %v2718
    %v2720 = vpop.f32.mrf.mxu0
    %v2721 = vpop.f32.mrf.mxu0
    %v2722 = vadd.f32 %v602, %v2721
    %v2723 = vpop.f32.mrf.mxu0
    %2724 = vmatprep.mubr.bf16.mxu0 0
    %2725 = vmatmul.mubr.bf16.gmra.mxu0 %v1691
    %v2726 = vpop.f32.mrf.mxu0
    %v2727 = vadd.f32 %v602, %v2726
    %v2728 = vpop.f32.mrf.mxu0
    %v2729 = vpop.f32.mrf.mxu0
    %v2730 = vadd.f32 %v602, %v2729
    %v2731 = vpop.f32.mrf.mxu0
    %2732 = vmatprep.mubr.bf16.mxu0 0
    %2733 = vmatmul.mubr.bf16.gmra.mxu0 %v1692
    %v2734 = vpop.f32.mrf.mxu0
    %v2735 = vadd.f32 %v602, %v2734
    %v2736 = vpop.f32.mrf.mxu0
    %v2737 = vpop.f32.mrf.mxu0
    %v2738 = vadd.f32 %v602, %v2737
    %v2739 = vpop.f32.mrf.mxu0
    %2740 = vmatprep.mubr.bf16.mxu0 0
    %2741 = vmatmul.mubr.bf16.gmra.mxu0 %v1693
    %v2742 = vpop.f32.mrf.mxu0
    %v2743 = vadd.f32 %v602, %v2742
    %v2744 = vpop.f32.mrf.mxu0
    %v2745 = vpop.f32.mrf.mxu0
    %v2746 = vadd.f32 %v602, %v2745
    %v2747 = vpop.f32.mrf.mxu0
    %2748 = vmatprep.mubr.bf16.mxu0 0
    %2749 = vmatmul.mubr.bf16.gmra.mxu0 %v1694
    %v2750 = vpop.f32.mrf.mxu0
    %v2751 = vadd.f32 %v602, %v2750
    %v2752 = vpop.f32.mrf.mxu0
    %v2753 = vpop.f32.mrf.mxu0
    %v2754 = vadd.f32 %v602, %v2753
    %v2755 = vpop.f32.mrf.mxu0
    %2756 = vmatprep.mubr.bf16.mxu0 0
    %2757 = vmatmul.mubr.bf16.gmra.mxu0 %v1695
    %v2758 = vpop.f32.mrf.mxu0
    %v2759 = vadd.f32 %v602, %v2758
    %v2760 = vpop.f32.mrf.mxu0
    %v2761 = vpop.f32.mrf.mxu0
    %v2762 = vadd.f32 %v602, %v2761
    %v2763 = vpop.f32.mrf.mxu0
    %2764 = vmatprep.mubr.bf16.mxu0 0
    %2765 = vmatmul.mubr.bf16.gmra.mxu0 %v1696
    %v2766 = vpop.f32.mrf.mxu0
    %v2767 = vadd.f32 %v602, %v2766
    %v2768 = vpop.f32.mrf.mxu0
    %v2769 = vpop.f32.mrf.mxu0
    %v2770 = vadd.f32 %v602, %v2769
    %v2771 = vpop.f32.mrf.mxu0
    %2772 = vmatprep.mubr.bf16.mxu0 0
    %2773 = vmatmul.mubr.bf16.gmra.mxu0 %v1697
    %v2774 = vpop.f32.mrf.mxu0
    %v2775 = vadd.f32 %v602, %v2774
    %v2776 = vpop.f32.mrf.mxu0
    %v2777 = vpop.f32.mrf.mxu0
    %v2778 = vadd.f32 %v602, %v2777
    %v2779 = vpop.f32.mrf.mxu0
    %2780 = vmatprep.mubr.bf16.mxu0 0
    %2781 = vmatmul.mubr.bf16.gmra.mxu0 %v1698
    %v2782 = vpop.f32.mrf.mxu0
    %v2783 = vadd.f32 %v602, %v2782
    %v2784 = vpop.f32.mrf.mxu0
    %v2785 = vpop.f32.mrf.mxu0
    %v2786 = vadd.f32 %v602, %v2785
    %v2787 = vpop.f32.mrf.mxu0
    %2788 = vmatprep.mubr.bf16.mxu0 0
    %2789 = vmatmul.mubr.bf16.gmra.mxu0 %v1699
    %v2790 = vpop.f32.mrf.mxu0
    %v2791 = vadd.f32 %v602, %v2790
    %v2792 = vpop.f32.mrf.mxu0
    %v2793 = vpop.f32.mrf.mxu0
    %v2794 = vadd.f32 %v602, %v2793
    %v2795 = vpop.f32.mrf.mxu0
    %2796 = vmatprep.mubr.bf16.mxu0 0
    %2797 = vmatmul.mubr.bf16.gmra.mxu0 %v1700
    %v2798 = vpop.f32.mrf.mxu0
    %v2799 = vadd.f32 %v602, %v2798
    %v2800 = vpop.f32.mrf.mxu0
    %v2801 = vpop.f32.mrf.mxu0
    %v2802 = vadd.f32 %v602, %v2801
    %v2803 = vpop.f32.mrf.mxu0
    %2804 = vmatprep.mubr.bf16.mxu0 0
    %2805 = vmatmul.mubr.bf16.gmra.mxu0 %v1701
    %v2806 = vpop.f32.mrf.mxu0
    %v2807 = vadd.f32 %v602, %v2806
    %v2808 = vpop.f32.mrf.mxu0
    %v2809 = vpop.f32.mrf.mxu0
    %v2810 = vadd.f32 %v602, %v2809
    %v2811 = vpop.f32.mrf.mxu0
    %2812 = vmatprep.mubr.bf16.mxu0 0
    %2813 = vmatmul.mubr.bf16.gmra.mxu0 %v1702
    %v2814 = vpop.f32.mrf.mxu0
    %v2815 = vadd.f32 %v602, %v2814
    %v2816 = vpop.f32.mrf.mxu0
    %v2817 = vpop.f32.mrf.mxu0
    %v2818 = vadd.f32 %v602, %v2817
    %v2819 = vpop.f32.mrf.mxu0
    %2820 = vmatprep.mubr.bf16.mxu0 0
    %2821 = vmatmul.mubr.bf16.gmra.mxu0 %v1703
    %v2822 = vpop.f32.mrf.mxu0
    %v2823 = vadd.f32 %v602, %v2822
    %v2824 = vpop.f32.mrf.mxu0
    %v2825 = vpop.f32.mrf.mxu0
    %v2826 = vadd.f32 %v602, %v2825
    %v2827 = vpop.f32.mrf.mxu0
    %2828 = vmatprep.mubr.bf16.mxu0 0
    %2829 = vmatmul.mubr.bf16.gmra.mxu0 %v1704
    %v2830 = vpop.f32.mrf.mxu0
    %v2831 = vadd.f32 %v602, %v2830
    %v2832 = vpop.f32.mrf.mxu0
    %v2833 = vpop.f32.mrf.mxu0
    %v2834 = vadd.f32 %v602, %v2833
    %v2835 = vpop.f32.mrf.mxu0
    %2836 = vmatprep.mubr.bf16.mxu0 0
    %2837 = vmatmul.mubr.bf16.gmra.mxu0 %v1705
    %v2838 = vpop.f32.mrf.mxu0
    %v2839 = vadd.f32 %v602, %v2838
    %v2840 = vpop.f32.mrf.mxu0
    %v2841 = vpop.f32.mrf.mxu0
    %v2842 = vadd.f32 %v602, %v2841
    %v2843 = vpop.f32.mrf.mxu0
    %2844 = vmatprep.mubr.bf16.mxu0 0
    %2845 = vmatmul.mubr.bf16.gmra.mxu0 %v1706
    %v2846 = vpop.f32.mrf.mxu0
    %v2847 = vadd.f32 %v602, %v2846
    %v2848 = vpop.f32.mrf.mxu0
    %v2849 = vpop.f32.mrf.mxu0
    %v2850 = vadd.f32 %v602, %v2849
    %v2851 = vpop.f32.mrf.mxu0
    %2852 = vmatprep.mubr.bf16.mxu0 0
    %2853 = vmatmul.mubr.bf16.gmra.mxu0 %v1707
    %v2854 = vpop.f32.mrf.mxu0
    %v2855 = vadd.f32 %v602, %v2854
    %v2856 = vpop.f32.mrf.mxu0
    %v2857 = vpop.f32.mrf.mxu0
    %v2858 = vadd.f32 %v602, %v2857
    %v2859 = vpop.f32.mrf.mxu0
    %2860 = vmatprep.mubr.bf16.mxu0 0
    %2861 = vmatmul.mubr.bf16.gmra.mxu0 %v1708
    %v2862 = vpop.f32.mrf.mxu0
    %v2863 = vadd.f32 %v602, %v2862
    %v2864 = vpop.f32.mrf.mxu0
    %v2865 = vpop.f32.mrf.mxu0
    %v2866 = vadd.f32 %v602, %v2865
    %v2867 = vpop.f32.mrf.mxu0
    %2868 = vmatprep.mubr.bf16.mxu0 0
    %2869 = vmatmul.mubr.bf16.gmra.mxu0 %v1709
    %v2870 = vpop.f32.mrf.mxu0
    %v2871 = vadd.f32 %v602, %v2870
    %v2872 = vpop.f32.mrf.mxu0
    %v2873 = vpop.f32.mrf.mxu0
    %v2874 = vadd.f32 %v602, %v2873
    %v2875 = vpop.f32.mrf.mxu0
    %2876 = vmatprep.mubr.bf16.mxu0 0
    %2877 = vmatmul.mubr.bf16.gmra.mxu0 %v1710
    %v2878 = vpop.f32.mrf.mxu0
    %v2879 = vadd.f32 %v602, %v2878
    %v2880 = vpop.f32.mrf.mxu0
    %v2881 = vpop.f32.mrf.mxu0
    %v2882 = vadd.f32 %v602, %v2881
    %v2883 = vpop.f32.mrf.mxu0
    %2884 = vmatprep.mubr.bf16.mxu0 0
    %2885 = vmatmul.mubr.bf16.gmra.mxu0 %v1711
    %v2886 = vpop.f32.mrf.mxu0
    %v2887 = vadd.f32 %v602, %v2886
    %v2888 = vpop.f32.mrf.mxu0
    %v2889 = vpop.f32.mrf.mxu0
    %v2890 = vadd.f32 %v602, %v2889
    %v2891 = vpop.f32.mrf.mxu0
    %2892 = vmatprep.mubr.bf16.mxu0 0
    %2893 = vmatmul.mubr.bf16.gmra.mxu0 %v1712
    %v2894 = vpop.f32.mrf.mxu0
    %v2895 = vadd.f32 %v602, %v2894
    %v2896 = vpop.f32.mrf.mxu0
    %v2897 = vpop.f32.mrf.mxu0
    %v2898 = vadd.f32 %v602, %v2897
    %v2899 = vpop.f32.mrf.mxu0
    %2900 = vmatprep.mubr.bf16.mxu0 0
    %2901 = vmatmul.mubr.bf16.gmra.mxu0 %v1713
    %v2902 = vpop.f32.mrf.mxu0
    %v2903 = vadd.f32 %v602, %v2902
    %v2904 = vpop.f32.mrf.mxu0
    %v2905 = vpop.f32.mrf.mxu0
    %v2906 = vadd.f32 %v602, %v2905
    %v2907 = vpop.f32.mrf.mxu0
    %2908 = vmatprep.mubr.bf16.mxu0 0
    %2909 = vmatmul.mubr.bf16.gmra.mxu0 %v1714
    %v2910 = vpop.f32.mrf.mxu0
    %v2911 = vadd.f32 %v602, %v2910
    %v2912 = vpop.f32.mrf.mxu0
    %v2913 = vpop.f32.mrf.mxu0
    %v2914 = vadd.f32 %v602, %v2913
    %v2915 = vpop.f32.mrf.mxu0
    %2916 = vmatprep.mubr.bf16.mxu0 0
    %2917 = vmatmul.mubr.bf16.gmra.mxu0 %v1715
    %v2918 = vpop.f32.mrf.mxu0
    %v2919 = vadd.f32 %v602, %v2918
    %v2920 = vpop.f32.mrf.mxu0
    %v2921 = vpop.f32.mrf.mxu0
    %v2922 = vadd.f32 %v602, %v2921
    %v2923 = vpop.f32.mrf.mxu0
    %2924 = vmatprep.mubr.bf16.mxu0 0
    %2925 = vmatmul.mubr.bf16.gmra.mxu0 %v1716
    %v2926 = vpop.f32.mrf.mxu0
    %v2927 = vadd.f32 %v602, %v2926
    %v2928 = vpop.f32.mrf.mxu0
    %v2929 = vpop.f32.mrf.mxu0
    %v2930 = vadd.f32 %v602, %v2929
    %v2931 = vpop.f32.mrf.mxu0
    %2932 = vmatprep.mubr.bf16.mxu0 0
    %2933 = vmatmul.mubr.bf16.gmra.mxu0 %v1717
    %v2934 = vpop.f32.mrf.mxu0
    %v2935 = vadd.f32 %v602, %v2934
    %v2936 = vpop.f32.mrf.mxu0
    %v2937 = vpop.f32.mrf.mxu0
    %v2938 = vadd.f32 %v602, %v2937
    %v2939 = vpop.f32.mrf.mxu0
    %2940 = vmatprep.mubr.bf16.mxu0 0
    %2941 = vmatmul.mubr.bf16.gmra.mxu0 %v1718
    %v2942 = vpop.f32.mrf.mxu0
    %v2943 = vadd.f32 %v602, %v2942
    %v2944 = vpop.f32.mrf.mxu0
    %v2945 = vpop.f32.mrf.mxu0
    %v2946 = vadd.f32 %v602, %v2945
    %v2947 = vpop.f32.mrf.mxu0
    %2948 = vmatprep.mubr.bf16.mxu0 0
    %2949 = vmatmul.mubr.bf16.gmra.mxu0 %v1719
    %v2950 = vpop.f32.mrf.mxu0
    %v2951 = vadd.f32 %v602, %v2950
    %v2952 = vpop.f32.mrf.mxu0
    %v2953 = vpop.f32.mrf.mxu0
    %v2954 = vadd.f32 %v602, %v2953
    %v2955 = vpop.f32.mrf.mxu0
    %2956 = vmatprep.mubr.bf16.mxu0 0
    %2957 = vmatmul.mubr.bf16.gmra.mxu0 %v1720
    %v2958 = vpop.f32.mrf.mxu0
    %v2959 = vadd.f32 %v602, %v2958
    %v2960 = vpop.f32.mrf.mxu0
    %v2961 = vpop.f32.mrf.mxu0
    %v2962 = vadd.f32 %v602, %v2961
    %v2963 = vpop.f32.mrf.mxu0
    %2964 = vmatprep.mubr.bf16.mxu0 0
    %2965 = vmatmul.mubr.bf16.gmra.mxu0 %v1721
    %v2966 = vpop.f32.mrf.mxu0
    %v2967 = vadd.f32 %v602, %v2966
    %v2968 = vpop.f32.mrf.mxu0
    %v2969 = vpop.f32.mrf.mxu0
    %v2970 = vadd.f32 %v602, %v2969
    %v2971 = vpop.f32.mrf.mxu0
    %2972 = vmatprep.mubr.bf16.mxu0 0
    %2973 = vmatmul.mubr.bf16.gmra.mxu0 %v1722
    %v2974 = vpop.f32.mrf.mxu0
    %v2975 = vadd.f32 %v602, %v2974
    %v2976 = vpop.f32.mrf.mxu0
    %v2977 = vpop.f32.mrf.mxu0
    %v2978 = vadd.f32 %v602, %v2977
    %v2979 = vpop.f32.mrf.mxu0
    %2980 = vmatprep.mubr.bf16.mxu0 0
    %2981 = vmatmul.mubr.bf16.gmra.mxu0 %v1723
    %v2982 = vpop.f32.mrf.mxu0
    %v2983 = vadd.f32 %v602, %v2982
    %v2984 = vpop.f32.mrf.mxu0
    %v2985 = vpop.f32.mrf.mxu0
    %v2986 = vadd.f32 %v602, %v2985
    %v2987 = vpop.f32.mrf.mxu0
    %2988 = vmatprep.mubr.bf16.mxu0 0
    %2989 = vmatmul.mubr.bf16.gmra.mxu0 %v1724
    %v2990 = vpop.f32.mrf.mxu0
    %v2991 = vadd.f32 %v602, %v2990
    %v2992 = vpop.f32.mrf.mxu0
    %v2993 = vpop.f32.mrf.mxu0
    %v2994 = vadd.f32 %v602, %v2993
    %v2995 = vpop.f32.mrf.mxu0
    %2996 = vmatprep.mubr.bf16.mxu0 0
    %2997 = vmatmul.mubr.bf16.gmra.mxu0 %v1725
    %v2998 = vpop.f32.mrf.mxu0
    %v2999 = vadd.f32 %v602, %v2998
    %v3000 = vpop.f32.mrf.mxu0
    %v3001 = vpop.f32.mrf.mxu0
    %v3002 = vadd.f32 %v602, %v3001
    %v3003 = vpop.f32.mrf.mxu0
    %3004 = vmatprep.mubr.bf16.mxu0 0
    %3005 = vmatmul.mubr.bf16.gmra.mxu0 %v1726
    %v3006 = vpop.f32.mrf.mxu0
    %v3007 = vadd.f32 %v602, %v3006
    %v3008 = vpop.f32.mrf.mxu0
    %v3009 = vpop.f32.mrf.mxu0
    %v3010 = vadd.f32 %v602, %v3009
    %v3011 = vpop.f32.mrf.mxu0
    %3012 = vmatprep.mubr.bf16.mxu0 0
    %3013 = vmatmul.mubr.bf16.gmra.mxu0 %v1727
    %v3014 = vpop.f32.mrf.mxu0
    %v3015 = vadd.f32 %v602, %v3014
    %v3016 = vpop.f32.mrf.mxu0
    %v3017 = vpop.f32.mrf.mxu0
    %v3018 = vadd.f32 %v602, %v3017
    %v3019 = vpop.f32.mrf.mxu0
    %3020 = vmatprep.mubr.bf16.mxu0 0
    %3021 = vmatmul.mubr.bf16.gmra.mxu0 %v1728
    %v3022 = vpop.f32.mrf.mxu0
    %v3023 = vadd.f32 %v602, %v3022
    %v3024 = vpop.f32.mrf.mxu0
    %v3025 = vpop.f32.mrf.mxu0
    %v3026 = vadd.f32 %v602, %v3025
    %v3027 = vpop.f32.mrf.mxu0
    %3028 = vmatprep.mubr.bf16.mxu0 0
    %3029 = vmatmul.mubr.bf16.gmra.mxu0 %v1729
    %v3030 = vpop.f32.mrf.mxu0
    %v3031 = vadd.f32 %v602, %v3030
    %v3032 = vpop.f32.mrf.mxu0
    %v3033 = vpop.f32.mrf.mxu0
    %v3034 = vadd.f32 %v602, %v3033
    %v3035 = vpop.f32.mrf.mxu0
    %3036 = vmatprep.mubr.bf16.mxu0 0
    %3037 = vmatmul.mubr.bf16.gmra.mxu0 %v1730
    %v3038 = vpop.f32.mrf.mxu0
    %v3039 = vadd.f32 %v602, %v3038
    %v3040 = vpop.f32.mrf.mxu0
    %v3041 = vpop.f32.mrf.mxu0
    %v3042 = vadd.f32 %v602, %v3041
    %v3043 = vpop.f32.mrf.mxu0
    %3044 = vmatprep.mubr.bf16.mxu0 0
    %3045 = vmatmul.mubr.bf16.gmra.mxu0 %v1731
    %v3046 = vpop.f32.mrf.mxu0
    %v3047 = vadd.f32 %v602, %v3046
    %v3048 = vpop.f32.mrf.mxu0
    %v3049 = vpop.f32.mrf.mxu0
    %v3050 = vadd.f32 %v602, %v3049
    %v3051 = vpop.f32.mrf.mxu0
    %3052 = vmatprep.mubr.bf16.mxu0 0
    %3053 = vmatmul.mubr.bf16.gmra.mxu0 %v1732
    %v3054 = vpop.f32.mrf.mxu0
    %v3055 = vadd.f32 %v602, %v3054
    %v3056 = vpop.f32.mrf.mxu0
    %v3057 = vpop.f32.mrf.mxu0
    %v3058 = vadd.f32 %v602, %v3057
    %v3059 = vpop.f32.mrf.mxu0
    %3060 = vmatprep.mubr.bf16.mxu0 0
    %3061 = vmatmul.mubr.bf16.gmra.mxu0 %v1733
    %v3062 = vpop.f32.mrf.mxu0
    %v3063 = vadd.f32 %v602, %v3062
    %v3064 = vpop.f32.mrf.mxu0
    %v3065 = vpop.f32.mrf.mxu0
    %v3066 = vadd.f32 %v602, %v3065
    %v3067 = vpop.f32.mrf.mxu0
    %3068 = vmatprep.mubr.bf16.mxu0 0
    %3069 = vmatmul.mubr.bf16.gmra.mxu0 %v1734
    %v3070 = vpop.f32.mrf.mxu0
    %v3071 = vadd.f32 %v602, %v3070
    %v3072 = vpop.f32.mrf.mxu0
    %v3073 = vpop.f32.mrf.mxu0
    %v3074 = vadd.f32 %v602, %v3073
    %v3075 = vpop.f32.mrf.mxu0
    %3076 = vmatprep.mubr.bf16.mxu0 0
    %3077 = vmatmul.mubr.bf16.gmra.mxu0 %v1735
    %v3078 = vpop.f32.mrf.mxu0
    %v3079 = vadd.f32 %v602, %v3078
    %v3080 = vpop.f32.mrf.mxu0
    %v3081 = vpop.f32.mrf.mxu0
    %v3082 = vadd.f32 %v602, %v3081
    %v3083 = vpop.f32.mrf.mxu0
    %3084 = vmatprep.mubr.bf16.mxu0 0
    %3085 = vmatmul.mubr.bf16.gmra.mxu0 %v1736
    %v3086 = vpop.f32.mrf.mxu0
    %v3087 = vadd.f32 %v602, %v3086
    %v3088 = vpop.f32.mrf.mxu0
    %v3089 = vpop.f32.mrf.mxu0
    %v3090 = vadd.f32 %v602, %v3089
    %v3091 = vpop.f32.mrf.mxu0
    %3092 = vmatprep.mubr.bf16.mxu0 0
    %3093 = vmatmul.mubr.bf16.gmra.mxu0 %v1737
    %v3094 = vpop.f32.mrf.mxu0
    %v3095 = vadd.f32 %v602, %v3094
    %v3096 = vpop.f32.mrf.mxu0
    %v3097 = vpop.f32.mrf.mxu0
    %v3098 = vadd.f32 %v602, %v3097
    %v3099 = vpop.f32.mrf.mxu0
    %3100 = vmatprep.mubr.bf16.mxu0 0
    %3101 = vmatmul.mubr.bf16.gmra.mxu0 %v1738
    %v3102 = vpop.f32.mrf.mxu0
    %v3103 = vadd.f32 %v602, %v3102
    %v3104 = vpop.f32.mrf.mxu0
    %v3105 = vpop.f32.mrf.mxu0
    %v3106 = vadd.f32 %v602, %v3105
    %v3107 = vpop.f32.mrf.mxu0
    %3108 = vmatprep.mubr.bf16.mxu0 0
    %3109 = vmatmul.mubr.bf16.gmra.mxu0 %v1739
    %v3110 = vpop.f32.mrf.mxu0
    %v3111 = vadd.f32 %v602, %v3110
    %v3112 = vpop.f32.mrf.mxu0
    %v3113 = vpop.f32.mrf.mxu0
    %v3114 = vadd.f32 %v602, %v3113
    %v3115 = vpop.f32.mrf.mxu0
    %3116 = vmatprep.mubr.bf16.mxu0 0
    %3117 = vmatmul.mubr.bf16.gmra.mxu0 %v1740
    %v3118 = vpop.f32.mrf.mxu0
    %v3119 = vadd.f32 %v602, %v3118
    %v3120 = vpop.f32.mrf.mxu0
    %v3121 = vpop.f32.mrf.mxu0
    %v3122 = vadd.f32 %v602, %v3121
    %v3123 = vpop.f32.mrf.mxu0
    %3124 = vmatprep.mubr.bf16.mxu0 0
    %3125 = vmatmul.mubr.bf16.gmra.mxu0 %v1741
    %v3126 = vpop.f32.mrf.mxu0
    %v3127 = vadd.f32 %v602, %v3126
    %v3128 = vpop.f32.mrf.mxu0
    %v3129 = vpop.f32.mrf.mxu0
    %v3130 = vadd.f32 %v602, %v3129
    %v3131 = vpop.f32.mrf.mxu0
    %3132 = vmatprep.mubr.bf16.mxu0 0
    %3133 = vmatmul.mubr.bf16.gmra.mxu0 %v1742
    %v3134 = vpop.f32.mrf.mxu0
    %v3135 = vadd.f32 %v602, %v3134
    %v3136 = vpop.f32.mrf.mxu0
    %v3137 = vpop.f32.mrf.mxu0
    %v3138 = vadd.f32 %v602, %v3137
    %v3139 = vpop.f32.mrf.mxu0
    %3140 = vmatprep.mubr.bf16.mxu0 0
    %3141 = vmatmul.mubr.bf16.gmra.mxu0 %v1743
    %v3142 = vpop.f32.mrf.mxu0
    %v3143 = vadd.f32 %v602, %v3142
    %v3144 = vpop.f32.mrf.mxu0
    %v3145 = vpop.f32.mrf.mxu0
    %v3146 = vadd.f32 %v602, %v3145
    %v3147 = vpop.f32.mrf.mxu0
    %3148 = vmatprep.mubr.bf16.mxu0 0
    %3149 = vmatmul.mubr.bf16.gmra.mxu0 %v1744
    %v3150 = vpop.f32.mrf.mxu0
    %v3151 = vadd.f32 %v602, %v3150
    %v3152 = vpop.f32.mrf.mxu0
    %v3153 = vpop.f32.mrf.mxu0
    %v3154 = vadd.f32 %v602, %v3153
    %v3155 = vpop.f32.mrf.mxu0
    %3156 = vmatprep.mubr.bf16.mxu0 0
    %3157 = vmatmul.mubr.bf16.gmra.mxu0 %v1745
    %v3158 = vpop.f32.mrf.mxu0
    %v3159 = vadd.f32 %v602, %v3158
    %v3160 = vpop.f32.mrf.mxu0
    %v3161 = vpop.f32.mrf.mxu0
    %v3162 = vadd.f32 %v602, %v3161
    %v3163 = vpop.f32.mrf.mxu0
    %3164 = vmatprep.mubr.bf16.mxu0 0
    %3165 = vmatmul.mubr.bf16.gmra.mxu0 %v1746
    %v3166 = vpop.f32.mrf.mxu0
    %v3167 = vadd.f32 %v602, %v3166
    %v3168 = vpop.f32.mrf.mxu0
    %v3169 = vpop.f32.mrf.mxu0
    %v3170 = vadd.f32 %v602, %v3169
    %v3171 = vpop.f32.mrf.mxu0
    %3172 = vmatprep.mubr.bf16.mxu0 0
    %3173 = vmatmul.mubr.bf16.gmra.mxu0 %v1747
    %v3174 = vpop.f32.mrf.mxu0
    %v3175 = vadd.f32 %v602, %v3174
    %v3176 = vpop.f32.mrf.mxu0
    %v3177 = vpop.f32.mrf.mxu0
    %v3178 = vadd.f32 %v602, %v3177
    %v3179 = vpop.f32.mrf.mxu0
    %3180 = vmatprep.mubr.bf16.mxu0 0
    %3181 = vmatmul.mubr.bf16.gmra.mxu0 %v1748
    %v3182 = vpop.f32.mrf.mxu0
    %v3183 = vadd.f32 %v602, %v3182
    %v3184 = vpop.f32.mrf.mxu0
    %v3185 = vpop.f32.mrf.mxu0
    %v3186 = vadd.f32 %v602, %v3185
    %v3187 = vpop.f32.mrf.mxu0
    %3188 = vmatprep.mubr.bf16.mxu0 0
    %3189 = vmatmul.mubr.bf16.gmra.mxu0 %v1749
    %v3190 = vpop.f32.mrf.mxu0
    %v3191 = vadd.f32 %v602, %v3190
    %v3192 = vpop.f32.mrf.mxu0
    %v3193 = vpop.f32.mrf.mxu0
    %v3194 = vadd.f32 %v602, %v3193
    %v3195 = vpop.f32.mrf.mxu0
    %3196 = vmatprep.mubr.bf16.mxu0 0
    %3197 = vmatmul.mubr.bf16.gmra.mxu0 %v1750
    %v3198 = vpop.f32.mrf.mxu0
    %v3199 = vadd.f32 %v602, %v3198
    %v3200 = vpop.f32.mrf.mxu0
    %v3201 = vpop.f32.mrf.mxu0
    %v3202 = vadd.f32 %v602, %v3201
    %v3203 = vpop.f32.mrf.mxu0
    %3204 = vmatprep.mubr.bf16.mxu0 0
    %3205 = vmatmul.mubr.bf16.gmra.mxu0 %v1751
    %v3206 = vpop.f32.mrf.mxu0
    %v3207 = vadd.f32 %v602, %v3206
    %v3208 = vpop.f32.mrf.mxu0
    %v3209 = vpop.f32.mrf.mxu0
    %v3210 = vadd.f32 %v602, %v3209
    %v3211 = vpop.f32.mrf.mxu0
    %3212 = vmatprep.mubr.bf16.mxu0 0
    %3213 = vmatmul.mubr.bf16.gmra.mxu0 %v1752
    %v3214 = vpop.f32.mrf.mxu0
    %v3215 = vadd.f32 %v602, %v3214
    %v3216 = vpop.f32.mrf.mxu0
    %v3217 = vpop.f32.mrf.mxu0
    %v3218 = vadd.f32 %v602, %v3217
    %v3219 = vpop.f32.mrf.mxu0
    %3220 = vmatprep.mubr.bf16.mxu0 0
    %3221 = vmatmul.mubr.bf16.gmra.mxu0 %v1753
    %v3222 = vpop.f32.mrf.mxu0
    %v3223 = vadd.f32 %v602, %v3222
    %v3224 = vpop.f32.mrf.mxu0
    %v3225 = vpop.f32.mrf.mxu0
    %v3226 = vadd.f32 %v602, %v3225
    %v3227 = vpop.f32.mrf.mxu0
    %3228 = vmatprep.mubr.bf16.mxu0 0
    %3229 = vmatmul.mubr.bf16.gmra.mxu0 %v1754
    %v3230 = vpop.f32.mrf.mxu0
    %v3231 = vadd.f32 %v602, %v3230
    %v3232 = vpop.f32.mrf.mxu0
    %v3233 = vpop.f32.mrf.mxu0
    %v3234 = vadd.f32 %v602, %v3233
    %v3235 = vpop.f32.mrf.mxu0
    %3236 = vmatprep.mubr.bf16.mxu0 0
    %3237 = vmatmul.mubr.bf16.gmra.mxu0 %v1755
    %v3238 = vpop.f32.mrf.mxu0
    %v3239 = vadd.f32 %v602, %v3238
    %v3240 = vpop.f32.mrf.mxu0
    %v3241 = vpop.f32.mrf.mxu0
    %v3242 = vadd.f32 %v602, %v3241
    %v3243 = vpop.f32.mrf.mxu0
    %3244 = vmatprep.mubr.bf16.mxu0 0
    %3245 = vmatmul.mubr.bf16.gmra.mxu0 %v1756
    %v3246 = vpop.f32.mrf.mxu0
    %v3247 = vadd.f32 %v602, %v3246
    %v3248 = vpop.f32.mrf.mxu0
    %v3249 = vpop.f32.mrf.mxu0
    %v3250 = vadd.f32 %v602, %v3249
    %v3251 = vpop.f32.mrf.mxu0
    %3252 = vmatprep.mubr.bf16.mxu0 0
    %3253 = vmatmul.mubr.bf16.gmra.mxu0 %v1757
    %v3254 = vpop.f32.mrf.mxu0
    %v3255 = vadd.f32 %v602, %v3254
    %v3256 = vpop.f32.mrf.mxu0
    %v3257 = vpop.f32.mrf.mxu0
    %v3258 = vadd.f32 %v602, %v3257
    %v3259 = vpop.f32.mrf.mxu0
    %3260 = vmatprep.mubr.bf16.mxu0 0
    %3261 = vmatmul.mubr.bf16.gmra.mxu0 %v1758
    %v3262 = vpop.f32.mrf.mxu0
    %v3263 = vadd.f32 %v602, %v3262
    %v3264 = vpop.f32.mrf.mxu0
    %v3265 = vpop.f32.mrf.mxu0
    %v3266 = vadd.f32 %v602, %v3265
    %v3267 = vpop.f32.mrf.mxu0
    %3268 = vmatprep.mubr.bf16.mxu0 0
    %3269 = vmatmul.mubr.bf16.gmra.mxu0 %v1759
    %v3270 = vpop.f32.mrf.mxu0
    %v3271 = vadd.f32 %v602, %v3270
    %v3272 = vpop.f32.mrf.mxu0
    %v3273 = vpop.f32.mrf.mxu0
    %v3274 = vadd.f32 %v602, %v3273
    %v3275 = vpop.f32.mrf.mxu0
    %3276 = vmatprep.mubr.bf16.mxu0 0
    %3277 = vmatmul.mubr.bf16.gmra.mxu0 %v1760
    %v3278 = vpop.f32.mrf.mxu0
    %v3279 = vadd.f32 %v602, %v3278
    %v3280 = vpop.f32.mrf.mxu0
    %v3281 = vpop.f32.mrf.mxu0
    %v3282 = vadd.f32 %v602, %v3281
    %v3283 = vpop.f32.mrf.mxu0
    %3284 = vmatprep.mubr.bf16.mxu0 0
    %3285 = vmatmul.mubr.bf16.gmra.mxu0 %v1761
    %v3286 = vpop.f32.mrf.mxu0
    %v3287 = vadd.f32 %v602, %v3286
    %v3288 = vpop.f32.mrf.mxu0
    %v3289 = vpop.f32.mrf.mxu0
    %v3290 = vadd.f32 %v602, %v3289
    %v3291 = vpop.f32.mrf.mxu0
    %3292 = vmatprep.mubr.bf16.mxu0 0
    %3293 = vmatmul.mubr.bf16.gmra.mxu0 %v1762
    %v3294 = vpop.f32.mrf.mxu0
    %v3295 = vadd.f32 %v602, %v3294
    %v3296 = vpop.f32.mrf.mxu0
    %v3297 = vpop.f32.mrf.mxu0
    %v3298 = vadd.f32 %v602, %v3297
    %v3299 = vpop.f32.mrf.mxu0
    %3300 = vmatprep.mubr.bf16.mxu0 0
    %3301 = vmatmul.mubr.bf16.gmra.mxu0 %v1763
    %v3302 = vpop.f32.mrf.mxu0
    %v3303 = vadd.f32 %v602, %v3302
    %v3304 = vpop.f32.mrf.mxu0
    %v3305 = vpop.f32.mrf.mxu0
    %v3306 = vadd.f32 %v602, %v3305
    %v3307 = vpop.f32.mrf.mxu0
    %3308 = vmatprep.mubr.bf16.mxu0 0
    %3309 = vmatmul.mubr.bf16.gmra.mxu0 %v1764
    %v3310 = vpop.f32.mrf.mxu0
    %v3311 = vadd.f32 %v602, %v3310
    %v3312 = vpop.f32.mrf.mxu0
    %v3313 = vpop.f32.mrf.mxu0
    %v3314 = vadd.f32 %v602, %v3313
    %v3315 = vpop.f32.mrf.mxu0
    %3316 = vmatprep.mubr.bf16.mxu0 0
    %3317 = vmatmul.mubr.bf16.gmra.mxu0 %v1765
    %v3318 = vpop.f32.mrf.mxu0
    %v3319 = vadd.f32 %v602, %v3318
    %v3320 = vpop.f32.mrf.mxu0
    %v3321 = vpop.f32.mrf.mxu0
    %v3322 = vadd.f32 %v602, %v3321
    %v3323 = vpop.f32.mrf.mxu0
    %3324 = vmatprep.mubr.bf16.mxu0 0
    %3325 = vmatmul.mubr.bf16.gmra.mxu0 %v1766
    %v3326 = vpop.f32.mrf.mxu0
    %v3327 = vadd.f32 %v602, %v3326
    %v3328 = vpop.f32.mrf.mxu0
    %v3329 = vpop.f32.mrf.mxu0
    %v3330 = vadd.f32 %v602, %v3329
    %v3331 = vpop.f32.mrf.mxu0
    %3332 = vmatprep.mubr.bf16.mxu0 0
    %3333 = vmatmul.mubr.bf16.gmra.mxu0 %v1767
    %v3334 = vpop.f32.mrf.mxu0
    %v3335 = vadd.f32 %v602, %v3334
    %v3336 = vpop.f32.mrf.mxu0
    %v3337 = vpop.f32.mrf.mxu0
    %v3338 = vadd.f32 %v602, %v3337
    %v3339 = vpop.f32.mrf.mxu0
    %3340 = vmatprep.mubr.bf16.mxu0 0
    %3341 = vmatmul.mubr.bf16.gmra.mxu0 %v1768
    %v3342 = vpop.f32.mrf.mxu0
    %v3343 = vadd.f32 %v602, %v3342
    %v3344 = vpop.f32.mrf.mxu0
    %v3345 = vpop.f32.mrf.mxu0
    %v3346 = vadd.f32 %v602, %v3345
    %v3347 = vpop.f32.mrf.mxu0
    %3348 = vmatprep.mubr.bf16.mxu0 0
    %3349 = vmatmul.mubr.bf16.gmra.mxu0 %v1769
    %v3350 = vpop.f32.mrf.mxu0
    %v3351 = vadd.f32 %v602, %v3350
    %v3352 = vpop.f32.mrf.mxu0
    %v3353 = vpop.f32.mrf.mxu0
    %v3354 = vadd.f32 %v602, %v3353
    %v3355 = vpop.f32.mrf.mxu0
    %3356 = vmatprep.mubr.bf16.mxu0 0
    %3357 = vmatmul.mubr.bf16.gmra.mxu0 %v1770
    %v3358 = vpop.f32.mrf.mxu0
    %v3359 = vadd.f32 %v602, %v3358
    %v3360 = vpop.f32.mrf.mxu0
    %v3361 = vpop.f32.mrf.mxu0
    %v3362 = vadd.f32 %v602, %v3361
    %v3363 = vpop.f32.mrf.mxu0
    %3364 = vmatprep.mubr.bf16.mxu0 0
    %3365 = vmatmul.mubr.bf16.gmra.mxu0 %v1771
    %v3366 = vpop.f32.mrf.mxu0
    %v3367 = vadd.f32 %v602, %v3366
    %v3368 = vpop.f32.mrf.mxu0
    %v3369 = vpop.f32.mrf.mxu0
    %v3370 = vadd.f32 %v602, %v3369
    %v3371 = vpop.f32.mrf.mxu0
    %3372 = vmatprep.mubr.bf16.mxu0 0
    %3373 = vmatmul.mubr.bf16.gmra.mxu0 %v1772
    %v3374 = vpop.f32.mrf.mxu0
    %v3375 = vadd.f32 %v602, %v3374
    %v3376 = vpop.f32.mrf.mxu0
    %v3377 = vpop.f32.mrf.mxu0
    %v3378 = vadd.f32 %v602, %v3377
    %v3379 = vpop.f32.mrf.mxu0
    %3380 = vmatprep.mubr.bf16.mxu0 0
    %3381 = vmatmul.mubr.bf16.gmra.mxu0 %v1773
    %v3382 = vpop.f32.mrf.mxu0
    %v3383 = vadd.f32 %v602, %v3382
    %v3384 = vpop.f32.mrf.mxu0
    %v3385 = vpop.f32.mrf.mxu0
    %v3386 = vadd.f32 %v602, %v3385
    %v3387 = vpop.f32.mrf.mxu0
    %3388 = vmatprep.mubr.bf16.mxu0 0
    %3389 = vmatmul.mubr.bf16.gmra.mxu0 %v1774
    %v3390 = vpop.f32.mrf.mxu0
    %v3391 = vadd.f32 %v602, %v3390
    %v3392 = vpop.f32.mrf.mxu0
    %v3393 = vpop.f32.mrf.mxu0
    %v3394 = vadd.f32 %v602, %v3393
    %v3395 = vpop.f32.mrf.mxu0
    %3396 = vmatprep.mubr.bf16.mxu0 0
    %3397 = vmatmul.mubr.bf16.gmra.mxu0 %v1775
    %v3398 = vpop.f32.mrf.mxu0
    %v3399 = vadd.f32 %v602, %v3398
    %v3400 = vpop.f32.mrf.mxu0
    %v3401 = vpop.f32.mrf.mxu0
    %v3402 = vadd.f32 %v602, %v3401
    %v3403 = vpop.f32.mrf.mxu0
    %3404 = vmatprep.mubr.bf16.mxu0 0
    %3405 = vmatmul.mubr.bf16.gmra.mxu0 %v1776
    %v3406 = vpop.f32.mrf.mxu0
    %v3407 = vadd.f32 %v602, %v3406
    %v3408 = vpop.f32.mrf.mxu0
    %v3409 = vpop.f32.mrf.mxu0
    %v3410 = vadd.f32 %v602, %v3409
    %v3411 = vpop.f32.mrf.mxu0
    %3412 = vmatprep.mubr.bf16.mxu0 0
    %3413 = vmatmul.mubr.bf16.gmra.mxu0 %v1777
    %v3414 = vpop.f32.mrf.mxu0
    %v3415 = vadd.f32 %v602, %v3414
    %v3416 = vpop.f32.mrf.mxu0
    %v3417 = vpop.f32.mrf.mxu0
    %v3418 = vadd.f32 %v602, %v3417
    %v3419 = vpop.f32.mrf.mxu0
    %3420 = vmatprep.mubr.bf16.mxu0 0
    %3421 = vmatmul.mubr.bf16.gmra.mxu0 %v1778
    %v3422 = vpop.f32.mrf.mxu0
    %v3423 = vadd.f32 %v602, %v3422
    %v3424 = vpop.f32.mrf.mxu0
    %v3425 = vpop.f32.mrf.mxu0
    %v3426 = vadd.f32 %v602, %v3425
    %v3427 = vpop.f32.mrf.mxu0
    %3428 = vmatprep.mubr.bf16.mxu0 0
    %3429 = vmatmul.mubr.bf16.gmra.mxu0 %v1779
    %v3430 = vpop.f32.mrf.mxu0
    %v3431 = vadd.f32 %v602, %v3430
    %v3432 = vpop.f32.mrf.mxu0
    %v3433 = vpop.f32.mrf.mxu0
    %v3434 = vadd.f32 %v602, %v3433
    %v3435 = vpop.f32.mrf.mxu0
    %3436 = vmatprep.mubr.bf16.mxu0 0
    %3437 = vmatmul.mubr.bf16.gmra.mxu0 %v1780
    %v3438 = vpop.f32.mrf.mxu0
    %v3439 = vadd.f32 %v602, %v3438
    %v3440 = vpop.f32.mrf.mxu0
    %v3441 = vpop.f32.mrf.mxu0
    %v3442 = vadd.f32 %v602, %v3441
    %v3443 = vpop.f32.mrf.mxu0
    %3444 = vmatprep.mubr.bf16.mxu0 0
    %3445 = vmatmul.mubr.bf16.gmra.mxu0 %v1781
    %v3446 = vpop.f32.mrf.mxu0
    %v3447 = vadd.f32 %v602, %v3446
    %v3448 = vpop.f32.mrf.mxu0
    %v3449 = vpop.f32.mrf.mxu0
    %v3450 = vadd.f32 %v602, %v3449
    %v3451 = vpop.f32.mrf.mxu0
    %3452 = vmatprep.mubr.bf16.mxu0 0
    %3453 = vmatmul.mubr.bf16.gmra.mxu0 %v1782
    %v3454 = vpop.f32.mrf.mxu0
    %v3455 = vadd.f32 %v602, %v3454
    %v3456 = vpop.f32.mrf.mxu0
    %v3457 = vpop.f32.mrf.mxu0
    %v3458 = vadd.f32 %v602, %v3457
    %v3459 = vpop.f32.mrf.mxu0
    %3460 = vmatprep.mubr.bf16.mxu0 0
    %3461 = vmatmul.mubr.bf16.gmra.mxu0 %v1783
    %v3462 = vpop.f32.mrf.mxu0
    %v3463 = vadd.f32 %v602, %v3462
    %v3464 = vpop.f32.mrf.mxu0
    %v3465 = vpop.f32.mrf.mxu0
    %v3466 = vadd.f32 %v602, %v3465
    %v3467 = vpop.f32.mrf.mxu0
    %3468 = vmatprep.mubr.bf16.mxu0 0
    %3469 = vmatmul.mubr.bf16.gmra.mxu0 %v1784
    %v3470 = vpop.f32.mrf.mxu0
    %v3471 = vadd.f32 %v602, %v3470
    %v3472 = vpop.f32.mrf.mxu0
    %v3473 = vpop.f32.mrf.mxu0
    %v3474 = vadd.f32 %v602, %v3473
    %v3475 = vpop.f32.mrf.mxu0
    %3476 = vmatprep.mubr.bf16.mxu0 0
    %3477 = vmatmul.mubr.bf16.gmra.mxu0 %v1785
    %v3478 = vpop.f32.mrf.mxu0
    %v3479 = vadd.f32 %v602, %v3478
    %v3480 = vpop.f32.mrf.mxu0
    %v3481 = vpop.f32.mrf.mxu0
    %v3482 = vadd.f32 %v602, %v3481
    %v3483 = vpop.f32.mrf.mxu0
    %3484 = vmatprep.mubr.bf16.mxu0 0
    %3485 = vmatmul.mubr.bf16.gmra.mxu0 %v1786
    %v3486 = vpop.f32.mrf.mxu0
    %v3487 = vadd.f32 %v602, %v3486
    %v3488 = vpop.f32.mrf.mxu0
    %v3489 = vpop.f32.mrf.mxu0
    %v3490 = vadd.f32 %v602, %v3489
    %v3491 = vpop.f32.mrf.mxu0
    %3492 = vmatprep.mubr.bf16.mxu0 0
    %3493 = vmatmul.mubr.bf16.gmra.mxu0 %v1787
    %v3494 = vpop.f32.mrf.mxu0
    %v3495 = vadd.f32 %v602, %v3494
    %v3496 = vpop.f32.mrf.mxu0
    %v3497 = vpop.f32.mrf.mxu0
    %v3498 = vadd.f32 %v602, %v3497
    %v3499 = vpop.f32.mrf.mxu0
    %3500 = vmatprep.mubr.bf16.mxu0 0
    %3501 = vmatmul.mubr.bf16.gmra.mxu0 %v1788
    %v3502 = vpop.f32.mrf.mxu0
    %v3503 = vadd.f32 %v602, %v3502
    %v3504 = vpop.f32.mrf.mxu0
    %v3505 = vpop.f32.mrf.mxu0
    %v3506 = vadd.f32 %v602, %v3505
    %v3507 = vpop.f32.mrf.mxu0
    %3508 = vmatprep.mubr.bf16.mxu0 0
    %3509 = vmatmul.mubr.bf16.gmra.mxu0 %v1789
    %v3510 = vpop.f32.mrf.mxu0
    %v3511 = vadd.f32 %v602, %v3510
    %v3512 = vpop.f32.mrf.mxu0
    %v3513 = vpop.f32.mrf.mxu0
    %v3514 = vadd.f32 %v602, %v3513
    %v3515 = vpop.f32.mrf.mxu0
    %3516 = vmatprep.mubr.bf16.mxu0 0
    %3517 = vmatmul.mubr.bf16.gmra.mxu0 %v1790
    %v3518 = vpop.f32.mrf.mxu0
    %v3519 = vadd.f32 %v602, %v3518
    %v3520 = vpop.f32.mrf.mxu0
    %v3521 = vpop.f32.mrf.mxu0
    %v3522 = vadd.f32 %v602, %v3521
    %v3523 = vpop.f32.mrf.mxu0
    %3524 = vmatprep.mubr.bf16.mxu0 0
    %3525 = vmatmul.mubr.bf16.gmra.mxu0 %v1791
    %v3526 = vpop.f32.mrf.mxu0
    %v3527 = vadd.f32 %v602, %v3526
    %v3528 = vpop.f32.mrf.mxu0
    %v3529 = vpop.f32.mrf.mxu0
    %v3530 = vadd.f32 %v602, %v3529
    %v3531 = vpop.f32.mrf.mxu0
    %3532 = vmatprep.mubr.bf16.mxu0 0
    %3533 = vmatmul.mubr.bf16.gmra.mxu0 %v1792
    %v3534 = vpop.f32.mrf.mxu0
    %v3535 = vadd.f32 %v602, %v3534
    %v3536 = vpop.f32.mrf.mxu0
    %v3537 = vpop.f32.mrf.mxu0
    %v3538 = vadd.f32 %v602, %v3537
    %v3539 = vpop.f32.mrf.mxu0
    %3540 = vmatprep.mubr.bf16.mxu0 0
    %3541 = vmatmul.mubr.bf16.gmra.mxu0 %v1793
    %v3542 = vpop.f32.mrf.mxu0
    %v3543 = vadd.f32 %v602, %v3542
    %v3544 = vpop.f32.mrf.mxu0
    %v3545 = vpop.f32.mrf.mxu0
    %v3546 = vadd.f32 %v602, %v3545
    %v3547 = vpop.f32.mrf.mxu0
    %3548 = vmatprep.mubr.bf16.mxu0 0
    %3549 = vmatmul.mubr.bf16.gmra.mxu0 %v1794
    %v3550 = vpop.f32.mrf.mxu0
    %v3551 = vadd.f32 %v602, %v3550
    %v3552 = vpop.f32.mrf.mxu0
    %v3553 = vpop.f32.mrf.mxu0
    %v3554 = vadd.f32 %v602, %v3553
    %v3555 = vpop.f32.mrf.mxu0
    %3556 = vmatprep.mubr.bf16.mxu0 0
    %3557 = vmatmul.mubr.bf16.gmra.mxu0 %v1795
    %v3558 = vpop.f32.mrf.mxu0
    %v3559 = vadd.f32 %v602, %v3558
    %v3560 = vpop.f32.mrf.mxu0
    %v3561 = vpop.f32.mrf.mxu0
    %v3562 = vadd.f32 %v602, %v3561
    %v3563 = vpop.f32.mrf.mxu0
    %3564 = vmatprep.mubr.bf16.mxu0 0
    %3565 = vmatmul.mubr.bf16.gmra.mxu0 %v1796
    %v3566 = vpop.f32.mrf.mxu0
    %v3567 = vadd.f32 %v602, %v3566
    %v3568 = vpop.f32.mrf.mxu0
    %v3569 = vpop.f32.mrf.mxu0
    %v3570 = vadd.f32 %v602, %v3569
    %v3571 = vpop.f32.mrf.mxu0
    %3572 = vmatprep.mubr.bf16.mxu0 0
    %3573 = vmatmul.mubr.bf16.gmra.mxu0 %v1797
    %v3574 = vpop.f32.mrf.mxu0
    %v3575 = vadd.f32 %v602, %v3574
    %v3576 = vpop.f32.mrf.mxu0
    %v3577 = vpop.f32.mrf.mxu0
    %v3578 = vadd.f32 %v602, %v3577
    %v3579 = vpop.f32.mrf.mxu0
    %3580 = vmatprep.mubr.bf16.mxu0 0
    %3581 = vmatmul.mubr.bf16.gmra.mxu0 %v1798
    %v3582 = vpop.f32.mrf.mxu0
    %v3583 = vadd.f32 %v602, %v3582
    %v3584 = vpop.f32.mrf.mxu0
    %v3585 = vpop.f32.mrf.mxu0
    %v3586 = vadd.f32 %v602, %v3585
    %v3587 = vpop.f32.mrf.mxu0
    %3588 = vmatprep.mubr.bf16.mxu0 0
    %3589 = vmatmul.mubr.bf16.gmra.mxu0 %v1799
    %v3590 = vpop.f32.mrf.mxu0
    %v3591 = vadd.f32 %v602, %v3590
    %v3592 = vpop.f32.mrf.mxu0
    %v3593 = vpop.f32.mrf.mxu0
    %v3594 = vadd.f32 %v602, %v3593
    %v3595 = vpop.f32.mrf.mxu0
    %3596 = vmatprep.mubr.bf16.mxu0 0
    %3597 = vmatmul.mubr.bf16.gmra.mxu0 %v1800
    %v3598 = vpop.f32.mrf.mxu0
    %v3599 = vadd.f32 %v602, %v3598
    %v3600 = vpop.f32.mrf.mxu0
    %v3601 = vpop.f32.mrf.mxu0
    %v3602 = vadd.f32 %v602, %v3601
    %v3603 = vpop.f32.mrf.mxu0
    %3604 = vmatprep.mubr.bf16.mxu0 0
    %3605 = vmatmul.mubr.bf16.gmra.mxu0 %v1801
    %v3606 = vpop.f32.mrf.mxu0
    %v3607 = vadd.f32 %v602, %v3606
    %v3608 = vpop.f32.mrf.mxu0
    %v3609 = vpop.f32.mrf.mxu0
    %v3610 = vadd.f32 %v602, %v3609
    %v3611 = vpop.f32.mrf.mxu0
    %3612 = vmatprep.mubr.bf16.mxu0 0
    %3613 = vmatmul.mubr.bf16.gmra.mxu0 %v1802
    %v3614 = vpop.f32.mrf.mxu0
    %v3615 = vadd.f32 %v602, %v3614
    %v3616 = vpop.f32.mrf.mxu0
    %v3617 = vpop.f32.mrf.mxu0
    %v3618 = vadd.f32 %v602, %v3617
    %v3619 = vpop.f32.mrf.mxu0
    %3620 = vmatprep.mubr.bf16.mxu0 0
    %3621 = vmatmul.mubr.bf16.gmra.mxu0 %v1803
    %v3622 = vpop.f32.mrf.mxu0
    %v3623 = vadd.f32 %v602, %v3622
    %v3624 = vpop.f32.mrf.mxu0
    %v3625 = vpop.f32.mrf.mxu0
    %v3626 = vadd.f32 %v602, %v3625
    %v3627 = vpop.f32.mrf.mxu0
    %3628 = vmatprep.mubr.bf16.mxu0 0
    %3629 = vmatmul.mubr.bf16.gmra.mxu0 %v1804
    %v3630 = vpop.f32.mrf.mxu0
    %v3631 = vadd.f32 %v602, %v3630
    %v3632 = vpop.f32.mrf.mxu0
    %v3633 = vpop.f32.mrf.mxu0
    %v3634 = vadd.f32 %v602, %v3633
    %v3635 = vpop.f32.mrf.mxu0
    %3636 = vmatprep.mubr.bf16.mxu0 0
    %3637 = vmatmul.mubr.bf16.gmra.mxu0 %v1805
    %v3638 = vpop.f32.mrf.mxu0
    %v3639 = vadd.f32 %v602, %v3638
    %v3640 = vpop.f32.mrf.mxu0
    %v3641 = vpop.f32.mrf.mxu0
    %v3642 = vadd.f32 %v602, %v3641
    %v3643 = vpop.f32.mrf.mxu0
    %3644 = vmatprep.mubr.bf16.mxu0 0
    %3645 = vmatmul.mubr.bf16.gmra.mxu0 %v1806
    %v3646 = vpop.f32.mrf.mxu0
    %v3647 = vadd.f32 %v602, %v3646
    %v3648 = vpop.f32.mrf.mxu0
    %v3649 = vpop.f32.mrf.mxu0
    %v3650 = vadd.f32 %v602, %v3649
    %v3651 = vpop.f32.mrf.mxu0
    %3652 = vmatprep.mubr.bf16.mxu0 0
    %3653 = vmatmul.mubr.bf16.gmra.mxu0 %v1807
    %v3654 = vpop.f32.mrf.mxu0
    %v3655 = vadd.f32 %v602, %v3654
    %v3656 = vpop.f32.mrf.mxu0
    %v3657 = vpop.f32.mrf.mxu0
    %v3658 = vadd.f32 %v602, %v3657
    %v3659 = vpop.f32.mrf.mxu0
    %3660 = vmatprep.mubr.bf16.mxu0 0
    %3661 = vmatmul.mubr.bf16.gmra.mxu0 %v1808
    %v3662 = vpop.f32.mrf.mxu0
    %v3663 = vadd.f32 %v602, %v3662
    %v3664 = vpop.f32.mrf.mxu0
    %v3665 = vpop.f32.mrf.mxu0
    %v3666 = vadd.f32 %v602, %v3665
    %v3667 = vpop.f32.mrf.mxu0
    %3668 = vmatprep.mubr.bf16.mxu0 0
    %3669 = vmatmul.mubr.bf16.gmra.mxu0 %v1809
    %v3670 = vpop.f32.mrf.mxu0
    %v3671 = vadd.f32 %v602, %v3670
    %v3672 = vpop.f32.mrf.mxu0
    %v3673 = vpop.f32.mrf.mxu0
    %v3674 = vadd.f32 %v602, %v3673
    %v3675 = vpop.f32.mrf.mxu0
    %3676 = vmatprep.mubr.bf16.mxu0 0
    %3677 = vmatmul.mubr.bf16.gmra.mxu0 %v1810
    %v3678 = vpop.f32.mrf.mxu0
    %v3679 = vadd.f32 %v602, %v3678
    %v3680 = vpop.f32.mrf.mxu0
    %v3681 = vpop.f32.mrf.mxu0
    %v3682 = vadd.f32 %v602, %v3681
    %v3683 = vpop.f32.mrf.mxu0
    %3684 = vmatprep.mubr.bf16.mxu0 0
    %3685 = vmatmul.mubr.bf16.gmra.mxu0 %v1811
    %v3686 = vpop.f32.mrf.mxu0
    %v3687 = vadd.f32 %v602, %v3686
    %v3688 = vpop.f32.mrf.mxu0
    %v3689 = vpop.f32.mrf.mxu0
    %v3690 = vadd.f32 %v602, %v3689
    %v3691 = vpop.f32.mrf.mxu0
    %3692 = vmatprep.mubr.bf16.mxu0 0
    %3693 = vmatmul.mubr.bf16.gmra.mxu0 %v1812
    %v3694 = vpop.f32.mrf.mxu0
    %v3695 = vadd.f32 %v602, %v3694
    %v3696 = vpop.f32.mrf.mxu0
    %v3697 = vpop.f32.mrf.mxu0
    %v3698 = vadd.f32 %v602, %v3697
    %v3699 = vpop.f32.mrf.mxu0
    %3700 = vmatprep.mubr.bf16.mxu0 0
    %3701 = vmatmul.mubr.bf16.gmra.mxu0 %v1813
    %v3702 = vpop.f32.mrf.mxu0
    %v3703 = vadd.f32 %v602, %v3702
    %v3704 = vpop.f32.mrf.mxu0
    %v3705 = vpop.f32.mrf.mxu0
    %v3706 = vadd.f32 %v602, %v3705
    %v3707 = vpop.f32.mrf.mxu0
    %3708 = vmatprep.mubr.bf16.mxu0 0
    %3709 = vmatmul.mubr.bf16.gmra.mxu0 %v1814
    %v3710 = vpop.f32.mrf.mxu0
    %v3711 = vadd.f32 %v602, %v3710
    %v3712 = vpop.f32.mrf.mxu0
    %v3713 = vpop.f32.mrf.mxu0
    %v3714 = vadd.f32 %v602, %v3713
    %v3715 = vpop.f32.mrf.mxu0
    %3716 = vmatprep.mubr.bf16.mxu0 0
    %3717 = vmatmul.mubr.bf16.gmra.mxu0 %v1815
    %v3718 = vpop.f32.mrf.mxu0
    %v3719 = vadd.f32 %v602, %v3718
    %v3720 = vpop.f32.mrf.mxu0
    %v3721 = vpop.f32.mrf.mxu0
    %v3722 = vadd.f32 %v602, %v3721
    %v3723 = vpop.f32.mrf.mxu0
    %3724 = vmatprep.mubr.bf16.mxu0 0
    %3725 = vmatmul.mubr.bf16.gmra.mxu0 %v1816
    %v3726 = vpop.f32.mrf.mxu0
    %v3727 = vadd.f32 %v602, %v3726
    %v3728 = vpop.f32.mrf.mxu0
    %v3729 = vpop.f32.mrf.mxu0
    %v3730 = vadd.f32 %v602, %v3729
    %v3731 = vpop.f32.mrf.mxu0
    %3732 = vmatprep.mubr.bf16.mxu0 0
    %3733 = vmatmul.mubr.bf16.gmra.mxu0 %v1817
    %v3734 = vpop.f32.mrf.mxu0
    %v3735 = vadd.f32 %v602, %v3734
    %v3736 = vpop.f32.mrf.mxu0
    %v3737 = vpop.f32.mrf.mxu0
    %v3738 = vadd.f32 %v602, %v3737
    %v3739 = vpop.f32.mrf.mxu0
    %3740 = vmatprep.mubr.bf16.mxu0 0
    %3741 = vmatmul.mubr.bf16.gmra.mxu0 %v1818
    %v3742 = vpop.f32.mrf.mxu0
    %v3743 = vadd.f32 %v602, %v3742
    %v3744 = vpop.f32.mrf.mxu0
    %v3745 = vpop.f32.mrf.mxu0
    %v3746 = vadd.f32 %v602, %v3745
    %v3747 = vpop.f32.mrf.mxu0
    %3748 = vmatprep.mubr.bf16.mxu0 0
    %3749 = vmatmul.mubr.bf16.gmra.mxu0 %v1819
    %v3750 = vpop.f32.mrf.mxu0
    %v3751 = vadd.f32 %v602, %v3750
    %v3752 = vpop.f32.mrf.mxu0
    %v3753 = vpop.f32.mrf.mxu0
    %v3754 = vadd.f32 %v602, %v3753
    %v3755 = vpop.f32.mrf.mxu0
    %3756 = vmatprep.mubr.bf16.mxu0 0
    %3757 = vmatmul.mubr.bf16.gmra.mxu0 %v1820
    %v3758 = vpop.f32.mrf.mxu0
    %v3759 = vadd.f32 %v602, %v3758
    %v3760 = vpop.f32.mrf.mxu0
    %v3761 = vpop.f32.mrf.mxu0
    %v3762 = vadd.f32 %v602, %v3761
    %v3763 = vpop.f32.mrf.mxu0
    %3764 = vmatprep.mubr.bf16.mxu0 0
    %3765 = vmatmul.mubr.bf16.gmra.mxu0 %v1821
    %v3766 = vpop.f32.mrf.mxu0
    %v3767 = vadd.f32 %v602, %v3766
    %v3768 = vpop.f32.mrf.mxu0
    %v3769 = vpop.f32.mrf.mxu0
    %v3770 = vadd.f32 %v602, %v3769
    %v3771 = vpop.f32.mrf.mxu0
    %3772 = vmatprep.mubr.bf16.mxu0 0
    %3773 = vmatmul.mubr.bf16.gmra.mxu0 %v1822
    %v3774 = vpop.f32.mrf.mxu0
    %v3775 = vadd.f32 %v602, %v3774
    %v3776 = vpop.f32.mrf.mxu0
    %v3777 = vpop.f32.mrf.mxu0
    %v3778 = vadd.f32 %v602, %v3777
    %v3779 = vpop.f32.mrf.mxu0
    %3780 = vmatprep.mubr.bf16.mxu0 0
    %3781 = vmatmul.mubr.bf16.gmra.mxu0 %v1823
    %v3782 = vpop.f32.mrf.mxu0
    %v3783 = vadd.f32 %v602, %v3782
    %v3784 = vpop.f32.mrf.mxu0
    %v3785 = vpop.f32.mrf.mxu0
    %v3786 = vadd.f32 %v602, %v3785
    %v3787 = vpop.f32.mrf.mxu0
    %3788 = vmatprep.mubr.bf16.mxu0 0
    %3789 = vmatmul.mubr.bf16.gmra.mxu0 %v1824
    %v3790 = vpop.f32.mrf.mxu0
    %v3791 = vadd.f32 %v602, %v3790
    %v3792 = vpop.f32.mrf.mxu0
    %v3793 = vpop.f32.mrf.mxu0
    %v3794 = vadd.f32 %v602, %v3793
    %v3795 = vpop.f32.mrf.mxu0
    %3796 = vmatprep.mubr.bf16.mxu0 0
    %3797 = vmatmul.mubr.bf16.gmra.mxu0 %v1825
    %v3798 = vpop.f32.mrf.mxu0
    %v3799 = vadd.f32 %v602, %v3798
    %v3800 = vpop.f32.mrf.mxu0
    %v3801 = vpop.f32.mrf.mxu0
    %v3802 = vadd.f32 %v602, %v3801
    %v3803 = vpop.f32.mrf.mxu0
    %3804 = vmatprep.mubr.bf16.mxu0 0
    %3805 = vmatmul.mubr.bf16.gmra.mxu0 %v1826
    %v3806 = vpop.f32.mrf.mxu0
    %v3807 = vadd.f32 %v602, %v3806
    %v3808 = vpop.f32.mrf.mxu0
    %v3809 = vpop.f32.mrf.mxu0
    %v3810 = vadd.f32 %v602, %v3809
    %v3811 = vpop.f32.mrf.mxu0
    %3812 = vmatprep.mubr.bf16.mxu0 0
    %3813 = vmatmul.mubr.bf16.gmra.mxu0 %v1827
    %v3814 = vpop.f32.mrf.mxu0
    %v3815 = vadd.f32 %v602, %v3814
    %v3816 = vpop.f32.mrf.mxu0
    %v3817 = vpop.f32.mrf.mxu0
    %v3818 = vadd.f32 %v602, %v3817
    %v3819 = vpop.f32.mrf.mxu0
    %3820 = vmatprep.mubr.bf16.mxu0 0
    %3821 = vmatmul.mubr.bf16.gmra.mxu0 %v1828
    %v3822 = vpop.f32.mrf.mxu0
    %v3823 = vadd.f32 %v602, %v3822
    %v3824 = vpop.f32.mrf.mxu0
    %v3825 = vpop.f32.mrf.mxu0
    %v3826 = vadd.f32 %v602, %v3825
    %v3827 = vpop.f32.mrf.mxu0
    %3828 = vmatprep.mubr.bf16.mxu0 0
    %3829 = vmatmul.mubr.bf16.gmra.mxu0 %v1829
    %v3830 = vpop.f32.mrf.mxu0
    %v3831 = vadd.f32 %v602, %v3830
    %v3832 = vpop.f32.mrf.mxu0
    %v3833 = vpop.f32.mrf.mxu0
    %v3834 = vadd.f32 %v602, %v3833
    %v3835 = vpop.f32.mrf.mxu0
    %3836 = vmatprep.mubr.bf16.mxu0 0
    %3837 = vmatmul.mubr.bf16.gmra.mxu0 %v1830
    %v3838 = vpop.f32.mrf.mxu0
    %v3839 = vadd.f32 %v602, %v3838
    %v3840 = vpop.f32.mrf.mxu0
    %v3841 = vpop.f32.mrf.mxu0
    %v3842 = vadd.f32 %v602, %v3841
    %v3843 = vpop.f32.mrf.mxu0
    %3844 = vmatprep.mubr.bf16.mxu0 0
    %3845 = vmatmul.mubr.bf16.gmra.mxu0 %v1831
    %v3846 = vpop.f32.mrf.mxu0
    %v3847 = vadd.f32 %v602, %v3846
    %v3848 = vpop.f32.mrf.mxu0
    %v3849 = vpop.f32.mrf.mxu0
    %v3850 = vadd.f32 %v602, %v3849
    %v3851 = vpop.f32.mrf.mxu0
    %3852 = vmatprep.mubr.bf16.mxu0 0
    %3853 = vmatmul.mubr.bf16.gmra.mxu0 %v1832
    %v3854 = vpop.f32.mrf.mxu0
    %v3855 = vadd.f32 %v602, %v3854
    %v3856 = vpop.f32.mrf.mxu0
    %v3857 = vpop.f32.mrf.mxu0
    %v3858 = vadd.f32 %v602, %v3857
    %v3859 = vpop.f32.mrf.mxu0
    %3860 = vmatprep.mubr.bf16.mxu0 0
    %3861 = vmatmul.mubr.bf16.gmra.mxu0 %v1833
    %v3862 = vpop.f32.mrf.mxu0
    %v3863 = vadd.f32 %v602, %v3862
    %v3864 = vpop.f32.mrf.mxu0
    %v3865 = vpop.f32.mrf.mxu0
    %v3866 = vadd.f32 %v602, %v3865
    %v3867 = vpop.f32.mrf.mxu0
    %3868 = vmatprep.mubr.bf16.mxu0 0
    %3869 = vmatmul.mubr.bf16.gmra.mxu0 %v1834
    %v3870 = vpop.f32.mrf.mxu0
    %v3871 = vadd.f32 %v602, %v3870
    %v3872 = vpop.f32.mrf.mxu0
    %v3873 = vpop.f32.mrf.mxu0
    %v3874 = vadd.f32 %v602, %v3873
    %v3875 = vpop.f32.mrf.mxu0
    %3876 = vmatprep.mubr.bf16.mxu0 0
    %3877 = vmatmul.mubr.bf16.gmra.mxu0 %v1835
    %v3878 = vpop.f32.mrf.mxu0
    %v3879 = vadd.f32 %v602, %v3878
    %v3880 = vpop.f32.mrf.mxu0
    %v3881 = vpop.f32.mrf.mxu0
    %v3882 = vadd.f32 %v602, %v3881
    %v3883 = vpop.f32.mrf.mxu0
    %3884 = vmatprep.mubr.bf16.mxu0 0
    %3885 = vmatmul.mubr.bf16.gmra.mxu0 %v1836
    %v3886 = vpop.f32.mrf.mxu0
    %v3887 = vadd.f32 %v602, %v3886
    %v3888 = vpop.f32.mrf.mxu0
    %v3889 = vpop.f32.mrf.mxu0
    %v3890 = vadd.f32 %v602, %v3889
    %v3891 = vpop.f32.mrf.mxu0
    %3892 = vmatprep.mubr.bf16.mxu0 0
    %3893 = vmatmul.mubr.bf16.gmra.mxu0 %v1837
    %v3894 = vpop.f32.mrf.mxu0
    %v3895 = vadd.f32 %v602, %v3894
    %v3896 = vpop.f32.mrf.mxu0
    %v3897 = vpop.f32.mrf.mxu0
    %v3898 = vadd.f32 %v602, %v3897
    %v3899 = vpop.f32.mrf.mxu0
    %3900 = vmatprep.mubr.bf16.mxu0 0
    %3901 = vmatmul.mubr.bf16.gmra.mxu0 %v1838
    %v3902 = vpop.f32.mrf.mxu0
    %v3903 = vadd.f32 %v602, %v3902
    %v3904 = vpop.f32.mrf.mxu0
    %v3905 = vpop.f32.mrf.mxu0
    %v3906 = vadd.f32 %v602, %v3905
    %v3907 = vpop.f32.mrf.mxu0
    %3908 = vmatprep.mubr.bf16.mxu0 0
    %3909 = vmatmul.mubr.bf16.gmra.mxu0 %v1839
    %v3910 = vpop.f32.mrf.mxu0
    %v3911 = vadd.f32 %v602, %v3910
    %v3912 = vpop.f32.mrf.mxu0
    %v3913 = vpop.f32.mrf.mxu0
    %v3914 = vadd.f32 %v602, %v3913
    %v3915 = vpop.f32.mrf.mxu0
    %3916 = vmatprep.mubr.bf16.mxu0 0
    %3917 = vmatmul.mubr.bf16.gmra.mxu0 %v1840
    %v3918 = vpop.f32.mrf.mxu0
    %v3919 = vadd.f32 %v602, %v3918
    %v3920 = vpop.f32.mrf.mxu0
    %v3921 = vpop.f32.mrf.mxu0
    %v3922 = vadd.f32 %v602, %v3921
    %v3923 = vpop.f32.mrf.mxu0
    %3924 = vmatprep.mubr.bf16.mxu0 0
    %3925 = vmatmul.mubr.bf16.gmra.mxu0 %v1841
    %v3926 = vpop.f32.mrf.mxu0
    %v3927 = vadd.f32 %v602, %v3926
    %v3928 = vpop.f32.mrf.mxu0
    %v3929 = vpop.f32.mrf.mxu0
    %v3930 = vadd.f32 %v602, %v3929
    %v3931 = vpop.f32.mrf.mxu0
    %3932 = vmatprep.mubr.bf16.mxu0 0
    %3933 = vmatmul.mubr.bf16.gmra.mxu0 %v1842
    %v3934 = vpop.f32.mrf.mxu0
    %v3935 = vadd.f32 %v602, %v3934
    %v3936 = vpop.f32.mrf.mxu0
    %v3937 = vpop.f32.mrf.mxu0
    %v3938 = vadd.f32 %v602, %v3937
    %v3939 = vpop.f32.mrf.mxu0
    %3940 = vmatprep.mubr.bf16.mxu0 0
    %3941 = vmatmul.mubr.bf16.gmra.mxu0 %v1843
    %v3942 = vpop.f32.mrf.mxu0
    %v3943 = vadd.f32 %v602, %v3942
    %v3944 = vpop.f32.mrf.mxu0
    %v3945 = vpop.f32.mrf.mxu0
    %v3946 = vadd.f32 %v602, %v3945
    %v3947 = vpop.f32.mrf.mxu0
    %3948 = vmatprep.mubr.bf16.mxu0 0
    %3949 = vmatmul.mubr.bf16.gmra.mxu0 %v1844
    %v3950 = vpop.f32.mrf.mxu0
    %v3951 = vadd.f32 %v602, %v3950
    %v3952 = vpop.f32.mrf.mxu0
    %v3953 = vpop.f32.mrf.mxu0
    %v3954 = vadd.f32 %v602, %v3953
    %v3955 = vpop.f32.mrf.mxu0
    %3956 = vmatprep.mubr.bf16.mxu0 0
    %3957 = vmatmul.mubr.bf16.gmra.mxu0 %v1845
    %v3958 = vpop.f32.mrf.mxu0
    %v3959 = vadd.f32 %v602, %v3958
    %v3960 = vpop.f32.mrf.mxu0
    %v3961 = vpop.f32.mrf.mxu0
    %v3962 = vadd.f32 %v602, %v3961
    %v3963 = vpop.f32.mrf.mxu0
    %3964 = vmatprep.mubr.bf16.mxu0 0
    %3965 = vmatmul.mubr.bf16.gmra.mxu0 %v1846
    %v3966 = vpop.f32.mrf.mxu0
    %v3967 = vadd.f32 %v602, %v3966
    %v3968 = vpop.f32.mrf.mxu0
    %v3969 = vpop.f32.mrf.mxu0
    %v3970 = vadd.f32 %v602, %v3969
    %v3971 = vpop.f32.mrf.mxu0
    %3972 = vmatprep.mubr.bf16.mxu0 0
    %3973 = vmatmul.mubr.bf16.gmra.mxu0 %v1847
    %v3974 = vpop.f32.mrf.mxu0
    %v3975 = vadd.f32 %v602, %v3974
    %v3976 = vpop.f32.mrf.mxu0
    %v3977 = vpop.f32.mrf.mxu0
    %v3978 = vadd.f32 %v602, %v3977
    %v3979 = vpop.f32.mrf.mxu0
    %3980 = vmatprep.mubr.bf16.mxu0 0
    %3981 = vmatmul.mubr.bf16.gmra.mxu0 %v1848
    %v3982 = vpop.f32.mrf.mxu0
    %v3983 = vadd.f32 %v602, %v3982
    %v3984 = vpop.f32.mrf.mxu0
    %v3985 = vpop.f32.mrf.mxu0
    %v3986 = vadd.f32 %v602, %v3985
    %v3987 = vpop.f32.mrf.mxu0
    %3988 = vmatprep.mubr.bf16.mxu0 0
    %3989 = vmatmul.mubr.bf16.gmra.mxu0 %v1849
    %v3990 = vpop.f32.mrf.mxu0
    %v3991 = vadd.f32 %v602, %v3990
    %v3992 = vpop.f32.mrf.mxu0
    %v3993 = vpop.f32.mrf.mxu0
    %v3994 = vadd.f32 %v602, %v3993
    %v3995 = vpop.f32.mrf.mxu0
    %3996 = vmatprep.mubr.bf16.mxu0 0
    %3997 = vmatmul.mubr.bf16.gmra.mxu0 %v1850
    %v3998 = vpop.f32.mrf.mxu0
    %v3999 = vadd.f32 %v602, %v3998
    %v4000 = vpop.f32.mrf.mxu0
    %v4001 = vpop.f32.mrf.mxu0
    %v4002 = vadd.f32 %v602, %v4001
    %v4003 = vpop.f32.mrf.mxu0
    %4004 = vmatprep.mubr.bf16.mxu0 0
    %4005 = vmatmul.mubr.bf16.gmra.mxu0 %v1851
    %v4006 = vpop.f32.mrf.mxu0
    %v4007 = vadd.f32 %v602, %v4006
    %v4008 = vpop.f32.mrf.mxu0
    %v4009 = vpop.f32.mrf.mxu0
    %v4010 = vadd.f32 %v602, %v4009
    %v4011 = vpop.f32.mrf.mxu0
    %4012 = vmatprep.mubr.bf16.mxu0 0
    %4013 = vmatmul.mubr.bf16.gmra.mxu0 %v1852
    %v4014 = vpop.f32.mrf.mxu0
    %v4015 = vadd.f32 %v602, %v4014
    %v4016 = vpop.f32.mrf.mxu0
    %v4017 = vpop.f32.mrf.mxu0
    %v4018 = vadd.f32 %v602, %v4017
    %v4019 = vpop.f32.mrf.mxu0
    %4020 = vmatprep.mubr.bf16.mxu0 0
    %4021 = vmatmul.mubr.bf16.gmra.mxu0 %v1853
    %v4022 = vpop.f32.mrf.mxu0
    %v4023 = vadd.f32 %v602, %v4022
    %v4024 = vpop.f32.mrf.mxu0
    %v4025 = vpop.f32.mrf.mxu0
    %v4026 = vadd.f32 %v602, %v4025
    %v4027 = vpop.f32.mrf.mxu0
    %4028 = vmatprep.mubr.bf16.mxu0 0
    %4029 = vmatmul.mubr.bf16.gmra.mxu0 %v1854
    %v4030 = vpop.f32.mrf.mxu0
    %v4031 = vadd.f32 %v602, %v4030
    %v4032 = vpop.f32.mrf.mxu0
    %v4033 = vpop.f32.mrf.mxu0
    %v4034 = vadd.f32 %v602, %v4033
    %v4035 = vpop.f32.mrf.mxu0
    %4036 = vmatprep.mubr.bf16.mxu0 0
    %4037 = vmatmul.mubr.bf16.gmra.mxu0 %v1855
    %v4038 = vpop.f32.mrf.mxu0
    %v4039 = vadd.f32 %v602, %v4038
    %v4040 = vpop.f32.mrf.mxu0
    %v4041 = vpop.f32.mrf.mxu0
    %v4042 = vadd.f32 %v602, %v4041
    %v4043 = vpop.f32.mrf.mxu0
    %4044 = vmatprep.mubr.bf16.mxu0 0
    %4045 = vmatmul.mubr.bf16.gmra.mxu0 %v1856
    %v4046 = vpop.f32.mrf.mxu0
    %v4047 = vadd.f32 %v602, %v4046
    %v4048 = vpop.f32.mrf.mxu0
    %v4049 = vpop.f32.mrf.mxu0
    %v4050 = vadd.f32 %v602, %v4049
    %v4051 = vpop.f32.mrf.mxu0
    %4052 = vmatprep.mubr.bf16.mxu0 0
    %4053 = vmatmul.mubr.bf16.gmra.mxu0 %v1857
    %v4054 = vpop.f32.mrf.mxu0
    %v4055 = vadd.f32 %v602, %v4054
    %v4056 = vpop.f32.mrf.mxu0
    %v4057 = vpop.f32.mrf.mxu0
    %v4058 = vadd.f32 %v602, %v4057
    %v4059 = vpop.f32.mrf.mxu0
    %4060 = vmatprep.mubr.bf16.mxu0 0
    %4061 = vmatmul.mubr.bf16.gmra.mxu0 %v1858
    %v4062 = vpop.f32.mrf.mxu0
    %v4063 = vadd.f32 %v602, %v4062
    %v4064 = vpop.f32.mrf.mxu0
    %v4065 = vpop.f32.mrf.mxu0
    %v4066 = vadd.f32 %v602, %v4065
    %v4067 = vpop.f32.mrf.mxu0
    %4068 = vmatprep.mubr.bf16.mxu0 0
    %4069 = vmatmul.mubr.bf16.gmra.mxu0 %v1859
    %v4070 = vpop.f32.mrf.mxu0
    %v4071 = vadd.f32 %v602, %v4070
    %v4072 = vpop.f32.mrf.mxu0
    %v4073 = vpop.f32.mrf.mxu0
    %v4074 = vadd.f32 %v602, %v4073
    %v4075 = vpop.f32.mrf.mxu0
    %4076 = vmatprep.mubr.bf16.mxu0 0
    %4077 = vmatmul.mubr.bf16.gmra.mxu0 %v1860
    %v4078 = vpop.f32.mrf.mxu0
    %v4079 = vadd.f32 %v602, %v4078
    %v4080 = vpop.f32.mrf.mxu0
    %v4081 = vpop.f32.mrf.mxu0
    %v4082 = vadd.f32 %v602, %v4081
    %v4083 = vpop.f32.mrf.mxu0
    %4084 = vmatprep.mubr.bf16.mxu0 0
    %4085 = vmatmul.mubr.bf16.gmra.mxu0 %v1861
    %v4086 = vpop.f32.mrf.mxu0
    %v4087 = vadd.f32 %v602, %v4086
    %v4088 = vpop.f32.mrf.mxu0
    %v4089 = vpop.f32.mrf.mxu0
    %v4090 = vadd.f32 %v602, %v4089
    %v4091 = vpop.f32.mrf.mxu0
    %4092 = vmatprep.mubr.bf16.mxu0 0
    %4093 = vmatmul.mubr.bf16.gmra.mxu0 %v1862
    %v4094 = vpop.f32.mrf.mxu0
    %v4095 = vadd.f32 %v602, %v4094
    %v4096 = vpop.f32.mrf.mxu0
    %v4097 = vpop.f32.mrf.mxu0
    %v4098 = vadd.f32 %v602, %v4097
    %v4099 = vpop.f32.mrf.mxu0
    %4100 = vmatprep.mubr.bf16.mxu0 0
    %4101 = vmatmul.mubr.bf16.gmra.mxu0 %v1863
    %v4102 = vpop.f32.mrf.mxu0
    %v4103 = vadd.f32 %v602, %v4102
    %v4104 = vpop.f32.mrf.mxu0
    %v4105 = vpop.f32.mrf.mxu0
    %v4106 = vadd.f32 %v602, %v4105
    %v4107 = vpop.f32.mrf.mxu0
    %4108 = vmatprep.mubr.bf16.mxu0 0
    %4109 = vmatmul.mubr.bf16.gmra.mxu0 %v1864
    %v4110 = vpop.f32.mrf.mxu0
    %v4111 = vadd.f32 %v602, %v4110
    %v4112 = vpop.f32.mrf.mxu0
    %v4113 = vpop.f32.mrf.mxu0
    %v4114 = vadd.f32 %v602, %v4113
    %v4115 = vpop.f32.mrf.mxu0
    %4116 = vmatprep.mubr.bf16.mxu0 0
    %4117 = vmatmul.mubr.bf16.gmra.mxu0 %v1865
    %v4118 = vpop.f32.mrf.mxu0
    %v4119 = vadd.f32 %v602, %v4118
    %v4120 = vpop.f32.mrf.mxu0
    %v4121 = vpop.f32.mrf.mxu0
    %v4122 = vadd.f32 %v602, %v4121
    %v4123 = vpop.f32.mrf.mxu0
    %4124 = vmatprep.mubr.bf16.mxu0 0
    %4125 = vmatmul.mubr.bf16.gmra.mxu0 %v1866
    %v4126 = vpop.f32.mrf.mxu0
    %v4127 = vadd.f32 %v602, %v4126
    %v4128 = vpop.f32.mrf.mxu0
    %v4129 = vpop.f32.mrf.mxu0
    %v4130 = vadd.f32 %v602, %v4129
    %v4131 = vpop.f32.mrf.mxu0
    %4132 = vmatprep.mubr.bf16.mxu0 0
    %4133 = vmatmul.mubr.bf16.gmra.mxu0 %v1867
    %v4134 = vpop.f32.mrf.mxu0
    %v4135 = vadd.f32 %v602, %v4134
    %v4136 = vpop.f32.mrf.mxu0
    %v4137 = vpop.f32.mrf.mxu0
    %v4138 = vadd.f32 %v602, %v4137
    %v4139 = vpop.f32.mrf.mxu0
    %4140 = vmatprep.mubr.bf16.mxu0 0
    %4141 = vmatmul.mubr.bf16.gmra.mxu0 %v1868
    %v4142 = vpop.f32.mrf.mxu0
    %v4143 = vadd.f32 %v602, %v4142
    %v4144 = vpop.f32.mrf.mxu0
    %v4145 = vpop.f32.mrf.mxu0
    %v4146 = vadd.f32 %v602, %v4145
    %v4147 = vpop.f32.mrf.mxu0
    %4148 = vmatprep.mubr.bf16.mxu0 0
    %4149 = vmatmul.mubr.bf16.gmra.mxu0 %v1869
    %v4150 = vpop.f32.mrf.mxu0
    %v4151 = vadd.f32 %v602, %v4150
    %v4152 = vpop.f32.mrf.mxu0
    %v4153 = vpop.f32.mrf.mxu0
    %v4154 = vadd.f32 %v602, %v4153
    %v4155 = vpop.f32.mrf.mxu0
    %4156 = vmatprep.mubr.bf16.mxu0 0
    %4157 = vmatmul.mubr.bf16.gmra.mxu0 %v1870
    %v4158 = vpop.f32.mrf.mxu0
    %v4159 = vadd.f32 %v602, %v4158
    %v4160 = vpop.f32.mrf.mxu0
    %v4161 = vpop.f32.mrf.mxu0
    %v4162 = vadd.f32 %v602, %v4161
    %v4163 = vpop.f32.mrf.mxu0
    %4164 = vmatprep.mubr.bf16.mxu0 0
    %4165 = vmatmul.mubr.bf16.gmra.mxu0 %v1871
    %v4166 = vpop.f32.mrf.mxu0
    %v4167 = vadd.f32 %v602, %v4166
    %v4168 = vpop.f32.mrf.mxu0
    %v4169 = vpop.f32.mrf.mxu0
    %v4170 = vadd.f32 %v602, %v4169
    %v4171 = vpop.f32.mrf.mxu0
    %4172 = vmatprep.mubr.bf16.mxu0 0
    %4173 = vmatmul.mubr.bf16.gmra.mxu0 %v1872
    %v4174 = vpop.f32.mrf.mxu0
    %v4175 = vadd.f32 %v602, %v4174
    %v4176 = vpop.f32.mrf.mxu0
    %v4177 = vpop.f32.mrf.mxu0
    %v4178 = vadd.f32 %v602, %v4177
    %v4179 = vpop.f32.mrf.mxu0
    %4180 = vmatprep.mubr.bf16.mxu0 0
    %4181 = vmatmul.mubr.bf16.gmra.mxu0 %v1873
    %v4182 = vpop.f32.mrf.mxu0
    %v4183 = vadd.f32 %v602, %v4182
    %v4184 = vpop.f32.mrf.mxu0
    %v4185 = vpop.f32.mrf.mxu0
    %v4186 = vadd.f32 %v602, %v4185
    %v4187 = vpop.f32.mrf.mxu0
    %4188 = vmatprep.mubr.bf16.mxu0 0
    %4189 = vmatmul.mubr.bf16.gmra.mxu0 %v1874
    %v4190 = vpop.f32.mrf.mxu0
    %v4191 = vadd.f32 %v602, %v4190
    %v4192 = vpop.f32.mrf.mxu0
    %v4193 = vpop.f32.mrf.mxu0
    %v4194 = vadd.f32 %v602, %v4193
    %v4195 = vpop.f32.mrf.mxu0
    %4196 = vmatprep.mubr.bf16.mxu0 0
    %4197 = vmatmul.mubr.bf16.gmra.mxu0 %v1875
    %v4198 = vpop.f32.mrf.mxu0
    %v4199 = vadd.f32 %v602, %v4198
    %v4200 = vpop.f32.mrf.mxu0
    %v4201 = vpop.f32.mrf.mxu0
    %v4202 = vadd.f32 %v602, %v4201
    %v4203 = vpop.f32.mrf.mxu0
    %4204 = vmatprep.mubr.bf16.mxu0 0
    %4205 = vmatmul.mubr.bf16.gmra.mxu0 %v1876
    %v4206 = vpop.f32.mrf.mxu0
    %v4207 = vadd.f32 %v602, %v4206
    %v4208 = vpop.f32.mrf.mxu0
    %v4209 = vpop.f32.mrf.mxu0
    %v4210 = vadd.f32 %v602, %v4209
    %v4211 = vpop.f32.mrf.mxu0
    %4212 = vmatprep.mubr.bf16.mxu0 0
    %4213 = vmatmul.mubr.bf16.gmra.mxu0 %v1877
    %v4214 = vpop.f32.mrf.mxu0
    %v4215 = vadd.f32 %v602, %v4214
    %v4216 = vpop.f32.mrf.mxu0
    %v4217 = vpop.f32.mrf.mxu0
    %v4218 = vadd.f32 %v602, %v4217
    %v4219 = vpop.f32.mrf.mxu0
    %4220 = vmatprep.mubr.bf16.mxu0 0
    %4221 = vmatmul.mubr.bf16.gmra.mxu0 %v1878
    %v4222 = vpop.f32.mrf.mxu0
    %v4223 = vadd.f32 %v602, %v4222
    %v4224 = vpop.f32.mrf.mxu0
    %v4225 = vpop.f32.mrf.mxu0
    %v4226 = vadd.f32 %v602, %v4225
    %v4227 = vpop.f32.mrf.mxu0
    %4228 = vmatprep.mubr.bf16.mxu0 0
    %4229 = vmatmul.mubr.bf16.gmra.mxu0 %v1879
    %v4230 = vpop.f32.mrf.mxu0
    %v4231 = vadd.f32 %v602, %v4230
    %v4232 = vpop.f32.mrf.mxu0
    %v4233 = vpop.f32.mrf.mxu0
    %v4234 = vadd.f32 %v602, %v4233
    %v4235 = vpop.f32.mrf.mxu0
    %4236 = vmatprep.mubr.bf16.mxu0 0
    %4237 = vmatmul.mubr.bf16.gmra.mxu0 %v1880
    %v4238 = vpop.f32.mrf.mxu0
    %v4239 = vadd.f32 %v602, %v4238
    %v4240 = vpop.f32.mrf.mxu0
    %v4241 = vpop.f32.mrf.mxu0
    %v4242 = vadd.f32 %v602, %v4241
    %v4243 = vpop.f32.mrf.mxu0
    %4244 = vmatprep.mubr.bf16.mxu0 0
    %4245 = vmatmul.mubr.bf16.gmra.mxu0 %v1881
    %v4246 = vpop.f32.mrf.mxu0
    %v4247 = vadd.f32 %v602, %v4246
    %v4248 = vpop.f32.mrf.mxu0
    %v4249 = vpop.f32.mrf.mxu0
    %v4250 = vadd.f32 %v602, %v4249
    %v4251 = vpop.f32.mrf.mxu0
    %4252 = vmatprep.mubr.bf16.mxu0 0
    %4253 = vmatmul.mubr.bf16.gmra.mxu0 %v1882
    %v4254 = vpop.f32.mrf.mxu0
    %v4255 = vadd.f32 %v602, %v4254
    %v4256 = vpop.f32.mrf.mxu0
    %v4257 = vpop.f32.mrf.mxu0
    %v4258 = vadd.f32 %v602, %v4257
    %v4259 = vpop.f32.mrf.mxu0
    %4260 = vmatprep.mubr.bf16.mxu0 0
    %4261 = vmatmul.mubr.bf16.gmra.mxu0 %v1883
    %v4262 = vpop.f32.mrf.mxu0
    %v4263 = vadd.f32 %v602, %v4262
    %v4264 = vpop.f32.mrf.mxu0
    %v4265 = vpop.f32.mrf.mxu0
    %v4266 = vadd.f32 %v602, %v4265
    %v4267 = vpop.f32.mrf.mxu0
    %4268 = vdwg.mxu0
    %v4269 = vmax.f32 %v2223, 0.0
    %v4270 = vmax.f32 %v2226, 0.0
    %v4271 = vmax.f32 %v2231, 0.0
    %v4272 = vmax.f32 %v2234, 0.0
    %v4273 = vmax.f32 %v2239, 0.0
    %v4274 = vmax.f32 %v2242, 0.0
    %v4275 = vmax.f32 %v2247, 0.0
    %v4276 = vmax.f32 %v2250, 0.0
    %v4277 = vmax.f32 %v2255, 0.0
    %v4278 = vmax.f32 %v2258, 0.0
    %v4279 = vmax.f32 %v2263, 0.0
    %v4280 = vmax.f32 %v2266, 0.0
    %v4281 = vmax.f32 %v2271, 0.0
    %v4282 = vmax.f32 %v2274, 0.0
    %v4283 = vmax.f32 %v2279, 0.0
    %v4284 = vmax.f32 %v2282, 0.0
    %v4285 = vmax.f32 %v2287, 0.0
    %v4286 = vmax.f32 %v2290, 0.0
    %v4287 = vmax.f32 %v2295, 0.0
    %v4288 = vmax.f32 %v2298, 0.0
    %v4289 = vmax.f32 %v2303, 0.0
    %v4290 = vmax.f32 %v2306, 0.0
    %v4291 = vmax.f32 %v2311, 0.0
    %v4292 = vmax.f32 %v2314, 0.0
    %v4293 = vmax.f32 %v2319, 0.0
    %v4294 = vmax.f32 %v2322, 0.0
    %v4295 = vmax.f32 %v2327, 0.0
    %v4296 = vmax.f32 %v2330, 0.0
    %v4297 = vmax.f32 %v2335, 0.0
    %v4298 = vmax.f32 %v2338, 0.0
    %v4299 = vmax.f32 %v2343, 0.0
    %v4300 = vmax.f32 %v2346, 0.0
    %v4301 = vmax.f32 %v2351, 0.0
    %v4302 = vmax.f32 %v2354, 0.0
    %v4303 = vmax.f32 %v2359, 0.0
    %v4304 = vmax.f32 %v2362, 0.0
    %v4305 = vmax.f32 %v2367, 0.0
    %v4306 = vmax.f32 %v2370, 0.0
    %v4307 = vmax.f32 %v2375, 0.0
    %v4308 = vmax.f32 %v2378, 0.0
    %v4309 = vmax.f32 %v2383, 0.0
    %v4310 = vmax.f32 %v2386, 0.0
    %v4311 = vmax.f32 %v2391, 0.0
    %v4312 = vmax.f32 %v2394, 0.0
    %v4313 = vmax.f32 %v2399, 0.0
    %v4314 = vmax.f32 %v2402, 0.0
    %v4315 = vmax.f32 %v2407, 0.0
    %v4316 = vmax.f32 %v2410, 0.0
    %v4317 = vmax.f32 %v2415, 0.0
    %v4318 = vmax.f32 %v2418, 0.0
    %v4319 = vmax.f32 %v2423, 0.0
    %v4320 = vmax.f32 %v2426, 0.0
    %v4321 = vmax.f32 %v2431, 0.0
    %v4322 = vmax.f32 %v2434, 0.0
    %v4323 = vmax.f32 %v2439, 0.0
    %v4324 = vmax.f32 %v2442, 0.0
    %v4325 = vmax.f32 %v2447, 0.0
    %v4326 = vmax.f32 %v2450, 0.0
    %v4327 = vmax.f32 %v2455, 0.0
    %v4328 = vmax.f32 %v2458, 0.0
    %v4329 = vmax.f32 %v2463, 0.0
    %v4330 = vmax.f32 %v2466, 0.0
    %v4331 = vmax.f32 %v2471, 0.0
    %v4332 = vmax.f32 %v2474, 0.0
    %v4333 = vmax.f32 %v2479, 0.0
    %v4334 = vmax.f32 %v2482, 0.0
    %v4335 = vmax.f32 %v2487, 0.0
    %v4336 = vmax.f32 %v2490, 0.0
    %v4337 = vmax.f32 %v2495, 0.0
    %v4338 = vmax.f32 %v2498, 0.0
    %v4339 = vmax.f32 %v2503, 0.0
    %v4340 = vmax.f32 %v2506, 0.0
    %v4341 = vmax.f32 %v2511, 0.0
    %v4342 = vmax.f32 %v2514, 0.0
    %v4343 = vmax.f32 %v2519, 0.0
    %v4344 = vmax.f32 %v2522, 0.0
    %v4345 = vmax.f32 %v2527, 0.0
    %v4346 = vmax.f32 %v2530, 0.0
    %v4347 = vmax.f32 %v2535, 0.0
    %v4348 = vmax.f32 %v2538, 0.0
    %v4349 = vmax.f32 %v2543, 0.0
    %v4350 = vmax.f32 %v2546, 0.0
    %v4351 = vmax.f32 %v2551, 0.0
    %v4352 = vmax.f32 %v2554, 0.0
    %v4353 = vmax.f32 %v2559, 0.0
    %v4354 = vmax.f32 %v2562, 0.0
    %v4355 = vmax.f32 %v2567, 0.0
    %v4356 = vmax.f32 %v2570, 0.0
    %v4357 = vmax.f32 %v2575, 0.0
    %v4358 = vmax.f32 %v2578, 0.0
    %v4359 = vmax.f32 %v2583, 0.0
    %v4360 = vmax.f32 %v2586, 0.0
    %v4361 = vmax.f32 %v2591, 0.0
    %v4362 = vmax.f32 %v2594, 0.0
    %v4363 = vmax.f32 %v2599, 0.0
    %v4364 = vmax.f32 %v2602, 0.0
    %v4365 = vmax.f32 %v2607, 0.0
    %v4366 = vmax.f32 %v2610, 0.0
    %v4367 = vmax.f32 %v2615, 0.0
    %v4368 = vmax.f32 %v2618, 0.0
    %v4369 = vmax.f32 %v2623, 0.0
    %v4370 = vmax.f32 %v2626, 0.0
    %v4371 = vmax.f32 %v2631, 0.0
    %v4372 = vmax.f32 %v2634, 0.0
    %v4373 = vmax.f32 %v2639, 0.0
    %v4374 = vmax.f32 %v2642, 0.0
    %v4375 = vmax.f32 %v2647, 0.0
    %v4376 = vmax.f32 %v2650, 0.0
    %v4377 = vmax.f32 %v2655, 0.0
    %v4378 = vmax.f32 %v2658, 0.0
    %v4379 = vmax.f32 %v2663, 0.0
    %v4380 = vmax.f32 %v2666, 0.0
    %v4381 = vmax.f32 %v2671, 0.0
    %v4382 = vmax.f32 %v2674, 0.0
    %v4383 = vmax.f32 %v2679, 0.0
    %v4384 = vmax.f32 %v2682, 0.0
    %v4385 = vmax.f32 %v2687, 0.0
    %v4386 = vmax.f32 %v2690, 0.0
    %v4387 = vmax.f32 %v2695, 0.0
    %v4388 = vmax.f32 %v2698, 0.0
    %v4389 = vmax.f32 %v2703, 0.0
    %v4390 = vmax.f32 %v2706, 0.0
    %v4391 = vmax.f32 %v2711, 0.0
    %v4392 = vmax.f32 %v2714, 0.0
    %v4393 = vmax.f32 %v2719, 0.0
    %v4394 = vmax.f32 %v2722, 0.0
    %v4395 = vmax.f32 %v2727, 0.0
    %v4396 = vmax.f32 %v2730, 0.0
    %v4397 = vmax.f32 %v2735, 0.0
    %v4398 = vmax.f32 %v2738, 0.0
    %v4399 = vmax.f32 %v2743, 0.0
    %v4400 = vmax.f32 %v2746, 0.0
    %v4401 = vmax.f32 %v2751, 0.0
    %v4402 = vmax.f32 %v2754, 0.0
    %v4403 = vmax.f32 %v2759, 0.0
    %v4404 = vmax.f32 %v2762, 0.0
    %v4405 = vmax.f32 %v2767, 0.0
    %v4406 = vmax.f32 %v2770, 0.0
    %v4407 = vmax.f32 %v2775, 0.0
    %v4408 = vmax.f32 %v2778, 0.0
    %v4409 = vmax.f32 %v2783, 0.0
    %v4410 = vmax.f32 %v2786, 0.0
    %v4411 = vmax.f32 %v2791, 0.0
    %v4412 = vmax.f32 %v2794, 0.0
    %v4413 = vmax.f32 %v2799, 0.0
    %v4414 = vmax.f32 %v2802, 0.0
    %v4415 = vmax.f32 %v2807, 0.0
    %v4416 = vmax.f32 %v2810, 0.0
    %v4417 = vmax.f32 %v2815, 0.0
    %v4418 = vmax.f32 %v2818, 0.0
    %v4419 = vmax.f32 %v2823, 0.0
    %v4420 = vmax.f32 %v2826, 0.0
    %v4421 = vmax.f32 %v2831, 0.0
    %v4422 = vmax.f32 %v2834, 0.0
    %v4423 = vmax.f32 %v2839, 0.0
    %v4424 = vmax.f32 %v2842, 0.0
    %v4425 = vmax.f32 %v2847, 0.0
    %v4426 = vmax.f32 %v2850, 0.0
    %v4427 = vmax.f32 %v2855, 0.0
    %v4428 = vmax.f32 %v2858, 0.0
    %v4429 = vmax.f32 %v2863, 0.0
    %v4430 = vmax.f32 %v2866, 0.0
    %v4431 = vmax.f32 %v2871, 0.0
    %v4432 = vmax.f32 %v2874, 0.0
    %v4433 = vmax.f32 %v2879, 0.0
    %v4434 = vmax.f32 %v2882, 0.0
    %v4435 = vmax.f32 %v2887, 0.0
    %v4436 = vmax.f32 %v2890, 0.0
    %v4437 = vmax.f32 %v2895, 0.0
    %v4438 = vmax.f32 %v2898, 0.0
    %v4439 = vmax.f32 %v2903, 0.0
    %v4440 = vmax.f32 %v2906, 0.0
    %v4441 = vmax.f32 %v2911, 0.0
    %v4442 = vmax.f32 %v2914, 0.0
    %v4443 = vmax.f32 %v2919, 0.0
    %v4444 = vmax.f32 %v2922, 0.0
    %v4445 = vmax.f32 %v2927, 0.0
    %v4446 = vmax.f32 %v2930, 0.0
    %v4447 = vmax.f32 %v2935, 0.0
    %v4448 = vmax.f32 %v2938, 0.0
    %v4449 = vmax.f32 %v2943, 0.0
    %v4450 = vmax.f32 %v2946, 0.0
    %v4451 = vmax.f32 %v2951, 0.0
    %v4452 = vmax.f32 %v2954, 0.0
    %v4453 = vmax.f32 %v2959, 0.0
    %v4454 = vmax.f32 %v2962, 0.0
    %v4455 = vmax.f32 %v2967, 0.0
    %v4456 = vmax.f32 %v2970, 0.0
    %v4457 = vmax.f32 %v2975, 0.0
    %v4458 = vmax.f32 %v2978, 0.0
    %v4459 = vmax.f32 %v2983, 0.0
    %v4460 = vmax.f32 %v2986, 0.0
    %v4461 = vmax.f32 %v2991, 0.0
    %v4462 = vmax.f32 %v2994, 0.0
    %v4463 = vmax.f32 %v2999, 0.0
    %v4464 = vmax.f32 %v3002, 0.0
    %v4465 = vmax.f32 %v3007, 0.0
    %v4466 = vmax.f32 %v3010, 0.0
    %v4467 = vmax.f32 %v3015, 0.0
    %v4468 = vmax.f32 %v3018, 0.0
    %v4469 = vmax.f32 %v3023, 0.0
    %v4470 = vmax.f32 %v3026, 0.0
    %v4471 = vmax.f32 %v3031, 0.0
    %v4472 = vmax.f32 %v3034, 0.0
    %v4473 = vmax.f32 %v3039, 0.0
    %v4474 = vmax.f32 %v3042, 0.0
    %v4475 = vmax.f32 %v3047, 0.0
    %v4476 = vmax.f32 %v3050, 0.0
    %v4477 = vmax.f32 %v3055, 0.0
    %v4478 = vmax.f32 %v3058, 0.0
    %v4479 = vmax.f32 %v3063, 0.0
    %v4480 = vmax.f32 %v3066, 0.0
    %v4481 = vmax.f32 %v3071, 0.0
    %v4482 = vmax.f32 %v3074, 0.0
    %v4483 = vmax.f32 %v3079, 0.0
    %v4484 = vmax.f32 %v3082, 0.0
    %v4485 = vmax.f32 %v3087, 0.0
    %v4486 = vmax.f32 %v3090, 0.0
    %v4487 = vmax.f32 %v3095, 0.0
    %v4488 = vmax.f32 %v3098, 0.0
    %v4489 = vmax.f32 %v3103, 0.0
    %v4490 = vmax.f32 %v3106, 0.0
    %v4491 = vmax.f32 %v3111, 0.0
    %v4492 = vmax.f32 %v3114, 0.0
    %v4493 = vmax.f32 %v3119, 0.0
    %v4494 = vmax.f32 %v3122, 0.0
    %v4495 = vmax.f32 %v3127, 0.0
    %v4496 = vmax.f32 %v3130, 0.0
    %v4497 = vmax.f32 %v3135, 0.0
    %v4498 = vmax.f32 %v3138, 0.0
    %v4499 = vmax.f32 %v3143, 0.0
    %v4500 = vmax.f32 %v3146, 0.0
    %v4501 = vmax.f32 %v3151, 0.0
    %v4502 = vmax.f32 %v3154, 0.0
    %v4503 = vmax.f32 %v3159, 0.0
    %v4504 = vmax.f32 %v3162, 0.0
    %v4505 = vmax.f32 %v3167, 0.0
    %v4506 = vmax.f32 %v3170, 0.0
    %v4507 = vmax.f32 %v3175, 0.0
    %v4508 = vmax.f32 %v3178, 0.0
    %v4509 = vmax.f32 %v3183, 0.0
    %v4510 = vmax.f32 %v3186, 0.0
    %v4511 = vmax.f32 %v3191, 0.0
    %v4512 = vmax.f32 %v3194, 0.0
    %v4513 = vmax.f32 %v3199, 0.0
    %v4514 = vmax.f32 %v3202, 0.0
    %v4515 = vmax.f32 %v3207, 0.0
    %v4516 = vmax.f32 %v3210, 0.0
    %v4517 = vmax.f32 %v3215, 0.0
    %v4518 = vmax.f32 %v3218, 0.0
    %v4519 = vmax.f32 %v3223, 0.0
    %v4520 = vmax.f32 %v3226, 0.0
    %v4521 = vmax.f32 %v3231, 0.0
    %v4522 = vmax.f32 %v3234, 0.0
    %v4523 = vmax.f32 %v3239, 0.0
    %v4524 = vmax.f32 %v3242, 0.0
    %v4525 = vmax.f32 %v3247, 0.0
    %v4526 = vmax.f32 %v3250, 0.0
    %v4527 = vmax.f32 %v3255, 0.0
    %v4528 = vmax.f32 %v3258, 0.0
    %v4529 = vmax.f32 %v3263, 0.0
    %v4530 = vmax.f32 %v3266, 0.0
    %v4531 = vmax.f32 %v3271, 0.0
    %v4532 = vmax.f32 %v3274, 0.0
    %v4533 = vmax.f32 %v3279, 0.0
    %v4534 = vmax.f32 %v3282, 0.0
    %v4535 = vmax.f32 %v3287, 0.0
    %v4536 = vmax.f32 %v3290, 0.0
    %v4537 = vmax.f32 %v3295, 0.0
    %v4538 = vmax.f32 %v3298, 0.0
    %v4539 = vmax.f32 %v3303, 0.0
    %v4540 = vmax.f32 %v3306, 0.0
    %v4541 = vmax.f32 %v3311, 0.0
    %v4542 = vmax.f32 %v3314, 0.0
    %v4543 = vmax.f32 %v3319, 0.0
    %v4544 = vmax.f32 %v3322, 0.0
    %v4545 = vmax.f32 %v3327, 0.0
    %v4546 = vmax.f32 %v3330, 0.0
    %v4547 = vmax.f32 %v3335, 0.0
    %v4548 = vmax.f32 %v3338, 0.0
    %v4549 = vmax.f32 %v3343, 0.0
    %v4550 = vmax.f32 %v3346, 0.0
    %v4551 = vmax.f32 %v3351, 0.0
    %v4552 = vmax.f32 %v3354, 0.0
    %v4553 = vmax.f32 %v3359, 0.0
    %v4554 = vmax.f32 %v3362, 0.0
    %v4555 = vmax.f32 %v3367, 0.0
    %v4556 = vmax.f32 %v3370, 0.0
    %v4557 = vmax.f32 %v3375, 0.0
    %v4558 = vmax.f32 %v3378, 0.0
    %v4559 = vmax.f32 %v3383, 0.0
    %v4560 = vmax.f32 %v3386, 0.0
    %v4561 = vmax.f32 %v3391, 0.0
    %v4562 = vmax.f32 %v3394, 0.0
    %v4563 = vmax.f32 %v3399, 0.0
    %v4564 = vmax.f32 %v3402, 0.0
    %v4565 = vmax.f32 %v3407, 0.0
    %v4566 = vmax.f32 %v3410, 0.0
    %v4567 = vmax.f32 %v3415, 0.0
    %v4568 = vmax.f32 %v3418, 0.0
    %v4569 = vmax.f32 %v3423, 0.0
    %v4570 = vmax.f32 %v3426, 0.0
    %v4571 = vmax.f32 %v3431, 0.0
    %v4572 = vmax.f32 %v3434, 0.0
    %v4573 = vmax.f32 %v3439, 0.0
    %v4574 = vmax.f32 %v3442, 0.0
    %v4575 = vmax.f32 %v3447, 0.0
    %v4576 = vmax.f32 %v3450, 0.0
    %v4577 = vmax.f32 %v3455, 0.0
    %v4578 = vmax.f32 %v3458, 0.0
    %v4579 = vmax.f32 %v3463, 0.0
    %v4580 = vmax.f32 %v3466, 0.0
    %v4581 = vmax.f32 %v3471, 0.0
    %v4582 = vmax.f32 %v3474, 0.0
    %v4583 = vmax.f32 %v3479, 0.0
    %v4584 = vmax.f32 %v3482, 0.0
    %v4585 = vmax.f32 %v3487, 0.0
    %v4586 = vmax.f32 %v3490, 0.0
    %v4587 = vmax.f32 %v3495, 0.0
    %v4588 = vmax.f32 %v3498, 0.0
    %v4589 = vmax.f32 %v3503, 0.0
    %v4590 = vmax.f32 %v3506, 0.0
    %v4591 = vmax.f32 %v3511, 0.0
    %v4592 = vmax.f32 %v3514, 0.0
    %v4593 = vmax.f32 %v3519, 0.0
    %v4594 = vmax.f32 %v3522, 0.0
    %v4595 = vmax.f32 %v3527, 0.0
    %v4596 = vmax.f32 %v3530, 0.0
    %v4597 = vmax.f32 %v3535, 0.0
    %v4598 = vmax.f32 %v3538, 0.0
    %v4599 = vmax.f32 %v3543, 0.0
    %v4600 = vmax.f32 %v3546, 0.0
    %v4601 = vmax.f32 %v3551, 0.0
    %v4602 = vmax.f32 %v3554, 0.0
    %v4603 = vmax.f32 %v3559, 0.0
    %v4604 = vmax.f32 %v3562, 0.0
    %v4605 = vmax.f32 %v3567, 0.0
    %v4606 = vmax.f32 %v3570, 0.0
    %v4607 = vmax.f32 %v3575, 0.0
    %v4608 = vmax.f32 %v3578, 0.0
    %v4609 = vmax.f32 %v3583, 0.0
    %v4610 = vmax.f32 %v3586, 0.0
    %v4611 = vmax.f32 %v3591, 0.0
    %v4612 = vmax.f32 %v3594, 0.0
    %v4613 = vmax.f32 %v3599, 0.0
    %v4614 = vmax.f32 %v3602, 0.0
    %v4615 = vmax.f32 %v3607, 0.0
    %v4616 = vmax.f32 %v3610, 0.0
    %v4617 = vmax.f32 %v3615, 0.0
    %v4618 = vmax.f32 %v3618, 0.0
    %v4619 = vmax.f32 %v3623, 0.0
    %v4620 = vmax.f32 %v3626, 0.0
    %v4621 = vmax.f32 %v3631, 0.0
    %v4622 = vmax.f32 %v3634, 0.0
    %v4623 = vmax.f32 %v3639, 0.0
    %v4624 = vmax.f32 %v3642, 0.0
    %v4625 = vmax.f32 %v3647, 0.0
    %v4626 = vmax.f32 %v3650, 0.0
    %v4627 = vmax.f32 %v3655, 0.0
    %v4628 = vmax.f32 %v3658, 0.0
    %v4629 = vmax.f32 %v3663, 0.0
    %v4630 = vmax.f32 %v3666, 0.0
    %v4631 = vmax.f32 %v3671, 0.0
    %v4632 = vmax.f32 %v3674, 0.0
    %v4633 = vmax.f32 %v3679, 0.0
    %v4634 = vmax.f32 %v3682, 0.0
    %v4635 = vmax.f32 %v3687, 0.0
    %v4636 = vmax.f32 %v3690, 0.0
    %v4637 = vmax.f32 %v3695, 0.0
    %v4638 = vmax.f32 %v3698, 0.0
    %v4639 = vmax.f32 %v3703, 0.0
    %v4640 = vmax.f32 %v3706, 0.0
    %v4641 = vmax.f32 %v3711, 0.0
    %v4642 = vmax.f32 %v3714, 0.0
    %v4643 = vmax.f32 %v3719, 0.0
    %v4644 = vmax.f32 %v3722, 0.0
    %v4645 = vmax.f32 %v3727, 0.0
    %v4646 = vmax.f32 %v3730, 0.0
    %v4647 = vmax.f32 %v3735, 0.0
    %v4648 = vmax.f32 %v3738, 0.0
    %v4649 = vmax.f32 %v3743, 0.0
    %v4650 = vmax.f32 %v3746, 0.0
    %v4651 = vmax.f32 %v3751, 0.0
    %v4652 = vmax.f32 %v3754, 0.0
    %v4653 = vmax.f32 %v3759, 0.0
    %v4654 = vmax.f32 %v3762, 0.0
    %v4655 = vmax.f32 %v3767, 0.0
    %v4656 = vmax.f32 %v3770, 0.0
    %v4657 = vmax.f32 %v3775, 0.0
    %v4658 = vmax.f32 %v3778, 0.0
    %v4659 = vmax.f32 %v3783, 0.0
    %v4660 = vmax.f32 %v3786, 0.0
    %v4661 = vmax.f32 %v3791, 0.0
    %v4662 = vmax.f32 %v3794, 0.0
    %v4663 = vmax.f32 %v3799, 0.0
    %v4664 = vmax.f32 %v3802, 0.0
    %v4665 = vmax.f32 %v3807, 0.0
    %v4666 = vmax.f32 %v3810, 0.0
    %v4667 = vmax.f32 %v3815, 0.0
    %v4668 = vmax.f32 %v3818, 0.0
    %v4669 = vmax.f32 %v3823, 0.0
    %v4670 = vmax.f32 %v3826, 0.0
    %v4671 = vmax.f32 %v3831, 0.0
    %v4672 = vmax.f32 %v3834, 0.0
    %v4673 = vmax.f32 %v3839, 0.0
    %v4674 = vmax.f32 %v3842, 0.0
    %v4675 = vmax.f32 %v3847, 0.0
    %v4676 = vmax.f32 %v3850, 0.0
    %v4677 = vmax.f32 %v3855, 0.0
    %v4678 = vmax.f32 %v3858, 0.0
    %v4679 = vmax.f32 %v3863, 0.0
    %v4680 = vmax.f32 %v3866, 0.0
    %v4681 = vmax.f32 %v3871, 0.0
    %v4682 = vmax.f32 %v3874, 0.0
    %v4683 = vmax.f32 %v3879, 0.0
    %v4684 = vmax.f32 %v3882, 0.0
    %v4685 = vmax.f32 %v3887, 0.0
    %v4686 = vmax.f32 %v3890, 0.0
    %v4687 = vmax.f32 %v3895, 0.0
    %v4688 = vmax.f32 %v3898, 0.0
    %v4689 = vmax.f32 %v3903, 0.0
    %v4690 = vmax.f32 %v3906, 0.0
    %v4691 = vmax.f32 %v3911, 0.0
    %v4692 = vmax.f32 %v3914, 0.0
    %v4693 = vmax.f32 %v3919, 0.0
    %v4694 = vmax.f32 %v3922, 0.0
    %v4695 = vmax.f32 %v3927, 0.0
    %v4696 = vmax.f32 %v3930, 0.0
    %v4697 = vmax.f32 %v3935, 0.0
    %v4698 = vmax.f32 %v3938, 0.0
    %v4699 = vmax.f32 %v3943, 0.0
    %v4700 = vmax.f32 %v3946, 0.0
    %v4701 = vmax.f32 %v3951, 0.0
    %v4702 = vmax.f32 %v3954, 0.0
    %v4703 = vmax.f32 %v3959, 0.0
    %v4704 = vmax.f32 %v3962, 0.0
    %v4705 = vmax.f32 %v3967, 0.0
    %v4706 = vmax.f32 %v3970, 0.0
    %v4707 = vmax.f32 %v3975, 0.0
    %v4708 = vmax.f32 %v3978, 0.0
    %v4709 = vmax.f32 %v3983, 0.0
    %v4710 = vmax.f32 %v3986, 0.0
    %v4711 = vmax.f32 %v3991, 0.0
    %v4712 = vmax.f32 %v3994, 0.0
    %v4713 = vmax.f32 %v3999, 0.0
    %v4714 = vmax.f32 %v4002, 0.0
    %v4715 = vmax.f32 %v4007, 0.0
    %v4716 = vmax.f32 %v4010, 0.0
    %v4717 = vmax.f32 %v4015, 0.0
    %v4718 = vmax.f32 %v4018, 0.0
    %v4719 = vmax.f32 %v4023, 0.0
    %v4720 = vmax.f32 %v4026, 0.0
    %v4721 = vmax.f32 %v4031, 0.0
    %v4722 = vmax.f32 %v4034, 0.0
    %v4723 = vmax.f32 %v4039, 0.0
    %v4724 = vmax.f32 %v4042, 0.0
    %v4725 = vmax.f32 %v4047, 0.0
    %v4726 = vmax.f32 %v4050, 0.0
    %v4727 = vmax.f32 %v4055, 0.0
    %v4728 = vmax.f32 %v4058, 0.0
    %v4729 = vmax.f32 %v4063, 0.0
    %v4730 = vmax.f32 %v4066, 0.0
    %v4731 = vmax.f32 %v4071, 0.0
    %v4732 = vmax.f32 %v4074, 0.0
    %v4733 = vmax.f32 %v4079, 0.0
    %v4734 = vmax.f32 %v4082, 0.0
    %v4735 = vmax.f32 %v4087, 0.0
    %v4736 = vmax.f32 %v4090, 0.0
    %v4737 = vmax.f32 %v4095, 0.0
    %v4738 = vmax.f32 %v4098, 0.0
    %v4739 = vmax.f32 %v4103, 0.0
    %v4740 = vmax.f32 %v4106, 0.0
    %v4741 = vmax.f32 %v4111, 0.0
    %v4742 = vmax.f32 %v4114, 0.0
    %v4743 = vmax.f32 %v4119, 0.0
    %v4744 = vmax.f32 %v4122, 0.0
    %v4745 = vmax.f32 %v4127, 0.0
    %v4746 = vmax.f32 %v4130, 0.0
    %v4747 = vmax.f32 %v4135, 0.0
    %v4748 = vmax.f32 %v4138, 0.0
    %v4749 = vmax.f32 %v4143, 0.0
    %v4750 = vmax.f32 %v4146, 0.0
    %v4751 = vmax.f32 %v4151, 0.0
    %v4752 = vmax.f32 %v4154, 0.0
    %v4753 = vmax.f32 %v4159, 0.0
    %v4754 = vmax.f32 %v4162, 0.0
    %v4755 = vmax.f32 %v4167, 0.0
    %v4756 = vmax.f32 %v4170, 0.0
    %v4757 = vmax.f32 %v4175, 0.0
    %v4758 = vmax.f32 %v4178, 0.0
    %v4759 = vmax.f32 %v4183, 0.0
    %v4760 = vmax.f32 %v4186, 0.0
    %v4761 = vmax.f32 %v4191, 0.0
    %v4762 = vmax.f32 %v4194, 0.0
    %v4763 = vmax.f32 %v4199, 0.0
    %v4764 = vmax.f32 %v4202, 0.0
    %v4765 = vmax.f32 %v4207, 0.0
    %v4766 = vmax.f32 %v4210, 0.0
    %v4767 = vmax.f32 %v4215, 0.0
    %v4768 = vmax.f32 %v4218, 0.0
    %v4769 = vmax.f32 %v4223, 0.0
    %v4770 = vmax.f32 %v4226, 0.0
    %v4771 = vmax.f32 %v4231, 0.0
    %v4772 = vmax.f32 %v4234, 0.0
    %v4773 = vmax.f32 %v4239, 0.0
    %v4774 = vmax.f32 %v4242, 0.0
    %v4775 = vmax.f32 %v4247, 0.0
    %v4776 = vmax.f32 %v4250, 0.0
    %v4777 = vmax.f32 %v4255, 0.0
    %v4778 = vmax.f32 %v4258, 0.0
    %v4779 = vmax.f32 %v4263, 0.0
    %v4780 = vmax.f32 %v4266, 0.0
    %v4781 = vld [vmem:[#allocation2] sm:$0xff]
    %v4782 = vld [vmem:[#allocation2 + $0x8] sm:$0xff]
    %v4783 = vadd.f32 %v4269, %v4270
    %v4784 = vadd.f32 %v4783, %v4271
    %v4785 = vadd.f32 %v4784, %v4272
    %v4786 = vadd.f32 %v4785, %v4273
    %v4787 = vadd.f32 %v4786, %v4274
    %v4788 = vadd.f32 %v4787, %v4275
    %v4789 = vadd.f32 %v4788, %v4276
    %v4790 = vadd.f32 %v4789, %v4277
    %v4791 = vadd.f32 %v4790, %v4278
    %v4792 = vadd.f32 %v4791, %v4279
    %v4793 = vadd.f32 %v4792, %v4280
    %v4794 = vadd.f32 %v4793, %v4281
    %v4795 = vadd.f32 %v4794, %v4282
    %v4796 = vadd.f32 %v4795, %v4283
    %v4797 = vadd.f32 %v4796, %v4284
    %v4798 = vadd.f32 %v4797, %v4285
    %v4799 = vadd.f32 %v4798, %v4286
    %v4800 = vadd.f32 %v4799, %v4287
    %v4801 = vadd.f32 %v4800, %v4288
    %v4802 = vadd.f32 %v4801, %v4289
    %v4803 = vadd.f32 %v4802, %v4290
    %v4804 = vadd.f32 %v4803, %v4291
    %v4805 = vadd.f32 %v4804, %v4292
    %v4806 = vadd.f32 %v4805, %v4293
    %v4807 = vadd.f32 %v4806, %v4294
    %v4808 = vadd.f32 %v4807, %v4295
    %v4809 = vadd.f32 %v4808, %v4296
    %v4810 = vadd.f32 %v4809, %v4297
    %v4811 = vadd.f32 %v4810, %v4298
    %v4812 = vadd.f32 %v4811, %v4299
    %v4813 = vadd.f32 %v4812, %v4300
    %v4814 = vrot.slane %v4813, 4
    %v4815 = vadd.f32 %v4813, %v4814
    %v4816 = vrot.slane %v4815, 2
    %v4817 = vadd.f32 %v4815, %v4816
    %v4818 = vrot.slane %v4817, 1
    %v4819 = vadd.f32 %v4817, %v4818
    %v4820 = vadd.f32 %v4301, %v4302
    %v4821 = vadd.f32 %v4820, %v4303
    %v4822 = vadd.f32 %v4821, %v4304
    %v4823 = vadd.f32 %v4822, %v4305
    %v4824 = vadd.f32 %v4823, %v4306
    %v4825 = vadd.f32 %v4824, %v4307
    %v4826 = vadd.f32 %v4825, %v4308
    %v4827 = vadd.f32 %v4826, %v4309
    %v4828 = vadd.f32 %v4827, %v4310
    %v4829 = vadd.f32 %v4828, %v4311
    %v4830 = vadd.f32 %v4829, %v4312
    %v4831 = vadd.f32 %v4830, %v4313
    %v4832 = vadd.f32 %v4831, %v4314
    %v4833 = vadd.f32 %v4832, %v4315
    %v4834 = vadd.f32 %v4833, %v4316
    %v4835 = vadd.f32 %v4834, %v4317
    %v4836 = vadd.f32 %v4835, %v4318
    %v4837 = vadd.f32 %v4836, %v4319
    %v4838 = vadd.f32 %v4837, %v4320
    %v4839 = vadd.f32 %v4838, %v4321
    %v4840 = vadd.f32 %v4839, %v4322
    %v4841 = vadd.f32 %v4840, %v4323
    %v4842 = vadd.f32 %v4841, %v4324
    %v4843 = vadd.f32 %v4842, %v4325
    %v4844 = vadd.f32 %v4843, %v4326
    %v4845 = vadd.f32 %v4844, %v4327
    %v4846 = vadd.f32 %v4845, %v4328
    %v4847 = vadd.f32 %v4846, %v4329
    %v4848 = vadd.f32 %v4847, %v4330
    %v4849 = vadd.f32 %v4848, %v4331
    %v4850 = vadd.f32 %v4849, %v4332
    %v4851 = vrot.slane %v4850, 4
    %v4852 = vadd.f32 %v4850, %v4851
    %v4853 = vrot.slane %v4852, 2
    %v4854 = vadd.f32 %v4852, %v4853
    %v4855 = vrot.slane %v4854, 1
    %v4856 = vadd.f32 %v4854, %v4855
    %v4857 = vadd.f32 %v4333, %v4334
    %v4858 = vadd.f32 %v4857, %v4335
    %v4859 = vadd.f32 %v4858, %v4336
    %v4860 = vadd.f32 %v4859, %v4337
    %v4861 = vadd.f32 %v4860, %v4338
    %v4862 = vadd.f32 %v4861, %v4339
    %v4863 = vadd.f32 %v4862, %v4340
    %v4864 = vadd.f32 %v4863, %v4341
    %v4865 = vadd.f32 %v4864, %v4342
    %v4866 = vadd.f32 %v4865, %v4343
    %v4867 = vadd.f32 %v4866, %v4344
    %v4868 = vadd.f32 %v4867, %v4345
    %v4869 = vadd.f32 %v4868, %v4346
    %v4870 = vadd.f32 %v4869, %v4347
    %v4871 = vadd.f32 %v4870, %v4348
    %v4872 = vadd.f32 %v4871, %v4349
    %v4873 = vadd.f32 %v4872, %v4350
    %v4874 = vadd.f32 %v4873, %v4351
    %v4875 = vadd.f32 %v4874, %v4352
    %v4876 = vadd.f32 %v4875, %v4353
    %v4877 = vadd.f32 %v4876, %v4354
    %v4878 = vadd.f32 %v4877, %v4355
    %v4879 = vadd.f32 %v4878, %v4356
    %v4880 = vadd.f32 %v4879, %v4357
    %v4881 = vadd.f32 %v4880, %v4358
    %v4882 = vadd.f32 %v4881, %v4359
    %v4883 = vadd.f32 %v4882, %v4360
    %v4884 = vadd.f32 %v4883, %v4361
    %v4885 = vadd.f32 %v4884, %v4362
    %v4886 = vadd.f32 %v4885, %v4363
    %v4887 = vadd.f32 %v4886, %v4364
    %v4888 = vrot.slane %v4887, 4
    %v4889 = vadd.f32 %v4887, %v4888
    %v4890 = vrot.slane %v4889, 2
    %v4891 = vadd.f32 %v4889, %v4890
    %v4892 = vrot.slane %v4891, 1
    %v4893 = vadd.f32 %v4891, %v4892
    %v4894 = vadd.f32 %v4365, %v4366
    %v4895 = vadd.f32 %v4894, %v4367
    %v4896 = vadd.f32 %v4895, %v4368
    %v4897 = vadd.f32 %v4896, %v4369
    %v4898 = vadd.f32 %v4897, %v4370
    %v4899 = vadd.f32 %v4898, %v4371
    %v4900 = vadd.f32 %v4899, %v4372
    %v4901 = vadd.f32 %v4900, %v4373
    %v4902 = vadd.f32 %v4901, %v4374
    %v4903 = vadd.f32 %v4902, %v4375
    %v4904 = vadd.f32 %v4903, %v4376
    %v4905 = vadd.f32 %v4904, %v4377
    %v4906 = vadd.f32 %v4905, %v4378
    %v4907 = vadd.f32 %v4906, %v4379
    %v4908 = vadd.f32 %v4907, %v4380
    %v4909 = vadd.f32 %v4908, %v4381
    %v4910 = vadd.f32 %v4909, %v4382
    %v4911 = vadd.f32 %v4910, %v4383
    %v4912 = vadd.f32 %v4911, %v4384
    %v4913 = vadd.f32 %v4912, %v4385
    %v4914 = vadd.f32 %v4913, %v4386
    %v4915 = vadd.f32 %v4914, %v4387
    %v4916 = vadd.f32 %v4915, %v4388
    %v4917 = vadd.f32 %v4916, %v4389
    %v4918 = vadd.f32 %v4917, %v4390
    %v4919 = vadd.f32 %v4918, %v4391
    %v4920 = vadd.f32 %v4919, %v4392
    %v4921 = vadd.f32 %v4920, %v4393
    %v4922 = vadd.f32 %v4921, %v4394
    %v4923 = vadd.f32 %v4922, %v4395
    %v4924 = vadd.f32 %v4923, %v4396
    %v4925 = vrot.slane %v4924, 4
    %v4926 = vadd.f32 %v4924, %v4925
    %v4927 = vrot.slane %v4926, 2
    %v4928 = vadd.f32 %v4926, %v4927
    %v4929 = vrot.slane %v4928, 1
    %v4930 = vadd.f32 %v4928, %v4929
    %v4931 = vadd.f32 %v4397, %v4398
    %v4932 = vadd.f32 %v4931, %v4399
    %v4933 = vadd.f32 %v4932, %v4400
    %v4934 = vadd.f32 %v4933, %v4401
    %v4935 = vadd.f32 %v4934, %v4402
    %v4936 = vadd.f32 %v4935, %v4403
    %v4937 = vadd.f32 %v4936, %v4404
    %v4938 = vadd.f32 %v4937, %v4405
    %v4939 = vadd.f32 %v4938, %v4406
    %v4940 = vadd.f32 %v4939, %v4407
    %v4941 = vadd.f32 %v4940, %v4408
    %v4942 = vadd.f32 %v4941, %v4409
    %v4943 = vadd.f32 %v4942, %v4410
    %v4944 = vadd.f32 %v4943, %v4411
    %v4945 = vadd.f32 %v4944, %v4412
    %v4946 = vadd.f32 %v4945, %v4413
    %v4947 = vadd.f32 %v4946, %v4414
    %v4948 = vadd.f32 %v4947, %v4415
    %v4949 = vadd.f32 %v4948, %v4416
    %v4950 = vadd.f32 %v4949, %v4417
    %v4951 = vadd.f32 %v4950, %v4418
    %v4952 = vadd.f32 %v4951, %v4419
    %v4953 = vadd.f32 %v4952, %v4420
    %v4954 = vadd.f32 %v4953, %v4421
    %v4955 = vadd.f32 %v4954, %v4422
    %v4956 = vadd.f32 %v4955, %v4423
    %v4957 = vadd.f32 %v4956, %v4424
    %v4958 = vadd.f32 %v4957, %v4425
    %v4959 = vadd.f32 %v4958, %v4426
    %v4960 = vadd.f32 %v4959, %v4427
    %v4961 = vadd.f32 %v4960, %v4428
    %v4962 = vrot.slane %v4961, 4
    %v4963 = vadd.f32 %v4961, %v4962
    %v4964 = vrot.slane %v4963, 2
    %v4965 = vadd.f32 %v4963, %v4964
    %v4966 = vrot.slane %v4965, 1
    %v4967 = vadd.f32 %v4965, %v4966
    %v4968 = vadd.f32 %v4429, %v4430
    %v4969 = vadd.f32 %v4968, %v4431
    %v4970 = vadd.f32 %v4969, %v4432
    %v4971 = vadd.f32 %v4970, %v4433
    %v4972 = vadd.f32 %v4971, %v4434
    %v4973 = vadd.f32 %v4972, %v4435
    %v4974 = vadd.f32 %v4973, %v4436
    %v4975 = vadd.f32 %v4974, %v4437
    %v4976 = vadd.f32 %v4975, %v4438
    %v4977 = vadd.f32 %v4976, %v4439
    %v4978 = vadd.f32 %v4977, %v4440
    %v4979 = vadd.f32 %v4978, %v4441
    %v4980 = vadd.f32 %v4979, %v4442
    %v4981 = vadd.f32 %v4980, %v4443
    %v4982 = vadd.f32 %v4981, %v4444
    %v4983 = vadd.f32 %v4982, %v4445
    %v4984 = vadd.f32 %v4983, %v4446
    %v4985 = vadd.f32 %v4984, %v4447
    %v4986 = vadd.f32 %v4985, %v4448
    %v4987 = vadd.f32 %v4986, %v4449
    %v4988 = vadd.f32 %v4987, %v4450
    %v4989 = vadd.f32 %v4988, %v4451
    %v4990 = vadd.f32 %v4989, %v4452
    %v4991 = vadd.f32 %v4990, %v4453
    %v4992 = vadd.f32 %v4991, %v4454
    %v4993 = vadd.f32 %v4992, %v4455
    %v4994 = vadd.f32 %v4993, %v4456
    %v4995 = vadd.f32 %v4994, %v4457
    %v4996 = vadd.f32 %v4995, %v4458
    %v4997 = vadd.f32 %v4996, %v4459
    %v4998 = vadd.f32 %v4997, %v4460
    %v4999 = vrot.slane %v4998, 4
    %v5000 = vadd.f32 %v4998, %v4999
    %v5001 = vrot.slane %v5000, 2
    %v5002 = vadd.f32 %v5000, %v5001
    %v5003 = vrot.slane %v5002, 1
    %v5004 = vadd.f32 %v5002, %v5003
    %v5005 = vadd.f32 %v4461, %v4462
    %v5006 = vadd.f32 %v5005, %v4463
    %v5007 = vadd.f32 %v5006, %v4464
    %v5008 = vadd.f32 %v5007, %v4465
    %v5009 = vadd.f32 %v5008, %v4466
    %v5010 = vadd.f32 %v5009, %v4467
    %v5011 = vadd.f32 %v5010, %v4468
    %v5012 = vadd.f32 %v5011, %v4469
    %v5013 = vadd.f32 %v5012, %v4470
    %v5014 = vadd.f32 %v5013, %v4471
    %v5015 = vadd.f32 %v5014, %v4472
    %v5016 = vadd.f32 %v5015, %v4473
    %v5017 = vadd.f32 %v5016, %v4474
    %v5018 = vadd.f32 %v5017, %v4475
    %v5019 = vadd.f32 %v5018, %v4476
    %v5020 = vadd.f32 %v5019, %v4477
    %v5021 = vadd.f32 %v5020, %v4478
    %v5022 = vadd.f32 %v5021, %v4479
    %v5023 = vadd.f32 %v5022, %v4480
    %v5024 = vadd.f32 %v5023, %v4481
    %v5025 = vadd.f32 %v5024, %v4482
    %v5026 = vadd.f32 %v5025, %v4483
    %v5027 = vadd.f32 %v5026, %v4484
    %v5028 = vadd.f32 %v5027, %v4485
    %v5029 = vadd.f32 %v5028, %v4486
    %v5030 = vadd.f32 %v5029, %v4487
    %v5031 = vadd.f32 %v5030, %v4488
    %v5032 = vadd.f32 %v5031, %v4489
    %v5033 = vadd.f32 %v5032, %v4490
    %v5034 = vadd.f32 %v5033, %v4491
    %v5035 = vadd.f32 %v5034, %v4492
    %v5036 = vrot.slane %v5035, 4
    %v5037 = vadd.f32 %v5035, %v5036
    %v5038 = vrot.slane %v5037, 2
    %v5039 = vadd.f32 %v5037, %v5038
    %v5040 = vrot.slane %v5039, 1
    %v5041 = vadd.f32 %v5039, %v5040
    %v5042 = vadd.f32 %v4493, %v4494
    %v5043 = vadd.f32 %v5042, %v4495
    %v5044 = vadd.f32 %v5043, %v4496
    %v5045 = vadd.f32 %v5044, %v4497
    %v5046 = vadd.f32 %v5045, %v4498
    %v5047 = vadd.f32 %v5046, %v4499
    %v5048 = vadd.f32 %v5047, %v4500
    %v5049 = vadd.f32 %v5048, %v4501
    %v5050 = vadd.f32 %v5049, %v4502
    %v5051 = vadd.f32 %v5050, %v4503
    %v5052 = vadd.f32 %v5051, %v4504
    %v5053 = vadd.f32 %v5052, %v4505
    %v5054 = vadd.f32 %v5053, %v4506
    %v5055 = vadd.f32 %v5054, %v4507
    %v5056 = vadd.f32 %v5055, %v4508
    %v5057 = vadd.f32 %v5056, %v4509
    %v5058 = vadd.f32 %v5057, %v4510
    %v5059 = vadd.f32 %v5058, %v4511
    %v5060 = vadd.f32 %v5059, %v4512
    %v5061 = vadd.f32 %v5060, %v4513
    %v5062 = vadd.f32 %v5061, %v4514
    %v5063 = vadd.f32 %v5062, %v4515
    %v5064 = vadd.f32 %v5063, %v4516
    %v5065 = vadd.f32 %v5064, %v4517
    %v5066 = vadd.f32 %v5065, %v4518
    %v5067 = vadd.f32 %v5066, %v4519
    %v5068 = vadd.f32 %v5067, %v4520
    %v5069 = vadd.f32 %v5068, %v4521
    %v5070 = vadd.f32 %v5069, %v4522
    %v5071 = vadd.f32 %v5070, %v4523
    %v5072 = vadd.f32 %v5071, %v4524
    %v5073 = vrot.slane %v5072, 4
    %v5074 = vadd.f32 %v5072, %v5073
    %v5075 = vrot.slane %v5074, 2
    %v5076 = vadd.f32 %v5074, %v5075
    %v5077 = vrot.slane %v5076, 1
    %v5078 = vadd.f32 %v5076, %v5077
    %v5079 = vadd.f32 %v4525, %v4526
    %v5080 = vadd.f32 %v5079, %v4527
    %v5081 = vadd.f32 %v5080, %v4528
    %v5082 = vadd.f32 %v5081, %v4529
    %v5083 = vadd.f32 %v5082, %v4530
    %v5084 = vadd.f32 %v5083, %v4531
    %v5085 = vadd.f32 %v5084, %v4532
    %v5086 = vadd.f32 %v5085, %v4533
    %v5087 = vadd.f32 %v5086, %v4534
    %v5088 = vadd.f32 %v5087, %v4535
    %v5089 = vadd.f32 %v5088, %v4536
    %v5090 = vadd.f32 %v5089, %v4537
    %v5091 = vadd.f32 %v5090, %v4538
    %v5092 = vadd.f32 %v5091, %v4539
    %v5093 = vadd.f32 %v5092, %v4540
    %v5094 = vadd.f32 %v5093, %v4541
    %v5095 = vadd.f32 %v5094, %v4542
    %v5096 = vadd.f32 %v5095, %v4543
    %v5097 = vadd.f32 %v5096, %v4544
    %v5098 = vadd.f32 %v5097, %v4545
    %v5099 = vadd.f32 %v5098, %v4546
    %v5100 = vadd.f32 %v5099, %v4547
    %v5101 = vadd.f32 %v5100, %v4548
    %v5102 = vadd.f32 %v5101, %v4549
    %v5103 = vadd.f32 %v5102, %v4550
    %v5104 = vadd.f32 %v5103, %v4551
    %v5105 = vadd.f32 %v5104, %v4552
    %v5106 = vadd.f32 %v5105, %v4553
    %v5107 = vadd.f32 %v5106, %v4554
    %v5108 = vadd.f32 %v5107, %v4555
    %v5109 = vadd.f32 %v5108, %v4556
    %v5110 = vrot.slane %v5109, 4
    %v5111 = vadd.f32 %v5109, %v5110
    %v5112 = vrot.slane %v5111, 2
    %v5113 = vadd.f32 %v5111, %v5112
    %v5114 = vrot.slane %v5113, 1
    %v5115 = vadd.f32 %v5113, %v5114
    %v5116 = vadd.f32 %v4557, %v4558
    %v5117 = vadd.f32 %v5116, %v4559
    %v5118 = vadd.f32 %v5117, %v4560
    %v5119 = vadd.f32 %v5118, %v4561
    %v5120 = vadd.f32 %v5119, %v4562
    %v5121 = vadd.f32 %v5120, %v4563
    %v5122 = vadd.f32 %v5121, %v4564
    %v5123 = vadd.f32 %v5122, %v4565
    %v5124 = vadd.f32 %v5123, %v4566
    %v5125 = vadd.f32 %v5124, %v4567
    %v5126 = vadd.f32 %v5125, %v4568
    %v5127 = vadd.f32 %v5126, %v4569
    %v5128 = vadd.f32 %v5127, %v4570
    %v5129 = vadd.f32 %v5128, %v4571
    %v5130 = vadd.f32 %v5129, %v4572
    %v5131 = vadd.f32 %v5130, %v4573
    %v5132 = vadd.f32 %v5131, %v4574
    %v5133 = vadd.f32 %v5132, %v4575
    %v5134 = vadd.f32 %v5133, %v4576
    %v5135 = vadd.f32 %v5134, %v4577
    %v5136 = vadd.f32 %v5135, %v4578
    %v5137 = vadd.f32 %v5136, %v4579
    %v5138 = vadd.f32 %v5137, %v4580
    %v5139 = vadd.f32 %v5138, %v4581
    %v5140 = vadd.f32 %v5139, %v4582
    %v5141 = vadd.f32 %v5140, %v4583
    %v5142 = vadd.f32 %v5141, %v4584
    %v5143 = vadd.f32 %v5142, %v4585
    %v5144 = vadd.f32 %v5143, %v4586
    %v5145 = vadd.f32 %v5144, %v4587
    %v5146 = vadd.f32 %v5145, %v4588
    %v5147 = vrot.slane %v5146, 4
    %v5148 = vadd.f32 %v5146, %v5147
    %v5149 = vrot.slane %v5148, 2
    %v5150 = vadd.f32 %v5148, %v5149
    %v5151 = vrot.slane %v5150, 1
    %v5152 = vadd.f32 %v5150, %v5151
    %v5153 = vadd.f32 %v4589, %v4590
    %v5154 = vadd.f32 %v5153, %v4591
    %v5155 = vadd.f32 %v5154, %v4592
    %v5156 = vadd.f32 %v5155, %v4593
    %v5157 = vadd.f32 %v5156, %v4594
    %v5158 = vadd.f32 %v5157, %v4595
    %v5159 = vadd.f32 %v5158, %v4596
    %v5160 = vadd.f32 %v5159, %v4597
    %v5161 = vadd.f32 %v5160, %v4598
    %v5162 = vadd.f32 %v5161, %v4599
    %v5163 = vadd.f32 %v5162, %v4600
    %v5164 = vadd.f32 %v5163, %v4601
    %v5165 = vadd.f32 %v5164, %v4602
    %v5166 = vadd.f32 %v5165, %v4603
    %v5167 = vadd.f32 %v5166, %v4604
    %v5168 = vadd.f32 %v5167, %v4605
    %v5169 = vadd.f32 %v5168, %v4606
    %v5170 = vadd.f32 %v5169, %v4607
    %v5171 = vadd.f32 %v5170, %v4608
    %v5172 = vadd.f32 %v5171, %v4609
    %v5173 = vadd.f32 %v5172, %v4610
    %v5174 = vadd.f32 %v5173, %v4611
    %v5175 = vadd.f32 %v5174, %v4612
    %v5176 = vadd.f32 %v5175, %v4613
    %v5177 = vadd.f32 %v5176, %v4614
    %v5178 = vadd.f32 %v5177, %v4615
    %v5179 = vadd.f32 %v5178, %v4616
    %v5180 = vadd.f32 %v5179, %v4617
    %v5181 = vadd.f32 %v5180, %v4618
    %v5182 = vadd.f32 %v5181, %v4619
    %v5183 = vadd.f32 %v5182, %v4620
    %v5184 = vrot.slane %v5183, 4
    %v5185 = vadd.f32 %v5183, %v5184
    %v5186 = vrot.slane %v5185, 2
    %v5187 = vadd.f32 %v5185, %v5186
    %v5188 = vrot.slane %v5187, 1
    %v5189 = vadd.f32 %v5187, %v5188
    %v5190 = vadd.f32 %v4621, %v4622
    %v5191 = vadd.f32 %v5190, %v4623
    %v5192 = vadd.f32 %v5191, %v4624
    %v5193 = vadd.f32 %v5192, %v4625
    %v5194 = vadd.f32 %v5193, %v4626
    %v5195 = vadd.f32 %v5194, %v4627
    %v5196 = vadd.f32 %v5195, %v4628
    %v5197 = vadd.f32 %v5196, %v4629
    %v5198 = vadd.f32 %v5197, %v4630
    %v5199 = vadd.f32 %v5198, %v4631
    %v5200 = vadd.f32 %v5199, %v4632
    %v5201 = vadd.f32 %v5200, %v4633
    %v5202 = vadd.f32 %v5201, %v4634
    %v5203 = vadd.f32 %v5202, %v4635
    %v5204 = vadd.f32 %v5203, %v4636
    %v5205 = vadd.f32 %v5204, %v4637
    %v5206 = vadd.f32 %v5205, %v4638
    %v5207 = vadd.f32 %v5206, %v4639
    %v5208 = vadd.f32 %v5207, %v4640
    %v5209 = vadd.f32 %v5208, %v4641
    %v5210 = vadd.f32 %v5209, %v4642
    %v5211 = vadd.f32 %v5210, %v4643
    %v5212 = vadd.f32 %v5211, %v4644
    %v5213 = vadd.f32 %v5212, %v4645
    %v5214 = vadd.f32 %v5213, %v4646
    %v5215 = vadd.f32 %v5214, %v4647
    %v5216 = vadd.f32 %v5215, %v4648
    %v5217 = vadd.f32 %v5216, %v4649
    %v5218 = vadd.f32 %v5217, %v4650
    %v5219 = vadd.f32 %v5218, %v4651
    %v5220 = vadd.f32 %v5219, %v4652
    %v5221 = vrot.slane %v5220, 4
    %v5222 = vadd.f32 %v5220, %v5221
    %v5223 = vrot.slane %v5222, 2
    %v5224 = vadd.f32 %v5222, %v5223
    %v5225 = vrot.slane %v5224, 1
    %v5226 = vadd.f32 %v5224, %v5225
    %v5227 = vadd.f32 %v4653, %v4654
    %v5228 = vadd.f32 %v5227, %v4655
    %v5229 = vadd.f32 %v5228, %v4656
    %v5230 = vadd.f32 %v5229, %v4657
    %v5231 = vadd.f32 %v5230, %v4658
    %v5232 = vadd.f32 %v5231, %v4659
    %v5233 = vadd.f32 %v5232, %v4660
    %v5234 = vadd.f32 %v5233, %v4661
    %v5235 = vadd.f32 %v5234, %v4662
    %v5236 = vadd.f32 %v5235, %v4663
    %v5237 = vadd.f32 %v5236, %v4664
    %v5238 = vadd.f32 %v5237, %v4665
    %v5239 = vadd.f32 %v5238, %v4666
    %v5240 = vadd.f32 %v5239, %v4667
    %v5241 = vadd.f32 %v5240, %v4668
    %v5242 = vadd.f32 %v5241, %v4669
    %v5243 = vadd.f32 %v5242, %v4670
    %v5244 = vadd.f32 %v5243, %v4671
    %v5245 = vadd.f32 %v5244, %v4672
    %v5246 = vadd.f32 %v5245, %v4673
    %v5247 = vadd.f32 %v5246, %v4674
    %v5248 = vadd.f32 %v5247, %v4675
    %v5249 = vadd.f32 %v5248, %v4676
    %v5250 = vadd.f32 %v5249, %v4677
    %v5251 = vadd.f32 %v5250, %v4678
    %v5252 = vadd.f32 %v5251, %v4679
    %v5253 = vadd.f32 %v5252, %v4680
    %v5254 = vadd.f32 %v5253, %v4681
    %v5255 = vadd.f32 %v5254, %v4682
    %v5256 = vadd.f32 %v5255, %v4683
    %v5257 = vadd.f32 %v5256, %v4684
    %v5258 = vrot.slane %v5257, 4
    %v5259 = vadd.f32 %v5257, %v5258
    %v5260 = vrot.slane %v5259, 2
    %v5261 = vadd.f32 %v5259, %v5260
    %v5262 = vrot.slane %v5261, 1
    %v5263 = vadd.f32 %v5261, %v5262
    %v5264 = vadd.f32 %v4685, %v4686
    %v5265 = vadd.f32 %v5264, %v4687
    %v5266 = vadd.f32 %v5265, %v4688
    %v5267 = vadd.f32 %v5266, %v4689
    %v5268 = vadd.f32 %v5267, %v4690
    %v5269 = vadd.f32 %v5268, %v4691
    %v5270 = vadd.f32 %v5269, %v4692
    %v5271 = vadd.f32 %v5270, %v4693
    %v5272 = vadd.f32 %v5271, %v4694
    %v5273 = vadd.f32 %v5272, %v4695
    %v5274 = vadd.f32 %v5273, %v4696
    %v5275 = vadd.f32 %v5274, %v4697
    %v5276 = vadd.f32 %v5275, %v4698
    %v5277 = vadd.f32 %v5276, %v4699
    %v5278 = vadd.f32 %v5277, %v4700
    %v5279 = vadd.f32 %v5278, %v4701
    %v5280 = vadd.f32 %v5279, %v4702
    %v5281 = vadd.f32 %v5280, %v4703
    %v5282 = vadd.f32 %v5281, %v4704
    %v5283 = vadd.f32 %v5282, %v4705
    %v5284 = vadd.f32 %v5283, %v4706
    %v5285 = vadd.f32 %v5284, %v4707
    %v5286 = vadd.f32 %v5285, %v4708
    %v5287 = vadd.f32 %v5286, %v4709
    %v5288 = vadd.f32 %v5287, %v4710
    %v5289 = vadd.f32 %v5288, %v4711
    %v5290 = vadd.f32 %v5289, %v4712
    %v5291 = vadd.f32 %v5290, %v4713
    %v5292 = vadd.f32 %v5291, %v4714
    %v5293 = vadd.f32 %v5292, %v4715
    %v5294 = vadd.f32 %v5293, %v4716
    %v5295 = vrot.slane %v5294, 4
    %v5296 = vadd.f32 %v5294, %v5295
    %v5297 = vrot.slane %v5296, 2
    %v5298 = vadd.f32 %v5296, %v5297
    %v5299 = vrot.slane %v5298, 1
    %v5300 = vadd.f32 %v5298, %v5299
    %v5301 = vadd.f32 %v4717, %v4718
    %v5302 = vadd.f32 %v5301, %v4719
    %v5303 = vadd.f32 %v5302, %v4720
    %v5304 = vadd.f32 %v5303, %v4721
    %v5305 = vadd.f32 %v5304, %v4722
    %v5306 = vadd.f32 %v5305, %v4723
    %v5307 = vadd.f32 %v5306, %v4724
    %v5308 = vadd.f32 %v5307, %v4725
    %v5309 = vadd.f32 %v5308, %v4726
    %v5310 = vadd.f32 %v5309, %v4727
    %v5311 = vadd.f32 %v5310, %v4728
    %v5312 = vadd.f32 %v5311, %v4729
    %v5313 = vadd.f32 %v5312, %v4730
    %v5314 = vadd.f32 %v5313, %v4731
    %v5315 = vadd.f32 %v5314, %v4732
    %v5316 = vadd.f32 %v5315, %v4733
    %v5317 = vadd.f32 %v5316, %v4734
    %v5318 = vadd.f32 %v5317, %v4735
    %v5319 = vadd.f32 %v5318, %v4736
    %v5320 = vadd.f32 %v5319, %v4737
    %v5321 = vadd.f32 %v5320, %v4738
    %v5322 = vadd.f32 %v5321, %v4739
    %v5323 = vadd.f32 %v5322, %v4740
    %v5324 = vadd.f32 %v5323, %v4741
    %v5325 = vadd.f32 %v5324, %v4742
    %v5326 = vadd.f32 %v5325, %v4743
    %v5327 = vadd.f32 %v5326, %v4744
    %v5328 = vadd.f32 %v5327, %v4745
    %v5329 = vadd.f32 %v5328, %v4746
    %v5330 = vadd.f32 %v5329, %v4747
    %v5331 = vadd.f32 %v5330, %v4748
    %v5332 = vrot.slane %v5331, 4
    %v5333 = vadd.f32 %v5331, %v5332
    %v5334 = vrot.slane %v5333, 2
    %v5335 = vadd.f32 %v5333, %v5334
    %v5336 = vrot.slane %v5335, 1
    %v5337 = vadd.f32 %v5335, %v5336
    %v5338 = vadd.f32 %v4749, %v4750
    %v5339 = vadd.f32 %v5338, %v4751
    %v5340 = vadd.f32 %v5339, %v4752
    %v5341 = vadd.f32 %v5340, %v4753
    %v5342 = vadd.f32 %v5341, %v4754
    %v5343 = vadd.f32 %v5342, %v4755
    %v5344 = vadd.f32 %v5343, %v4756
    %v5345 = vadd.f32 %v5344, %v4757
    %v5346 = vadd.f32 %v5345, %v4758
    %v5347 = vadd.f32 %v5346, %v4759
    %v5348 = vadd.f32 %v5347, %v4760
    %v5349 = vadd.f32 %v5348, %v4761
    %v5350 = vadd.f32 %v5349, %v4762
    %v5351 = vadd.f32 %v5350, %v4763
    %v5352 = vadd.f32 %v5351, %v4764
    %v5353 = vadd.f32 %v5352, %v4765
    %v5354 = vadd.f32 %v5353, %v4766
    %v5355 = vadd.f32 %v5354, %v4767
    %v5356 = vadd.f32 %v5355, %v4768
    %v5357 = vadd.f32 %v5356, %v4769
    %v5358 = vadd.f32 %v5357, %v4770
    %v5359 = vadd.f32 %v5358, %v4771
    %v5360 = vadd.f32 %v5359, %v4772
    %v5361 = vadd.f32 %v5360, %v4773
    %v5362 = vadd.f32 %v5361, %v4774
    %v5363 = vadd.f32 %v5362, %v4775
    %v5364 = vadd.f32 %v5363, %v4776
    %v5365 = vadd.f32 %v5364, %v4777
    %v5366 = vadd.f32 %v5365, %v4778
    %v5367 = vadd.f32 %v5366, %v4779
    %v5368 = vadd.f32 %v5367, %v4780
    %v5369 = vrot.slane %v5368, 4
    %v5370 = vadd.f32 %v5368, %v5369
    %v5371 = vrot.slane %v5370, 2
    %v5372 = vadd.f32 %v5370, %v5371
    %v5373 = vrot.slane %v5372, 1
    %v5374 = vadd.f32 %v5372, %v5373
    %vm5391 = vcmask 1041409
    %v5392 = vsel %vm5391, %v4856, %v4819
    %vm5393 = vcmask 1042434
    %v5394 = vsel %vm5393, %v4893, %v5392
    %vm5395 = vcmask 1043459
    %v5396 = vsel %vm5395, %v4930, %v5394
    %vm5397 = vcmask 1044484
    %v5398 = vsel %vm5397, %v4967, %v5396
    %vm5399 = vcmask 1045509
    %v5400 = vsel %vm5399, %v5004, %v5398
    %vm5401 = vcmask 1046534
    %v5402 = vsel %vm5401, %v5041, %v5400
    %vm5403 = vcmask 1047559
    %v5404 = vsel %vm5403, %v5078, %v5402
    %v5405 = vsel %vm5391, %v5152, %v5115
    %v5406 = vsel %vm5393, %v5189, %v5405
    %v5407 = vsel %vm5395, %v5226, %v5406
    %v5408 = vsel %vm5397, %v5263, %v5407
    %v5409 = vsel %vm5399, %v5300, %v5408
    %v5410 = vsel %vm5401, %v5337, %v5409
    %v5411 = vsel %vm5403, %v5374, %v5410
    %v5414 = vadd.f32 %v4781, %v5404
    %v5415 = vadd.f32 %v4782, %v5411
    %5416 = vst [vmem:[#allocation2] sm:$0xff] %v5414
    %5417 = vst [vmem:[#allocation2 + $0x8] sm:$0xff] %v5415
    // Predicated region
    $region38: #{tpu_custom_call.1} parent=1 // pred_check
      %p5418 = pneg %p63
    $region39: #{tpu_custom_call.1} parent=1 // pred_check_branch
      %5420 = sbr.rel (%p5418) target = $region41
    $region40: #{tpu_custom_call.1} parent=1 // pred_region
      %v5421 = vld [vmem:[#allocation2] sm:$0xff]
      %v5422 = vld [vmem:[#allocation2 + $0x8] sm:$0xff]
      %v5423 = vmul.f32 %v5421, 0.00390625
      %v5424 = vmul.f32 %v5422, 0.00390625
      %v5425 = vpack.c.bf16 %v5424, %v5423
      %v5426 = vld [vmem:[#allocation8] sm:$0xf]
      %v5427 = vld [vmem:[#allocation8 + $0x4] sm:$0xf]
      %v5428 = vld [vmem:[#allocation8 + $0x8] sm:$0xf]
      %v5429 = vld [vmem:[#allocation8 + $0xc] sm:$0xf]
      %v5430 = vld [vmem:[#allocation8 + $0x10] sm:$0xf]
      %v5431 = vld [vmem:[#allocation8 + $0x14] sm:$0xf]
      %v5432 = vld [vmem:[#allocation8 + $0x18] sm:$0xf]
      %v5433 = vld [vmem:[#allocation8 + $0x1c] sm:$0xf]
      %v5434 = vld [vmem:[#allocation8 + $0x20] sm:$0xf]
      %v5435 = vld [vmem:[#allocation8 + $0x24] sm:$0xf]
      %v5436 = vld [vmem:[#allocation8 + $0x28] sm:$0xf]
      %v5437 = vld [vmem:[#allocation8 + $0x2c] sm:$0xf]
      %v5438 = vld [vmem:[#allocation8 + $0x30] sm:$0xf]
      %v5439 = vld [vmem:[#allocation8 + $0x34] sm:$0xf]
      %v5440 = vld [vmem:[#allocation8 + $0x38] sm:$0xf]
      %v5441 = vld [vmem:[#allocation8 + $0x3c] sm:$0xf]
      %v5442 = vld [vmem:[%s4] sm:$0x1]
      %v5444 = vlaneseq
      %v5445 = vshrl.u32 %v5444, 7
      %v5446 = vsub.s32 0, %v5445
      %v5447 = vrot.slane %v5442, %v5446
      %v5465 = vunpack.c.l.b16 %v5426
      %v5466 = vunpack.c.l.b16 %v5427
      %v5467 = vunpack.c.l.b16 %v5428
      %v5468 = vunpack.c.l.b16 %v5429
      %v5469 = vunpack.c.l.b16 %v5430
      %v5470 = vunpack.c.l.b16 %v5431
      %v5471 = vunpack.c.l.b16 %v5432
      %v5472 = vunpack.c.l.b16 %v5433
      %v5473 = vunpack.c.l.b16 %v5434
      %v5474 = vunpack.c.l.b16 %v5435
      %v5475 = vunpack.c.l.b16 %v5436
      %v5476 = vunpack.c.l.b16 %v5437
      %v5477 = vunpack.c.l.b16 %v5438
      %v5478 = vunpack.c.l.b16 %v5439
      %v5479 = vunpack.c.l.b16 %v5440
      %v5480 = vunpack.c.l.b16 %v5441
      %v5481 = vpack.c.b16 %v5466, %v5465
      %v5482 = vpack.c.b16 %v5468, %v5467
      %v5483 = vpack.c.b16 %v5470, %v5469
      %v5484 = vpack.c.b16 %v5472, %v5471
      %v5485 = vpack.c.b16 %v5474, %v5473
      %v5486 = vpack.c.b16 %v5476, %v5475
      %v5487 = vpack.c.b16 %v5478, %v5477
      %v5488 = vpack.c.b16 %v5480, %v5479
      %5497 = vmatprep.subr.bf16.mxu0 0
      %5498 = vmatpush1.bf16.msra.mxu0 %v5488
      %5499 = vmatprep.subr.bf16.mxu0 0
      %5500 = vmatpush1.bf16.msra.mxu0 %v5487
      %5501 = vmatprep.subr.bf16.mxu0 0
      %5502 = vmatpush1.bf16.msra.mxu0 %v5486
      %5503 = vmatprep.subr.bf16.mxu0 0
      %5504 = vmatpush1.bf16.msra.mxu0 %v5485
      %5505 = vmatprep.subr.bf16.mxu0 0
      %5506 = vmatpush1.bf16.msra.mxu0 %v5484
      %5507 = vmatprep.subr.bf16.mxu0 0
      %5508 = vmatpush1.bf16.msra.mxu0 %v5483
      %5509 = vmatprep.subr.bf16.mxu0 0
      %5510 = vmatpush1.bf16.msra.mxu0 %v5482
      %5511 = vmatprep.subr.bf16.mxu0 0
      %5512 = vmatpush1.bf16.msra.mxu0 %v5481
      %5513 = vmatprep.subr.bf16.mxu0 0
      %5514 = vmatpush2.bf16.msra.mxu0 0
      %5515 = vmatprep.subr.bf16.mxu0 0
      %5516 = vmatpush2.bf16.msra.mxu0 0
      %5517 = vmatprep.subr.bf16.mxu0 0
      %5518 = vmatpush2.bf16.msra.mxu0 0
      %5519 = vmatprep.subr.bf16.mxu0 0
      %5520 = vmatpush2.bf16.msra.mxu0 0
      %5521 = vmatprep.subr.bf16.mxu0 0
      %5522 = vmatpush2.bf16.msra.mxu0 0
      %5523 = vmatprep.subr.bf16.mxu0 0
      %5524 = vmatpush2.bf16.msra.mxu0 0
      %5525 = vmatprep.subr.bf16.mxu0 0
      %5526 = vmatpush2.bf16.msra.mxu0 0
      %5527 = vmatprep.subr.bf16.mxu0 0
      %5528 = vmatpush2.bf16.msra.mxu0 0
      %5529 = vmatprep.mubr.bf16.mxu0 0
      %5530 = vmatmul.mubr.bf16.gmra.mxu0 %v5425
      %v5531 = vpop.f32.mrf.mxu0
      %v5532 = vadd.f32 %v5447, %v5531
      %v5533 = vpop.f32.mrf.mxu0
      %v5534 = vpop.f32.mrf.mxu0
      %v5535 = vadd.f32 %v5447, %v5534
      %v5536 = vpop.f32.mrf.mxu0
      %5537 = vdwg.mxu0
      %v5538 = vpack.c.bf16 %v5535, %v5532
      %v5540 = vunpack.c.l.b16 %v5538
      %v5541 = vunpack.c.h.b16 %v5538
      %v5542 = vpack.c.b16 %v5540, %v5540
      %v5543 = vpack.c.b16 %v5541, %v5541
      %5546 = vst [vmem:[#allocation9] sm:$0xf] %v5542
      %5547 = vst [vmem:[#allocation9 + $0x4] sm:$0xf] %v5543
    $region41: #{tpu_custom_call.1} parent=1 // pred_fallthru
      _
    // Predicated region
    $region42: #{tpu_custom_call.1} parent=1 // pred_check
      _
    $region43: #{tpu_custom_call.1} parent=1 // pred_check_branch
      %5549 = sbr.rel (0) target = $region45
    $region44: #{tpu_custom_call.1} parent=1 // pred_region
      %s5551 = ssub.s32 128, 128
      %5552 = vsyncadd [#allocation5], %s5551
      %s5553 = sshll.u32 [#allocation9], 4
      %s5554 = int_to_ptr.vmem [resolvable:$true] %s5553
      %5559 = dma.vmem_to_hbm [thread:$0]  %s5554, 128, %s5, [#allocation5], 64, 64, 4
    $region45: #{tpu_custom_call.1} parent=1 // pred_fallthru
      _
    // Predicated region
    $region46: #{tpu_custom_call.1} parent=1 // pred_check
      _
    $region47: #{tpu_custom_call.1} parent=1 // pred_check_branch
      %5561 = sbr.rel (0) target = $region49
    $region48: #{tpu_custom_call.1} parent=1 // pred_region
      %5562 = dma.done [#allocation5], 128
    $region49: #{tpu_custom_call.1} parent=1 // pred_fallthru
      _
    %5563 = vsyncpa [#allocation4], 1
    %5564 = vsyncpa [#allocation7], 1
    %5565 = vsyncpa [#allocation5], 1

</llo_original>
